<compile_context>
chip_gen: v7x
topology: tpu7x:2x2x1
jax: 0.10.0
libtpu: 0.0.40
codegen_flags: <defaults>
</compile_context>

<pallas_src>
import jax
import jax.numpy as jnp
from jax.experimental import pallas as pl
from jax.experimental.pallas import tpu as pltpu


def _shred_kernel(x_ref,                       # (T*B, I)  bf16, time-major flattened
                  wih0_ref, bg0_ref,           # (I, 4H) bf16, (1, 4H) f32   (g-cols x2)
                  whh0_ref,                    # (H, 4H) f32                 (g-cols x2)
                  wih1_ref, whh1_ref, bg1_ref, # (H, 4H) f32, (H, 4H) f32, (1, 4H) f32 (g-cols x2)
                  w1_ref, b1_ref,              # (H,   L1p) bf16, (1, L1p) f32
                  w2_ref, b2_ref,              # (L1p, L2p) bf16, (1, L2p) f32
                  w3_ref, b3_ref,              # (L2p, Op ) bf16, (1, Op ) f32
                  out_ref):                    # (B, Op) f32
    B = out_ref.shape[0]
    T = x_ref.shape[0] // B
    H = whh0_ref.shape[0]

    # Weights / biases loaded & broadcast once (hoisted out of the recurrence).
    whh0 = whh0_ref[...]                                  # (H, 4H) f32
    wih1 = wih1_ref[...]                                  # (H, 4H) f32
    whh1 = whh1_ref[...]                                  # (H, 4H) f32
    bg1 = jnp.broadcast_to(bg1_ref[...], (B, 4 * H))      # (B, 4H) f32

    # Hoisted layer-0 input projection + bias: one MXU matmul covers every
    # timestep (x is already bf16 from the wrapper -> no in-kernel cast).
    pre0 = (jnp.dot(x_ref[...], wih0_ref[...],
                    preferred_element_type=jnp.float32)
            + bg0_ref[...])                               # (T*B, 4H) f32

    def gates_to_hc(gates, c):
        # Single full-vreg sigmoid EUP push.  The g-gate pre-activations were
        # pre-scaled by 2 in the wrapper, so tanh(x) = 2*sigmoid(2x) - 1 is a
        # cheap VPU mul+sub on the 32-lane slice.  Only tanh(c_new) remains.
        sig = jax.nn.sigmoid(gates)
        i = sig[:, 0 * H:1 * H]
        f = sig[:, 1 * H:2 * H]
        g = 2.0 * sig[:, 2 * H:3 * H] - 1.0
        o = sig[:, 3 * H:4 * H]
        c_new = f * c + i * g
        h_new = o * jnp.tanh(c_new)
        return h_new, c_new

    h0 = c0 = h1 = c1 = jnp.zeros((B, H), jnp.float32)
    for t in range(T):  # fully unrolled: T is small and static
        # Off the critical chain: depends only on h1(t-1), so it overlaps
        # layer-0's matmul/EUP work of this step (bg1 folded in here).
        h1_contrib = jnp.dot(h1, whh1, preferred_element_type=jnp.float32) + bg1
        # Layer 0 (chain): only h0 @ whh0, accumulated with the hoisted slice.
        g0 = jnp.dot(h0, whh0, preferred_element_type=jnp.float32) \
            + pre0[t * B:(t + 1) * B, :]
        h0, c0 = gates_to_hc(g0, c0)
        # Layer 1 (chain): single K=H matmul, no concatenate, no bias add.
        g1 = jnp.dot(h0, wih1, preferred_element_type=jnp.float32) + h1_contrib
        h1, c1 = gates_to_hc(g1, c1)

    # MLP head: linear1 -> relu -> linear2 -> relu -> linear3 (dropout=0 no-op).
    # All widths padded to 128 lanes in the wrapper -> full (8,128) vregs.
    z = jnp.dot(h1.astype(jnp.bfloat16), w1_ref[...],
                preferred_element_type=jnp.float32) + b1_ref[...]
    z = jnp.maximum(z, 0.0)
    z = jnp.dot(z.astype(jnp.bfloat16), w2_ref[...],
                preferred_element_type=jnp.float32) + b2_ref[...]
    z = jnp.maximum(z, 0.0)
    out_ref[...] = (jnp.dot(z.astype(jnp.bfloat16), w3_ref[...],
                            preferred_element_type=jnp.float32) + b3_ref[...])


def _round_up(n, m):
    return ((n + m - 1) // m) * m


@jax.jit
def shred_forward(x, params):
    """x: (B, T, I) float32, batch_first like torch.nn.LSTM(batch_first=True)."""
    B, T, I = x.shape
    H = params["whh0_t"].shape[0]
    L1 = params["w1_t"].shape[1]
    L2, O = params["w3_t"].shape

    B_pad = _round_up(max(B, 1), 8)     # full sublane group
    L1_pad = _round_up(L1, 128)         # lane-dense MLP intermediates
    L2_pad = _round_up(L2, 128)
    O_pad = _round_up(O, 128)           # lane-dense output -> unmasked stores

    # Pre-scale the g-gate columns [2H:3H) by 2 (exact power-of-two scaling)
    # so the kernel needs ONE sigmoid per cell: tanh(x) = 2*sigmoid(2x) - 1.
    def scale_g(w):
        return w.at[..., 2 * H:3 * H].multiply(2.0)

    mx = jnp.bfloat16  # MXU operand dtype for the non-recurrent matmuls only
    wih0 = scale_g(params["wih0_t"]).astype(mx)          # hoisted input proj
    bg0 = scale_g(params["bg0"])
    whh0 = scale_g(params["whh0_t"])                     # recurrence stays f32
    wih1 = scale_g(params["wih1_t"])
    whh1 = scale_g(params["whh1_t"])
    bg1 = scale_g(params["bg1"])

    # Input: pad batch, go time-major, flatten to (T*B_pad, I), cast bf16 in
    # the wrapper so the kernel prologue has no cast before the pre0 matmul.
    x_p = jnp.zeros((B_pad, T, I), jnp.float32).at[:B].set(x.astype(jnp.float32))
    x_tm = jnp.transpose(x_p, (1, 0, 2)).reshape(T * B_pad, I).astype(mx)

    # MLP head weights, zero-padded to 128-lane widths.
    w1 = jnp.zeros((H, L1_pad), mx).at[:, :L1].set(params["w1_t"].astype(mx))
    b1 = jnp.zeros((1, L1_pad), jnp.float32).at[:, :L1].set(params["b1"])
    w2 = jnp.zeros((L1_pad, L2_pad), mx).at[:L1, :L2].set(params["w2_t"].astype(mx))
    b2 = jnp.zeros((1, L2_pad), jnp.float32).at[:, :L2].set(params["b2"])
    w3 = jnp.zeros((L2_pad, O_pad), mx).at[:L2, :O].set(params["w3_t"].astype(mx))
    b3 = jnp.zeros((1, O_pad), jnp.float32).at[:, :O].set(params["b3"])

    args = (x_tm,
            wih0, bg0, whh0,
            wih1, whh1, bg1,
            w1, b1, w2, b2, w3, b3)

    # Grid-less call: everything fits in VMEM (~120 KB).  For large production
    # batches, tile B_pad with a grid axis + dimension_semantics=("parallel",)
    # to use both v7x TensorCores and re-check the per-core tile against its
    # smaller (64 MiB physical / 32 MiB scoped) VMEM.
    vmem = pl.BlockSpec(memory_space=pltpu.MemorySpace.VMEM)
    out = pl.pallas_call(
        _shred_kernel,
        out_shape=jax.ShapeDtypeStruct((B_pad, O_pad), jnp.float32),
        in_specs=[vmem] * len(args),
        out_specs=vmem,
    )(*args)
    return out[:B, :O]


def make_params(key, input_size, hidden_size, l1, l2, output_size):
    """Deterministic synthetic weights (uniform, PyTorch-like scale)."""
    def uni(k, shape, bound):
        return jax.random.uniform(k, shape, jnp.float32, -bound, bound)

    ks = jax.random.split(key, 16)
    H = hidden_size
    bH = 1.0 / jnp.sqrt(H)
    # LSTM layer 0 (input_size -> H) and layer 1 (H -> H), gate order [i,f,g,o].
    wih0 = uni(ks[0], (4 * H, input_size), bH)
    whh0 = uni(ks[1], (4 * H, H), bH)
    bih0 = uni(ks[2], (4 * H,), bH)
    bhh0 = uni(ks[3], (4 * H,), bH)
    wih1 = uni(ks[4], (4 * H, H), bH)
    whh1 = uni(ks[5], (4 * H, H), bH)
    bih1 = uni(ks[6], (4 * H,), bH)
    bhh1 = uni(ks[7], (4 * H,), bH)
    # MLP
    w1 = uni(ks[8], (l1, H), 1.0 / jnp.sqrt(H))
    b1 = uni(ks[9], (l1,), 1.0 / jnp.sqrt(H))
    w2 = uni(ks[10], (l2, l1), 1.0 / jnp.sqrt(l1))
    b2 = uni(ks[11], (l2,), 1.0 / jnp.sqrt(l1))
    w3 = uni(ks[12], (output_size, l2), 1.0 / jnp.sqrt(l2))
    b3 = uni(ks[13], (output_size,), 1.0 / jnp.sqrt(l2))

    return {
        "wih0_t": wih0.T, "whh0_t": whh0.T, "bg0": (bih0 + bhh0)[None, :],
        "wih1_t": wih1.T, "whh1_t": whh1.T, "bg1": (bih1 + bhh1)[None, :],
        "w1_t": w1.T, "b1": b1[None, :],
        "w2_t": w2.T, "b2": b2[None, :],
        "w3_t": w3.T, "b3": b3[None, :],
    }


def shred_reference(x, params):
    """Pure-JAX f32 reference matching torch.nn.LSTM + MLP semantics."""
    B, T, I = x.shape
    H = params["whh0_t"].shape[0]

    def mm(a, w):
        return jnp.dot(a, w, preferred_element_type=jnp.float32)

    def cell(x_t, h, c, wih_t, whh_t, bg):
        gates = mm(x_t, wih_t) + mm(h, whh_t) + bg
        i = jax.nn.sigmoid(gates[:, 0 * H:1 * H])
        f = jax.nn.sigmoid(gates[:, 1 * H:2 * H])
        g = jnp.tanh(gates[:, 2 * H:3 * H])
        o = jax.nn.sigmoid(gates[:, 3 * H:4 * H])
        c = f * c + i * g
        return o * jnp.tanh(c), c

    h0 = c0 = h1 = c1 = jnp.zeros((B, H), jnp.float32)
    for t in range(T):
        h0, c0 = cell(x[:, t, :], h0, c0,
                      params["wih0_t"], params["whh0_t"], params["bg0"])
        h1, c1 = cell(h0, h1, c1,
                      params["wih1_t"], params["whh1_t"], params["bg1"])
    z = jnp.maximum(mm(h1, params["w1_t"]) + params["b1"], 0.0)
    z = jnp.maximum(mm(z, params["w2_t"]) + params["b2"], 0.0)
    return mm(z, params["w3_t"]) + params["b3"]


if __name__ == "__main__":
    # Small shapes consistent with the module: batch=2, seq=8, sensors=6,
    # hidden=32 (2 LSTM layers), l1=64, l2=96, output=50.
    B, T, I = 2, 8, 6
    H, L1, L2, O = 32, 64, 96, 50

    key = jax.random.PRNGKey(0)
    kx, kp = jax.random.split(key)
    x = jax.random.normal(kx, (B, T, I), dtype=jnp.float32)
    params = make_params(kp, I, H, L1, L2, O)

    out = jax.block_until_ready(shred_forward(x, params))
    assert out.shape == (B, O)

    # Semantics check vs full-f32 module math.  Tolerance covers the bf16
    # operands of the (non-recurrent) input projection and MLP head; the
    # recurrence itself now runs with f32 operands.
    ref = jax.block_until_ready(shred_reference(x, params))
    max_err = float(jnp.max(jnp.abs(out - ref)))
    assert jnp.allclose(out, ref, atol=5e-2, rtol=5e-2), \
        f"mismatch vs f32 reference (max abs err {max_err})"

    print("KERNEL_OK")
</pallas_src>

<mosaic_0001>
module attributes {stable_mosaic.version = 11 : i64} {
  func.func @_shred_kernel(%arg0: memref<64x6xbf16, #tpu.memory_space<vmem>>, %arg1: memref<6x128xbf16, #tpu.memory_space<vmem>>, %arg2: memref<1x128xf32, #tpu.memory_space<vmem>>, %arg3: memref<32x128xf32, #tpu.memory_space<vmem>>, %arg4: memref<32x128xf32, #tpu.memory_space<vmem>>, %arg5: memref<32x128xf32, #tpu.memory_space<vmem>>, %arg6: memref<1x128xf32, #tpu.memory_space<vmem>>, %arg7: memref<32x128xbf16, #tpu.memory_space<vmem>>, %arg8: memref<1x128xf32, #tpu.memory_space<vmem>>, %arg9: memref<128x128xbf16, #tpu.memory_space<vmem>>, %arg10: memref<1x128xf32, #tpu.memory_space<vmem>>, %arg11: memref<128x128xbf16, #tpu.memory_space<vmem>>, %arg12: memref<1x128xf32, #tpu.memory_space<vmem>>, %arg13: memref<8x128xf32, #tpu.memory_space<vmem>>) attributes {dimension_semantics = [], scalar_prefetch = 0 : i64, scratch_operands = 0 : i64, tpu.core_type = #tpu.core_type<tc>} {
    %c0 = arith.constant 0 : index
    %c0_0 = arith.constant 0 : index
    %0 = vector.load %arg3[%c0, %c0_0] : memref<32x128xf32, #tpu.memory_space<vmem>>, vector<32x128xf32>
    %c0_1 = arith.constant 0 : index
    %c0_2 = arith.constant 0 : index
    %1 = vector.load %arg4[%c0_1, %c0_2] : memref<32x128xf32, #tpu.memory_space<vmem>>, vector<32x128xf32>
    %c0_3 = arith.constant 0 : index
    %c0_4 = arith.constant 0 : index
    %2 = vector.load %arg5[%c0_3, %c0_4] : memref<32x128xf32, #tpu.memory_space<vmem>>, vector<32x128xf32>
    %c0_5 = arith.constant 0 : index
    %c0_6 = arith.constant 0 : index
    %3 = vector.load %arg6[%c0_5, %c0_6] : memref<1x128xf32, #tpu.memory_space<vmem>>, vector<1x128xf32>
    %4 = vector.shape_cast %3 : vector<1x128xf32> to vector<1x128xf32>
    %5 = vector.broadcast %4 : vector<1x128xf32> to vector<8x128xf32>
    %c0_7 = arith.constant 0 : index
    %c0_8 = arith.constant 0 : index
    %6 = vector.load %arg0[%c0_7, %c0_8] : memref<64x6xbf16, #tpu.memory_space<vmem>>, vector<64x6xbf16>
    %c0_9 = arith.constant 0 : index
    %c0_10 = arith.constant 0 : index
    %7 = vector.load %arg1[%c0_9, %c0_10] : memref<6x128xbf16, #tpu.memory_space<vmem>>, vector<6x128xbf16>
    %cst = arith.constant dense<0.000000e+00> : vector<64x128xf32>
    %8 = tpu.matmul %6, %7, %cst {dimension_numbers = #tpu.dot_dimension_numbers<[1], [0], [0], [1], [0, 0, 1, 1], [], []>} : vector<64x6xbf16>, vector<6x128xbf16>, vector<64x128xf32> -> vector<64x128xf32>
    %c0_11 = arith.constant 0 : index
    %c0_12 = arith.constant 0 : index
    %9 = vector.load %arg2[%c0_11, %c0_12] : memref<1x128xf32, #tpu.memory_space<vmem>>, vector<1x128xf32>
    %10 = vector.broadcast %9 : vector<1x128xf32> to vector<64x128xf32>
    %11 = arith.addf %8, %10 : vector<64x128xf32>
    %cst_13 = arith.constant 0.000000e+00 : f32
    %12 = vector.broadcast %cst_13 : f32 to vector<8x32xf32>
    %cst_14 = arith.constant dense<0.000000e+00> : vector<8x128xf32>
    %13 = tpu.matmul %12, %2, %cst_14 {dimension_numbers = #tpu.dot_dimension_numbers<[1], [0], [0], [1], [0, 0, 1, 1], [], []>} : vector<8x32xf32>, vector<32x128xf32>, vector<8x128xf32> -> vector<8x128xf32>
    %14 = arith.addf %13, %5 : vector<8x128xf32>
    %cst_15 = arith.constant dense<0.000000e+00> : vector<8x128xf32>
    %15 = tpu.matmul %12, %0, %cst_15 {dimension_numbers = #tpu.dot_dimension_numbers<[1], [0], [0], [1], [0, 0, 1, 1], [], []>} : vector<8x32xf32>, vector<32x128xf32>, vector<8x128xf32> -> vector<8x128xf32>
    %16 = vector.extract_strided_slice %11 {offsets = [0, 0], sizes = [8, 128], strides = [1, 1]} : vector<64x128xf32> to vector<8x128xf32>
    %17 = arith.addf %15, %16 : vector<8x128xf32>
    %18 = arith.negf %17 : vector<8x128xf32>
    %19 = math.exp %18 : vector<8x128xf32>
    %cst_16 = arith.constant 1.000000e+00 : f32
    %20 = vector.broadcast %cst_16 : f32 to vector<8x128xf32>
    %21 = arith.addf %20, %19 : vector<8x128xf32>
    %22 = arith.divf %20, %21 : vector<8x128xf32>
    %23 = vector.extract_strided_slice %22 {offsets = [0, 0], sizes = [8, 32], strides = [1, 1]} : vector<8x128xf32> to vector<8x32xf32>
    %24 = vector.extract_strided_slice %22 {offsets = [0, 32], sizes = [8, 32], strides = [1, 1]} : vector<8x128xf32> to vector<8x32xf32>
    %25 = vector.extract_strided_slice %22 {offsets = [0, 64], sizes = [8, 32], strides = [1, 1]} : vector<8x128xf32> to vector<8x32xf32>
    %cst_17 = arith.constant 2.000000e+00 : f32
    %26 = vector.broadcast %cst_17 : f32 to vector<8x32xf32>
    %27 = arith.mulf %26, %25 : vector<8x32xf32>
    %cst_18 = arith.constant 1.000000e+00 : f32
    %28 = vector.broadcast %cst_18 : f32 to vector<8x32xf32>
    %29 = arith.subf %27, %28 : vector<8x32xf32>
    %30 = vector.extract_strided_slice %22 {offsets = [0, 96], sizes = [8, 32], strides = [1, 1]} : vector<8x128xf32> to vector<8x32xf32>
    %31 = arith.mulf %24, %12 : vector<8x32xf32>
    %32 = arith.mulf %23, %29 : vector<8x32xf32>
    %33 = arith.addf %31, %32 : vector<8x32xf32>
    %34 = math.tanh %33 : vector<8x32xf32>
    %35 = arith.mulf %30, %34 : vector<8x32xf32>
    %cst_19 = arith.constant dense<0.000000e+00> : vector<8x128xf32>
    %36 = tpu.matmul %35, %1, %cst_19 {dimension_numbers = #tpu.dot_dimension_numbers<[1], [0], [0], [1], [0, 0, 1, 1], [], []>} : vector<8x32xf32>, vector<32x128xf32>, vector<8x128xf32> -> vector<8x128xf32>
    %37 = arith.addf %36, %14 : vector<8x128xf32>
    %38 = arith.negf %37 : vector<8x128xf32>
    %39 = math.exp %38 : vector<8x128xf32>
    %cst_20 = arith.constant 1.000000e+00 : f32
    %40 = vector.broadcast %cst_20 : f32 to vector<8x128xf32>
    %41 = arith.addf %40, %39 : vector<8x128xf32>
    %42 = arith.divf %40, %41 : vector<8x128xf32>
    %43 = vector.extract_strided_slice %42 {offsets = [0, 0], sizes = [8, 32], strides = [1, 1]} : vector<8x128xf32> to vector<8x32xf32>
    %44 = vector.extract_strided_slice %42 {offsets = [0, 32], sizes = [8, 32], strides = [1, 1]} : vector<8x128xf32> to vector<8x32xf32>
    %45 = vector.extract_strided_slice %42 {offsets = [0, 64], sizes = [8, 32], strides = [1, 1]} : vector<8x128xf32> to vector<8x32xf32>
    %cst_21 = arith.constant 2.000000e+00 : f32
    %46 = vector.broadcast %cst_21 : f32 to vector<8x32xf32>
    %47 = arith.mulf %46, %45 : vector<8x32xf32>
    %cst_22 = arith.constant 1.000000e+00 : f32
    %48 = vector.broadcast %cst_22 : f32 to vector<8x32xf32>
    %49 = arith.subf %47, %48 : vector<8x32xf32>
    %50 = vector.extract_strided_slice %42 {offsets = [0, 96], sizes = [8, 32], strides = [1, 1]} : vector<8x128xf32> to vector<8x32xf32>
    %51 = arith.mulf %44, %12 : vector<8x32xf32>
    %52 = arith.mulf %43, %49 : vector<8x32xf32>
    %53 = arith.addf %51, %52 : vector<8x32xf32>
    %54 = math.tanh %53 : vector<8x32xf32>
    %55 = arith.mulf %50, %54 : vector<8x32xf32>
    %cst_23 = arith.constant dense<0.000000e+00> : vector<8x128xf32>
    %56 = tpu.matmul %55, %2, %cst_23 {dimension_numbers = #tpu.dot_dimension_numbers<[1], [0], [0], [1], [0, 0, 1, 1], [], []>} : vector<8x32xf32>, vector<32x128xf32>, vector<8x128xf32> -> vector<8x128xf32>
    %57 = arith.addf %56, %5 : vector<8x128xf32>
    %cst_24 = arith.constant dense<0.000000e+00> : vector<8x128xf32>
    %58 = tpu.matmul %35, %0, %cst_24 {dimension_numbers = #tpu.dot_dimension_numbers<[1], [0], [0], [1], [0, 0, 1, 1], [], []>} : vector<8x32xf32>, vector<32x128xf32>, vector<8x128xf32> -> vector<8x128xf32>
    %59 = vector.extract_strided_slice %11 {offsets = [8, 0], sizes = [8, 128], strides = [1, 1]} : vector<64x128xf32> to vector<8x128xf32>
    %60 = arith.addf %58, %59 : vector<8x128xf32>
    %61 = arith.negf %60 : vector<8x128xf32>
    %62 = math.exp %61 : vector<8x128xf32>
    %cst_25 = arith.constant 1.000000e+00 : f32
    %63 = vector.broadcast %cst_25 : f32 to vector<8x128xf32>
    %64 = arith.addf %63, %62 : vector<8x128xf32>
    %65 = arith.divf %63, %64 : vector<8x128xf32>
    %66 = vector.extract_strided_slice %65 {offsets = [0, 0], sizes = [8, 32], strides = [1, 1]} : vector<8x128xf32> to vector<8x32xf32>
    %67 = vector.extract_strided_slice %65 {offsets = [0, 32], sizes = [8, 32], strides = [1, 1]} : vector<8x128xf32> to vector<8x32xf32>
    %68 = vector.extract_strided_slice %65 {offsets = [0, 64], sizes = [8, 32], strides = [1, 1]} : vector<8x128xf32> to vector<8x32xf32>
    %cst_26 = arith.constant 2.000000e+00 : f32
    %69 = vector.broadcast %cst_26 : f32 to vector<8x32xf32>
    %70 = arith.mulf %69, %68 : vector<8x32xf32>
    %cst_27 = arith.constant 1.000000e+00 : f32
    %71 = vector.broadcast %cst_27 : f32 to vector<8x32xf32>
    %72 = arith.subf %70, %71 : vector<8x32xf32>
    %73 = vector.extract_strided_slice %65 {offsets = [0, 96], sizes = [8, 32], strides = [1, 1]} : vector<8x128xf32> to vector<8x32xf32>
    %74 = arith.mulf %67, %33 : vector<8x32xf32>
    %75 = arith.mulf %66, %72 : vector<8x32xf32>
    %76 = arith.addf %74, %75 : vector<8x32xf32>
    %77 = math.tanh %76 : vector<8x32xf32>
    %78 = arith.mulf %73, %77 : vector<8x32xf32>
    %cst_28 = arith.constant dense<0.000000e+00> : vector<8x128xf32>
    %79 = tpu.matmul %78, %1, %cst_28 {dimension_numbers = #tpu.dot_dimension_numbers<[1], [0], [0], [1], [0, 0, 1, 1], [], []>} : vector<8x32xf32>, vector<32x128xf32>, vector<8x128xf32> -> vector<8x128xf32>
    %80 = arith.addf %79, %57 : vector<8x128xf32>
    %81 = arith.negf %80 : vector<8x128xf32>
    %82 = math.exp %81 : vector<8x128xf32>
    %cst_29 = arith.constant 1.000000e+00 : f32
    %83 = vector.broadcast %cst_29 : f32 to vector<8x128xf32>
    %84 = arith.addf %83, %82 : vector<8x128xf32>
    %85 = arith.divf %83, %84 : vector<8x128xf32>
    %86 = vector.extract_strided_slice %85 {offsets = [0, 0], sizes = [8, 32], strides = [1, 1]} : vector<8x128xf32> to vector<8x32xf32>
    %87 = vector.extract_strided_slice %85 {offsets = [0, 32], sizes = [8, 32], strides = [1, 1]} : vector<8x128xf32> to vector<8x32xf32>
    %88 = vector.extract_strided_slice %85 {offsets = [0, 64], sizes = [8, 32], strides = [1, 1]} : vector<8x128xf32> to vector<8x32xf32>
    %cst_30 = arith.constant 2.000000e+00 : f32
    %89 = vector.broadcast %cst_30 : f32 to vector<8x32xf32>
    %90 = arith.mulf %89, %88 : vector<8x32xf32>
    %cst_31 = arith.constant 1.000000e+00 : f32
    %91 = vector.broadcast %cst_31 : f32 to vector<8x32xf32>
    %92 = arith.subf %90, %91 : vector<8x32xf32>
    %93 = vector.extract_strided_slice %85 {offsets = [0, 96], sizes = [8, 32], strides = [1, 1]} : vector<8x128xf32> to vector<8x32xf32>
    %94 = arith.mulf %87, %53 : vector<8x32xf32>
    %95 = arith.mulf %86, %92 : vector<8x32xf32>
    %96 = arith.addf %94, %95 : vector<8x32xf32>
    %97 = math.tanh %96 : vector<8x32xf32>
    %98 = arith.mulf %93, %97 : vector<8x32xf32>
    %cst_32 = arith.constant dense<0.000000e+00> : vector<8x128xf32>
    %99 = tpu.matmul %98, %2, %cst_32 {dimension_numbers = #tpu.dot_dimension_numbers<[1], [0], [0], [1], [0, 0, 1, 1], [], []>} : vector<8x32xf32>, vector<32x128xf32>, vector<8x128xf32> -> vector<8x128xf32>
    %100 = arith.addf %99, %5 : vector<8x128xf32>
    %cst_33 = arith.constant dense<0.000000e+00> : vector<8x128xf32>
    %101 = tpu.matmul %78, %0, %cst_33 {dimension_numbers = #tpu.dot_dimension_numbers<[1], [0], [0], [1], [0, 0, 1, 1], [], []>} : vector<8x32xf32>, vector<32x128xf32>, vector<8x128xf32> -> vector<8x128xf32>
    %102 = vector.extract_strided_slice %11 {offsets = [16, 0], sizes = [8, 128], strides = [1, 1]} : vector<64x128xf32> to vector<8x128xf32>
    %103 = arith.addf %101, %102 : vector<8x128xf32>
    %104 = arith.negf %103 : vector<8x128xf32>
    %105 = math.exp %104 : vector<8x128xf32>
    %cst_34 = arith.constant 1.000000e+00 : f32
    %106 = vector.broadcast %cst_34 : f32 to vector<8x128xf32>
    %107 = arith.addf %106, %105 : vector<8x128xf32>
    %108 = arith.divf %106, %107 : vector<8x128xf32>
    %109 = vector.extract_strided_slice %108 {offsets = [0, 0], sizes = [8, 32], strides = [1, 1]} : vector<8x128xf32> to vector<8x32xf32>
    %110 = vector.extract_strided_slice %108 {offsets = [0, 32], sizes = [8, 32], strides = [1, 1]} : vector<8x128xf32> to vector<8x32xf32>
    %111 = vector.extract_strided_slice %108 {offsets = [0, 64], sizes = [8, 32], strides = [1, 1]} : vector<8x128xf32> to vector<8x32xf32>
    %cst_35 = arith.constant 2.000000e+00 : f32
    %112 = vector.broadcast %cst_35 : f32 to vector<8x32xf32>
    %113 = arith.mulf %112, %111 : vector<8x32xf32>
    %cst_36 = arith.constant 1.000000e+00 : f32
    %114 = vector.broadcast %cst_36 : f32 to vector<8x32xf32>
    %115 = arith.subf %113, %114 : vector<8x32xf32>
    %116 = vector.extract_strided_slice %108 {offsets = [0, 96], sizes = [8, 32], strides = [1, 1]} : vector<8x128xf32> to vector<8x32xf32>
    %117 = arith.mulf %110, %76 : vector<8x32xf32>
    %118 = arith.mulf %109, %115 : vector<8x32xf32>
    %119 = arith.addf %117, %118 : vector<8x32xf32>
    %120 = math.tanh %119 : vector<8x32xf32>
    %121 = arith.mulf %116, %120 : vector<8x32xf32>
    %cst_37 = arith.constant dense<0.000000e+00> : vector<8x128xf32>
    %122 = tpu.matmul %121, %1, %cst_37 {dimension_numbers = #tpu.dot_dimension_numbers<[1], [0], [0], [1], [0, 0, 1, 1], [], []>} : vector<8x32xf32>, vector<32x128xf32>, vector<8x128xf32> -> vector<8x128xf32>
    %123 = arith.addf %122, %100 : vector<8x128xf32>
    %124 = arith.negf %123 : vector<8x128xf32>
    %125 = math.exp %124 : vector<8x128xf32>
    %cst_38 = arith.constant 1.000000e+00 : f32
    %126 = vector.broadcast %cst_38 : f32 to vector<8x128xf32>
    %127 = arith.addf %126, %125 : vector<8x128xf32>
    %128 = arith.divf %126, %127 : vector<8x128xf32>
    %129 = vector.extract_strided_slice %128 {offsets = [0, 0], sizes = [8, 32], strides = [1, 1]} : vector<8x128xf32> to vector<8x32xf32>
    %130 = vector.extract_strided_slice %128 {offsets = [0, 32], sizes = [8, 32], strides = [1, 1]} : vector<8x128xf32> to vector<8x32xf32>
    %131 = vector.extract_strided_slice %128 {offsets = [0, 64], sizes = [8, 32], strides = [1, 1]} : vector<8x128xf32> to vector<8x32xf32>
    %cst_39 = arith.constant 2.000000e+00 : f32
    %132 = vector.broadcast %cst_39 : f32 to vector<8x32xf32>
    %133 = arith.mulf %132, %131 : vector<8x32xf32>
    %cst_40 = arith.constant 1.000000e+00 : f32
    %134 = vector.broadcast %cst_40 : f32 to vector<8x32xf32>
    %135 = arith.subf %133, %134 : vector<8x32xf32>
    %136 = vector.extract_strided_slice %128 {offsets = [0, 96], sizes = [8, 32], strides = [1, 1]} : vector<8x128xf32> to vector<8x32xf32>
    %137 = arith.mulf %130, %96 : vector<8x32xf32>
    %138 = arith.mulf %129, %135 : vector<8x32xf32>
    %139 = arith.addf %137, %138 : vector<8x32xf32>
    %140 = math.tanh %139 : vector<8x32xf32>
    %141 = arith.mulf %136, %140 : vector<8x32xf32>
    %cst_41 = arith.constant dense<0.000000e+00> : vector<8x128xf32>
    %142 = tpu.matmul %141, %2, %cst_41 {dimension_numbers = #tpu.dot_dimension_numbers<[1], [0], [0], [1], [0, 0, 1, 1], [], []>} : vector<8x32xf32>, vector<32x128xf32>, vector<8x128xf32> -> vector<8x128xf32>
    %143 = arith.addf %142, %5 : vector<8x128xf32>
    %cst_42 = arith.constant dense<0.000000e+00> : vector<8x128xf32>
    %144 = tpu.matmul %121, %0, %cst_42 {dimension_numbers = #tpu.dot_dimension_numbers<[1], [0], [0], [1], [0, 0, 1, 1], [], []>} : vector<8x32xf32>, vector<32x128xf32>, vector<8x128xf32> -> vector<8x128xf32>
    %145 = vector.extract_strided_slice %11 {offsets = [24, 0], sizes = [8, 128], strides = [1, 1]} : vector<64x128xf32> to vector<8x128xf32>
    %146 = arith.addf %144, %145 : vector<8x128xf32>
    %147 = arith.negf %146 : vector<8x128xf32>
    %148 = math.exp %147 : vector<8x128xf32>
    %cst_43 = arith.constant 1.000000e+00 : f32
    %149 = vector.broadcast %cst_43 : f32 to vector<8x128xf32>
    %150 = arith.addf %149, %148 : vector<8x128xf32>
    %151 = arith.divf %149, %150 : vector<8x128xf32>
    %152 = vector.extract_strided_slice %151 {offsets = [0, 0], sizes = [8, 32], strides = [1, 1]} : vector<8x128xf32> to vector<8x32xf32>
    %153 = vector.extract_strided_slice %151 {offsets = [0, 32], sizes = [8, 32], strides = [1, 1]} : vector<8x128xf32> to vector<8x32xf32>
    %154 = vector.extract_strided_slice %151 {offsets = [0, 64], sizes = [8, 32], strides = [1, 1]} : vector<8x128xf32> to vector<8x32xf32>
    %cst_44 = arith.constant 2.000000e+00 : f32
    %155 = vector.broadcast %cst_44 : f32 to vector<8x32xf32>
    %156 = arith.mulf %155, %154 : vector<8x32xf32>
    %cst_45 = arith.constant 1.000000e+00 : f32
    %157 = vector.broadcast %cst_45 : f32 to vector<8x32xf32>
    %158 = arith.subf %156, %157 : vector<8x32xf32>
    %159 = vector.extract_strided_slice %151 {offsets = [0, 96], sizes = [8, 32], strides = [1, 1]} : vector<8x128xf32> to vector<8x32xf32>
    %160 = arith.mulf %153, %119 : vector<8x32xf32>
    %161 = arith.mulf %152, %158 : vector<8x32xf32>
    %162 = arith.addf %160, %161 : vector<8x32xf32>
    %163 = math.tanh %162 : vector<8x32xf32>
    %164 = arith.mulf %159, %163 : vector<8x32xf32>
    %cst_46 = arith.constant dense<0.000000e+00> : vector<8x128xf32>
    %165 = tpu.matmul %164, %1, %cst_46 {dimension_numbers = #tpu.dot_dimension_numbers<[1], [0], [0], [1], [0, 0, 1, 1], [], []>} : vector<8x32xf32>, vector<32x128xf32>, vector<8x128xf32> -> vector<8x128xf32>
    %166 = arith.addf %165, %143 : vector<8x128xf32>
    %167 = arith.negf %166 : vector<8x128xf32>
    %168 = math.exp %167 : vector<8x128xf32>
    %cst_47 = arith.constant 1.000000e+00 : f32
    %169 = vector.broadcast %cst_47 : f32 to vector<8x128xf32>
    %170 = arith.addf %169, %168 : vector<8x128xf32>
    %171 = arith.divf %169, %170 : vector<8x128xf32>
    %172 = vector.extract_strided_slice %171 {offsets = [0, 0], sizes = [8, 32], strides = [1, 1]} : vector<8x128xf32> to vector<8x32xf32>
    %173 = vector.extract_strided_slice %171 {offsets = [0, 32], sizes = [8, 32], strides = [1, 1]} : vector<8x128xf32> to vector<8x32xf32>
    %174 = vector.extract_strided_slice %171 {offsets = [0, 64], sizes = [8, 32], strides = [1, 1]} : vector<8x128xf32> to vector<8x32xf32>
    %cst_48 = arith.constant 2.000000e+00 : f32
    %175 = vector.broadcast %cst_48 : f32 to vector<8x32xf32>
    %176 = arith.mulf %175, %174 : vector<8x32xf32>
    %cst_49 = arith.constant 1.000000e+00 : f32
    %177 = vector.broadcast %cst_49 : f32 to vector<8x32xf32>
    %178 = arith.subf %176, %177 : vector<8x32xf32>
    %179 = vector.extract_strided_slice %171 {offsets = [0, 96], sizes = [8, 32], strides = [1, 1]} : vector<8x128xf32> to vector<8x32xf32>
    %180 = arith.mulf %173, %139 : vector<8x32xf32>
    %181 = arith.mulf %172, %178 : vector<8x32xf32>
    %182 = arith.addf %180, %181 : vector<8x32xf32>
    %183 = math.tanh %182 : vector<8x32xf32>
    %184 = arith.mulf %179, %183 : vector<8x32xf32>
    %cst_50 = arith.constant dense<0.000000e+00> : vector<8x128xf32>
    %185 = tpu.matmul %184, %2, %cst_50 {dimension_numbers = #tpu.dot_dimension_numbers<[1], [0], [0], [1], [0, 0, 1, 1], [], []>} : vector<8x32xf32>, vector<32x128xf32>, vector<8x128xf32> -> vector<8x128xf32>
    %186 = arith.addf %185, %5 : vector<8x128xf32>
    %cst_51 = arith.constant dense<0.000000e+00> : vector<8x128xf32>
    %187 = tpu.matmul %164, %0, %cst_51 {dimension_numbers = #tpu.dot_dimension_numbers<[1], [0], [0], [1], [0, 0, 1, 1], [], []>} : vector<8x32xf32>, vector<32x128xf32>, vector<8x128xf32> -> vector<8x128xf32>
    %188 = vector.extract_strided_slice %11 {offsets = [32, 0], sizes = [8, 128], strides = [1, 1]} : vector<64x128xf32> to vector<8x128xf32>
    %189 = arith.addf %187, %188 : vector<8x128xf32>
    %190 = arith.negf %189 : vector<8x128xf32>
    %191 = math.exp %190 : vector<8x128xf32>
    %cst_52 = arith.constant 1.000000e+00 : f32
    %192 = vector.broadcast %cst_52 : f32 to vector<8x128xf32>
    %193 = arith.addf %192, %191 : vector<8x128xf32>
    %194 = arith.divf %192, %193 : vector<8x128xf32>
    %195 = vector.extract_strided_slice %194 {offsets = [0, 0], sizes = [8, 32], strides = [1, 1]} : vector<8x128xf32> to vector<8x32xf32>
    %196 = vector.extract_strided_slice %194 {offsets = [0, 32], sizes = [8, 32], strides = [1, 1]} : vector<8x128xf32> to vector<8x32xf32>
    %197 = vector.extract_strided_slice %194 {offsets = [0, 64], sizes = [8, 32], strides = [1, 1]} : vector<8x128xf32> to vector<8x32xf32>
    %cst_53 = arith.constant 2.000000e+00 : f32
    %198 = vector.broadcast %cst_53 : f32 to vector<8x32xf32>
    %199 = arith.mulf %198, %197 : vector<8x32xf32>
    %cst_54 = arith.constant 1.000000e+00 : f32
    %200 = vector.broadcast %cst_54 : f32 to vector<8x32xf32>
    %201 = arith.subf %199, %200 : vector<8x32xf32>
    %202 = vector.extract_strided_slice %194 {offsets = [0, 96], sizes = [8, 32], strides = [1, 1]} : vector<8x128xf32> to vector<8x32xf32>
    %203 = arith.mulf %196, %162 : vector<8x32xf32>
    %204 = arith.mulf %195, %201 : vector<8x32xf32>
    %205 = arith.addf %203, %204 : vector<8x32xf32>
    %206 = math.tanh %205 : vector<8x32xf32>
    %207 = arith.mulf %202, %206 : vector<8x32xf32>
    %cst_55 = arith.constant dense<0.000000e+00> : vector<8x128xf32>
    %208 = tpu.matmul %207, %1, %cst_55 {dimension_numbers = #tpu.dot_dimension_numbers<[1], [0], [0], [1], [0, 0, 1, 1], [], []>} : vector<8x32xf32>, vector<32x128xf32>, vector<8x128xf32> -> vector<8x128xf32>
    %209 = arith.addf %208, %186 : vector<8x128xf32>
    %210 = arith.negf %209 : vector<8x128xf32>
    %211 = math.exp %210 : vector<8x128xf32>
    %cst_56 = arith.constant 1.000000e+00 : f32
    %212 = vector.broadcast %cst_56 : f32 to vector<8x128xf32>
    %213 = arith.addf %212, %211 : vector<8x128xf32>
    %214 = arith.divf %212, %213 : vector<8x128xf32>
    %215 = vector.extract_strided_slice %214 {offsets = [0, 0], sizes = [8, 32], strides = [1, 1]} : vector<8x128xf32> to vector<8x32xf32>
    %216 = vector.extract_strided_slice %214 {offsets = [0, 32], sizes = [8, 32], strides = [1, 1]} : vector<8x128xf32> to vector<8x32xf32>
    %217 = vector.extract_strided_slice %214 {offsets = [0, 64], sizes = [8, 32], strides = [1, 1]} : vector<8x128xf32> to vector<8x32xf32>
    %cst_57 = arith.constant 2.000000e+00 : f32
    %218 = vector.broadcast %cst_57 : f32 to vector<8x32xf32>
    %219 = arith.mulf %218, %217 : vector<8x32xf32>
    %cst_58 = arith.constant 1.000000e+00 : f32
    %220 = vector.broadcast %cst_58 : f32 to vector<8x32xf32>
    %221 = arith.subf %219, %220 : vector<8x32xf32>
    %222 = vector.extract_strided_slice %214 {offsets = [0, 96], sizes = [8, 32], strides = [1, 1]} : vector<8x128xf32> to vector<8x32xf32>
    %223 = arith.mulf %216, %182 : vector<8x32xf32>
    %224 = arith.mulf %215, %221 : vector<8x32xf32>
    %225 = arith.addf %223, %224 : vector<8x32xf32>
    %226 = math.tanh %225 : vector<8x32xf32>
    %227 = arith.mulf %222, %226 : vector<8x32xf32>
    %cst_59 = arith.constant dense<0.000000e+00> : vector<8x128xf32>
    %228 = tpu.matmul %227, %2, %cst_59 {dimension_numbers = #tpu.dot_dimension_numbers<[1], [0], [0], [1], [0, 0, 1, 1], [], []>} : vector<8x32xf32>, vector<32x128xf32>, vector<8x128xf32> -> vector<8x128xf32>
    %229 = arith.addf %228, %5 : vector<8x128xf32>
    %cst_60 = arith.constant dense<0.000000e+00> : vector<8x128xf32>
    %230 = tpu.matmul %207, %0, %cst_60 {dimension_numbers = #tpu.dot_dimension_numbers<[1], [0], [0], [1], [0, 0, 1, 1], [], []>} : vector<8x32xf32>, vector<32x128xf32>, vector<8x128xf32> -> vector<8x128xf32>
    %231 = vector.extract_strided_slice %11 {offsets = [40, 0], sizes = [8, 128], strides = [1, 1]} : vector<64x128xf32> to vector<8x128xf32>
    %232 = arith.addf %230, %231 : vector<8x128xf32>
    %233 = arith.negf %232 : vector<8x128xf32>
    %234 = math.exp %233 : vector<8x128xf32>
    %cst_61 = arith.constant 1.000000e+00 : f32
    %235 = vector.broadcast %cst_61 : f32 to vector<8x128xf32>
    %236 = arith.addf %235, %234 : vector<8x128xf32>
    %237 = arith.divf %235, %236 : vector<8x128xf32>
    %238 = vector.extract_strided_slice %237 {offsets = [0, 0], sizes = [8, 32], strides = [1, 1]} : vector<8x128xf32> to vector<8x32xf32>
    %239 = vector.extract_strided_slice %237 {offsets = [0, 32], sizes = [8, 32], strides = [1, 1]} : vector<8x128xf32> to vector<8x32xf32>
    %240 = vector.extract_strided_slice %237 {offsets = [0, 64], sizes = [8, 32], strides = [1, 1]} : vector<8x128xf32> to vector<8x32xf32>
    %cst_62 = arith.constant 2.000000e+00 : f32
    %241 = vector.broadcast %cst_62 : f32 to vector<8x32xf32>
    %242 = arith.mulf %241, %240 : vector<8x32xf32>
    %cst_63 = arith.constant 1.000000e+00 : f32
    %243 = vector.broadcast %cst_63 : f32 to vector<8x32xf32>
    %244 = arith.subf %242, %243 : vector<8x32xf32>
    %245 = vector.extract_strided_slice %237 {offsets = [0, 96], sizes = [8, 32], strides = [1, 1]} : vector<8x128xf32> to vector<8x32xf32>
    %246 = arith.mulf %239, %205 : vector<8x32xf32>
    %247 = arith.mulf %238, %244 : vector<8x32xf32>
    %248 = arith.addf %246, %247 : vector<8x32xf32>
    %249 = math.tanh %248 : vector<8x32xf32>
    %250 = arith.mulf %245, %249 : vector<8x32xf32>
    %cst_64 = arith.constant dense<0.000000e+00> : vector<8x128xf32>
    %251 = tpu.matmul %250, %1, %cst_64 {dimension_numbers = #tpu.dot_dimension_numbers<[1], [0], [0], [1], [0, 0, 1, 1], [], []>} : vector<8x32xf32>, vector<32x128xf32>, vector<8x128xf32> -> vector<8x128xf32>
    %252 = arith.addf %251, %229 : vector<8x128xf32>
    %253 = arith.negf %252 : vector<8x128xf32>
    %254 = math.exp %253 : vector<8x128xf32>
    %cst_65 = arith.constant 1.000000e+00 : f32
    %255 = vector.broadcast %cst_65 : f32 to vector<8x128xf32>
    %256 = arith.addf %255, %254 : vector<8x128xf32>
    %257 = arith.divf %255, %256 : vector<8x128xf32>
    %258 = vector.extract_strided_slice %257 {offsets = [0, 0], sizes = [8, 32], strides = [1, 1]} : vector<8x128xf32> to vector<8x32xf32>
    %259 = vector.extract_strided_slice %257 {offsets = [0, 32], sizes = [8, 32], strides = [1, 1]} : vector<8x128xf32> to vector<8x32xf32>
    %260 = vector.extract_strided_slice %257 {offsets = [0, 64], sizes = [8, 32], strides = [1, 1]} : vector<8x128xf32> to vector<8x32xf32>
    %cst_66 = arith.constant 2.000000e+00 : f32
    %261 = vector.broadcast %cst_66 : f32 to vector<8x32xf32>
    %262 = arith.mulf %261, %260 : vector<8x32xf32>
    %cst_67 = arith.constant 1.000000e+00 : f32
    %263 = vector.broadcast %cst_67 : f32 to vector<8x32xf32>
    %264 = arith.subf %262, %263 : vector<8x32xf32>
    %265 = vector.extract_strided_slice %257 {offsets = [0, 96], sizes = [8, 32], strides = [1, 1]} : vector<8x128xf32> to vector<8x32xf32>
    %266 = arith.mulf %259, %225 : vector<8x32xf32>
    %267 = arith.mulf %258, %264 : vector<8x32xf32>
    %268 = arith.addf %266, %267 : vector<8x32xf32>
    %269 = math.tanh %268 : vector<8x32xf32>
    %270 = arith.mulf %265, %269 : vector<8x32xf32>
    %cst_68 = arith.constant dense<0.000000e+00> : vector<8x128xf32>
    %271 = tpu.matmul %270, %2, %cst_68 {dimension_numbers = #tpu.dot_dimension_numbers<[1], [0], [0], [1], [0, 0, 1, 1], [], []>} : vector<8x32xf32>, vector<32x128xf32>, vector<8x128xf32> -> vector<8x128xf32>
    %272 = arith.addf %271, %5 : vector<8x128xf32>
    %cst_69 = arith.constant dense<0.000000e+00> : vector<8x128xf32>
    %273 = tpu.matmul %250, %0, %cst_69 {dimension_numbers = #tpu.dot_dimension_numbers<[1], [0], [0], [1], [0, 0, 1, 1], [], []>} : vector<8x32xf32>, vector<32x128xf32>, vector<8x128xf32> -> vector<8x128xf32>
    %274 = vector.extract_strided_slice %11 {offsets = [48, 0], sizes = [8, 128], strides = [1, 1]} : vector<64x128xf32> to vector<8x128xf32>
    %275 = arith.addf %273, %274 : vector<8x128xf32>
    %276 = arith.negf %275 : vector<8x128xf32>
    %277 = math.exp %276 : vector<8x128xf32>
    %cst_70 = arith.constant 1.000000e+00 : f32
    %278 = vector.broadcast %cst_70 : f32 to vector<8x128xf32>
    %279 = arith.addf %278, %277 : vector<8x128xf32>
    %280 = arith.divf %278, %279 : vector<8x128xf32>
    %281 = vector.extract_strided_slice %280 {offsets = [0, 0], sizes = [8, 32], strides = [1, 1]} : vector<8x128xf32> to vector<8x32xf32>
    %282 = vector.extract_strided_slice %280 {offsets = [0, 32], sizes = [8, 32], strides = [1, 1]} : vector<8x128xf32> to vector<8x32xf32>
    %283 = vector.extract_strided_slice %280 {offsets = [0, 64], sizes = [8, 32], strides = [1, 1]} : vector<8x128xf32> to vector<8x32xf32>
    %cst_71 = arith.constant 2.000000e+00 : f32
    %284 = vector.broadcast %cst_71 : f32 to vector<8x32xf32>
    %285 = arith.mulf %284, %283 : vector<8x32xf32>
    %cst_72 = arith.constant 1.000000e+00 : f32
    %286 = vector.broadcast %cst_72 : f32 to vector<8x32xf32>
    %287 = arith.subf %285, %286 : vector<8x32xf32>
    %288 = vector.extract_strided_slice %280 {offsets = [0, 96], sizes = [8, 32], strides = [1, 1]} : vector<8x128xf32> to vector<8x32xf32>
    %289 = arith.mulf %282, %248 : vector<8x32xf32>
    %290 = arith.mulf %281, %287 : vector<8x32xf32>
    %291 = arith.addf %289, %290 : vector<8x32xf32>
    %292 = math.tanh %291 : vector<8x32xf32>
    %293 = arith.mulf %288, %292 : vector<8x32xf32>
    %cst_73 = arith.constant dense<0.000000e+00> : vector<8x128xf32>
    %294 = tpu.matmul %293, %1, %cst_73 {dimension_numbers = #tpu.dot_dimension_numbers<[1], [0], [0], [1], [0, 0, 1, 1], [], []>} : vector<8x32xf32>, vector<32x128xf32>, vector<8x128xf32> -> vector<8x128xf32>
    %295 = arith.addf %294, %272 : vector<8x128xf32>
    %296 = arith.negf %295 : vector<8x128xf32>
    %297 = math.exp %296 : vector<8x128xf32>
    %cst_74 = arith.constant 1.000000e+00 : f32
    %298 = vector.broadcast %cst_74 : f32 to vector<8x128xf32>
    %299 = arith.addf %298, %297 : vector<8x128xf32>
    %300 = arith.divf %298, %299 : vector<8x128xf32>
    %301 = vector.extract_strided_slice %300 {offsets = [0, 0], sizes = [8, 32], strides = [1, 1]} : vector<8x128xf32> to vector<8x32xf32>
    %302 = vector.extract_strided_slice %300 {offsets = [0, 32], sizes = [8, 32], strides = [1, 1]} : vector<8x128xf32> to vector<8x32xf32>
    %303 = vector.extract_strided_slice %300 {offsets = [0, 64], sizes = [8, 32], strides = [1, 1]} : vector<8x128xf32> to vector<8x32xf32>
    %cst_75 = arith.constant 2.000000e+00 : f32
    %304 = vector.broadcast %cst_75 : f32 to vector<8x32xf32>
    %305 = arith.mulf %304, %303 : vector<8x32xf32>
    %cst_76 = arith.constant 1.000000e+00 : f32
    %306 = vector.broadcast %cst_76 : f32 to vector<8x32xf32>
    %307 = arith.subf %305, %306 : vector<8x32xf32>
    %308 = vector.extract_strided_slice %300 {offsets = [0, 96], sizes = [8, 32], strides = [1, 1]} : vector<8x128xf32> to vector<8x32xf32>
    %309 = arith.mulf %302, %268 : vector<8x32xf32>
    %310 = arith.mulf %301, %307 : vector<8x32xf32>
    %311 = arith.addf %309, %310 : vector<8x32xf32>
    %312 = math.tanh %311 : vector<8x32xf32>
    %313 = arith.mulf %308, %312 : vector<8x32xf32>
    %cst_77 = arith.constant dense<0.000000e+00> : vector<8x128xf32>
    %314 = tpu.matmul %313, %2, %cst_77 {dimension_numbers = #tpu.dot_dimension_numbers<[1], [0], [0], [1], [0, 0, 1, 1], [], []>} : vector<8x32xf32>, vector<32x128xf32>, vector<8x128xf32> -> vector<8x128xf32>
    %315 = arith.addf %314, %5 : vector<8x128xf32>
    %cst_78 = arith.constant dense<0.000000e+00> : vector<8x128xf32>
    %316 = tpu.matmul %293, %0, %cst_78 {dimension_numbers = #tpu.dot_dimension_numbers<[1], [0], [0], [1], [0, 0, 1, 1], [], []>} : vector<8x32xf32>, vector<32x128xf32>, vector<8x128xf32> -> vector<8x128xf32>
    %317 = vector.extract_strided_slice %11 {offsets = [56, 0], sizes = [8, 128], strides = [1, 1]} : vector<64x128xf32> to vector<8x128xf32>
    %318 = arith.addf %316, %317 : vector<8x128xf32>
    %319 = arith.negf %318 : vector<8x128xf32>
    %320 = math.exp %319 : vector<8x128xf32>
    %cst_79 = arith.constant 1.000000e+00 : f32
    %321 = vector.broadcast %cst_79 : f32 to vector<8x128xf32>
    %322 = arith.addf %321, %320 : vector<8x128xf32>
    %323 = arith.divf %321, %322 : vector<8x128xf32>
    %324 = vector.extract_strided_slice %323 {offsets = [0, 0], sizes = [8, 32], strides = [1, 1]} : vector<8x128xf32> to vector<8x32xf32>
    %325 = vector.extract_strided_slice %323 {offsets = [0, 32], sizes = [8, 32], strides = [1, 1]} : vector<8x128xf32> to vector<8x32xf32>
    %326 = vector.extract_strided_slice %323 {offsets = [0, 64], sizes = [8, 32], strides = [1, 1]} : vector<8x128xf32> to vector<8x32xf32>
    %cst_80 = arith.constant 2.000000e+00 : f32
    %327 = vector.broadcast %cst_80 : f32 to vector<8x32xf32>
    %328 = arith.mulf %327, %326 : vector<8x32xf32>
    %cst_81 = arith.constant 1.000000e+00 : f32
    %329 = vector.broadcast %cst_81 : f32 to vector<8x32xf32>
    %330 = arith.subf %328, %329 : vector<8x32xf32>
    %331 = vector.extract_strided_slice %323 {offsets = [0, 96], sizes = [8, 32], strides = [1, 1]} : vector<8x128xf32> to vector<8x32xf32>
    %332 = arith.mulf %325, %291 : vector<8x32xf32>
    %333 = arith.mulf %324, %330 : vector<8x32xf32>
    %334 = arith.addf %332, %333 : vector<8x32xf32>
    %335 = math.tanh %334 : vector<8x32xf32>
    %336 = arith.mulf %331, %335 : vector<8x32xf32>
    %cst_82 = arith.constant dense<0.000000e+00> : vector<8x128xf32>
    %337 = tpu.matmul %336, %1, %cst_82 {dimension_numbers = #tpu.dot_dimension_numbers<[1], [0], [0], [1], [0, 0, 1, 1], [], []>} : vector<8x32xf32>, vector<32x128xf32>, vector<8x128xf32> -> vector<8x128xf32>
    %338 = arith.addf %337, %315 : vector<8x128xf32>
    %339 = arith.negf %338 : vector<8x128xf32>
    %340 = math.exp %339 : vector<8x128xf32>
    %cst_83 = arith.constant 1.000000e+00 : f32
    %341 = vector.broadcast %cst_83 : f32 to vector<8x128xf32>
    %342 = arith.addf %341, %340 : vector<8x128xf32>
    %343 = arith.divf %341, %342 : vector<8x128xf32>
    %344 = vector.extract_strided_slice %343 {offsets = [0, 0], sizes = [8, 32], strides = [1, 1]} : vector<8x128xf32> to vector<8x32xf32>
    %345 = vector.extract_strided_slice %343 {offsets = [0, 32], sizes = [8, 32], strides = [1, 1]} : vector<8x128xf32> to vector<8x32xf32>
    %346 = vector.extract_strided_slice %343 {offsets = [0, 64], sizes = [8, 32], strides = [1, 1]} : vector<8x128xf32> to vector<8x32xf32>
    %cst_84 = arith.constant 2.000000e+00 : f32
    %347 = vector.broadcast %cst_84 : f32 to vector<8x32xf32>
    %348 = arith.mulf %347, %346 : vector<8x32xf32>
    %cst_85 = arith.constant 1.000000e+00 : f32
    %349 = vector.broadcast %cst_85 : f32 to vector<8x32xf32>
    %350 = arith.subf %348, %349 : vector<8x32xf32>
    %351 = vector.extract_strided_slice %343 {offsets = [0, 96], sizes = [8, 32], strides = [1, 1]} : vector<8x128xf32> to vector<8x32xf32>
    %352 = arith.mulf %345, %311 : vector<8x32xf32>
    %353 = arith.mulf %344, %350 : vector<8x32xf32>
    %354 = arith.addf %352, %353 : vector<8x32xf32>
    %355 = math.tanh %354 : vector<8x32xf32>
    %356 = arith.mulf %351, %355 : vector<8x32xf32>
    %357 = arith.truncf %356 : vector<8x32xf32> to vector<8x32xbf16>
    %c0_86 = arith.constant 0 : index
    %c0_87 = arith.constant 0 : index
    %358 = vector.load %arg7[%c0_86, %c0_87] : memref<32x128xbf16, #tpu.memory_space<vmem>>, vector<32x128xbf16>
    %cst_88 = arith.constant dense<0.000000e+00> : vector<8x128xf32>
    %359 = tpu.matmul %357, %358, %cst_88 {dimension_numbers = #tpu.dot_dimension_numbers<[1], [0], [0], [1], [0, 0, 1, 1], [], []>} : vector<8x32xbf16>, vector<32x128xbf16>, vector<8x128xf32> -> vector<8x128xf32>
    %c0_89 = arith.constant 0 : index
    %c0_90 = arith.constant 0 : index
    %360 = vector.load %arg8[%c0_89, %c0_90] : memref<1x128xf32, #tpu.memory_space<vmem>>, vector<1x128xf32>
    %361 = vector.broadcast %360 : vector<1x128xf32> to vector<8x128xf32>
    %362 = arith.addf %359, %361 : vector<8x128xf32>
    %cst_91 = arith.constant 0.000000e+00 : f32
    %363 = vector.broadcast %cst_91 : f32 to vector<8x128xf32>
    %364 = arith.maximumf %362, %363 : vector<8x128xf32>
    %365 = arith.truncf %364 : vector<8x128xf32> to vector<8x128xbf16>
    %c0_92 = arith.constant 0 : index
    %c0_93 = arith.constant 0 : index
    %366 = vector.load %arg9[%c0_92, %c0_93] : memref<128x128xbf16, #tpu.memory_space<vmem>>, vector<128x128xbf16>
    %cst_94 = arith.constant dense<0.000000e+00> : vector<8x128xf32>
    %367 = tpu.matmul %365, %366, %cst_94 {dimension_numbers = #tpu.dot_dimension_numbers<[1], [0], [0], [1], [0, 0, 1, 1], [], []>} : vector<8x128xbf16>, vector<128x128xbf16>, vector<8x128xf32> -> vector<8x128xf32>
    %c0_95 = arith.constant 0 : index
    %c0_96 = arith.constant 0 : index
    %368 = vector.load %arg10[%c0_95, %c0_96] : memref<1x128xf32, #tpu.memory_space<vmem>>, vector<1x128xf32>
    %369 = vector.broadcast %368 : vector<1x128xf32> to vector<8x128xf32>
    %370 = arith.addf %367, %369 : vector<8x128xf32>
    %cst_97 = arith.constant 0.000000e+00 : f32
    %371 = vector.broadcast %cst_97 : f32 to vector<8x128xf32>
    %372 = arith.maximumf %370, %371 : vector<8x128xf32>
    %373 = arith.truncf %372 : vector<8x128xf32> to vector<8x128xbf16>
    %c0_98 = arith.constant 0 : index
    %c0_99 = arith.constant 0 : index
    %374 = vector.load %arg11[%c0_98, %c0_99] : memref<128x128xbf16, #tpu.memory_space<vmem>>, vector<128x128xbf16>
    %cst_100 = arith.constant dense<0.000000e+00> : vector<8x128xf32>
    %375 = tpu.matmul %373, %374, %cst_100 {dimension_numbers = #tpu.dot_dimension_numbers<[1], [0], [0], [1], [0, 0, 1, 1], [], []>} : vector<8x128xbf16>, vector<128x128xbf16>, vector<8x128xf32> -> vector<8x128xf32>
    %c0_101 = arith.constant 0 : index
    %c0_102 = arith.constant 0 : index
    %376 = vector.load %arg12[%c0_101, %c0_102] : memref<1x128xf32, #tpu.memory_space<vmem>>, vector<1x128xf32>
    %377 = vector.broadcast %376 : vector<1x128xf32> to vector<8x128xf32>
    %378 = arith.addf %375, %377 : vector<8x128xf32>
    %c0_103 = arith.constant 0 : index
    %c0_104 = arith.constant 0 : index
    %379 = vector.load %arg13[%c0_103, %c0_104] : memref<8x128xf32, #tpu.memory_space<vmem>>, vector<8x128xf32>
    tpu.vector_store %arg13[%c0_103, %c0_104], %378 {strides = array<i32>} : memref<8x128xf32, #tpu.memory_space<vmem>>, vector<8x128xf32>,
    return
  }
}

</mosaic_0001>

<llo_original>
// kernel: shred_forward.1
$region0: #{shred_forward.1}
  #allocation0 [shape = 'u32[]', space=smem, size = 0x4, offset = 0x4, fixed_abs, tag = 'smem constant byte address 0x4 - core index']
  #allocation1 [shape = 'u32[144,128]{1,0:T(1,128)}', space=vmem, size = 0x12000, scoped, tag = 'internal scratch']
  %s0 = inlined_call_operand.vmem [shape: bf16[64,6], index: 0, kind: input, shape index: {}]
  %s1 = inlined_call_operand.vmem [shape: bf16[6,128], index: 1, kind: input, shape index: {}]
  %s2 = inlined_call_operand.vmem [shape: f32[1,128], index: 2, kind: input, shape index: {}]
  %s3 = inlined_call_operand.vmem [shape: f32[32,128], index: 3, kind: input, shape index: {}]
  %s4 = inlined_call_operand.vmem [shape: f32[32,128], index: 4, kind: input, shape index: {}]
  %s5 = inlined_call_operand.vmem [shape: f32[32,128], index: 5, kind: input, shape index: {}]
  %s6 = inlined_call_operand.vmem [shape: f32[1,128], index: 6, kind: input, shape index: {}]
  %s7 = inlined_call_operand.vmem [shape: bf16[32,128], index: 7, kind: input, shape index: {}]
  %s8 = inlined_call_operand.vmem [shape: f32[1,128], index: 8, kind: input, shape index: {}]
  %s9 = inlined_call_operand.vmem [shape: bf16[128,128], index: 9, kind: input, shape index: {}]
  %s10 = inlined_call_operand.vmem [shape: f32[1,128], index: 10, kind: input, shape index: {}]
  %s11 = inlined_call_operand.vmem [shape: bf16[128,128], index: 11, kind: input, shape index: {}]
  %s12 = inlined_call_operand.vmem [shape: f32[1,128], index: 12, kind: input, shape index: {}]
  %s13 = inlined_call_operand.vmem [shape: f32[8,128], index: 13, kind: output, shape index: {}]
  %s14 = sld [smem:[#allocation0]]
  $region62: #{shred_forward.1} parent=0
    _
  %s16 = ssub.s32 1, %s14
  %s17 = scalar_select 0, %s16, %s14
  // Predicated region
  $region2: #{shred_forward.1} parent=0 // pred_check
    _
  $region3: #{shred_forward.1} parent=0 // pred_check_branch
    %19 = sbr.rel (0) target = $region5
  $region4: #{shred_forward.1} parent=0 // pred_region
    _
  $region5: #{shred_forward.1} parent=0 // pred_fallthru
    _
  // Predicated region
  $region6: #{shred_forward.1} parent=0 // pred_check
    _
  $region7: #{shred_forward.1} parent=0 // pred_check_branch
    %21 = sbr.rel (0) target = $region9
  $region8: #{shred_forward.1} parent=0 // pred_region
    _
  $region9: #{shred_forward.1} parent=0 // pred_fallthru
    _
  // Predicated region
  $region10: #{shred_forward.1} parent=0 // pred_check
    _
  $region11: #{shred_forward.1} parent=0 // pred_check_branch
    %23 = sbr.rel (0) target = $region13
  $region12: #{shred_forward.1} parent=0 // pred_region
    _
  $region13: #{shred_forward.1} parent=0 // pred_fallthru
    _
  // Predicated region
  $region14: #{shred_forward.1} parent=0 // pred_check
    _
  $region15: #{shred_forward.1} parent=0 // pred_check_branch
    %25 = sbr.rel (0) target = $region17
  $region16: #{shred_forward.1} parent=0 // pred_region
    _
  $region17: #{shred_forward.1} parent=0 // pred_fallthru
    _
  // Predicated region
  $region18: #{shred_forward.1} parent=0 // pred_check
    _
  $region19: #{shred_forward.1} parent=0 // pred_check_branch
    %27 = sbr.rel (0) target = $region21
  $region20: #{shred_forward.1} parent=0 // pred_region
    _
  $region21: #{shred_forward.1} parent=0 // pred_fallthru
    _
  // Predicated region
  $region22: #{shred_forward.1} parent=0 // pred_check
    _
  $region23: #{shred_forward.1} parent=0 // pred_check_branch
    %29 = sbr.rel (0) target = $region25
  $region24: #{shred_forward.1} parent=0 // pred_region
    _
  $region25: #{shred_forward.1} parent=0 // pred_fallthru
    _
  // Predicated region
  $region26: #{shred_forward.1} parent=0 // pred_check
    _
  $region27: #{shred_forward.1} parent=0 // pred_check_branch
    %31 = sbr.rel (0) target = $region29
  $region28: #{shred_forward.1} parent=0 // pred_region
    _
  $region29: #{shred_forward.1} parent=0 // pred_fallthru
    _
  // Predicated region
  $region30: #{shred_forward.1} parent=0 // pred_check
    _
  $region31: #{shred_forward.1} parent=0 // pred_check_branch
    %33 = sbr.rel (0) target = $region33
  $region32: #{shred_forward.1} parent=0 // pred_region
    _
  $region33: #{shred_forward.1} parent=0 // pred_fallthru
    _
  // Predicated region
  $region34: #{shred_forward.1} parent=0 // pred_check
    _
  $region35: #{shred_forward.1} parent=0 // pred_check_branch
    %35 = sbr.rel (0) target = $region37
  $region36: #{shred_forward.1} parent=0 // pred_region
    _
  $region37: #{shred_forward.1} parent=0 // pred_fallthru
    _
  // Predicated region
  $region38: #{shred_forward.1} parent=0 // pred_check
    _
  $region39: #{shred_forward.1} parent=0 // pred_check_branch
    %37 = sbr.rel (0) target = $region41
  $region40: #{shred_forward.1} parent=0 // pred_region
    _
  $region41: #{shred_forward.1} parent=0 // pred_fallthru
    _
  // Predicated region
  $region42: #{shred_forward.1} parent=0 // pred_check
    _
  $region43: #{shred_forward.1} parent=0 // pred_check_branch
    %39 = sbr.rel (0) target = $region45
  $region44: #{shred_forward.1} parent=0 // pred_region
    _
  $region45: #{shred_forward.1} parent=0 // pred_fallthru
    _
  // Predicated region
  $region46: #{shred_forward.1} parent=0 // pred_check
    _
  $region47: #{shred_forward.1} parent=0 // pred_check_branch
    %41 = sbr.rel (0) target = $region49
  $region48: #{shred_forward.1} parent=0 // pred_region
    _
  $region49: #{shred_forward.1} parent=0 // pred_fallthru
    _
  // Predicated region
  $region50: #{shred_forward.1} parent=0 // pred_check
    _
  $region51: #{shred_forward.1} parent=0 // pred_check_branch
    %43 = sbr.rel (0) target = $region53
  $region52: #{shred_forward.1} parent=0 // pred_region
    _
  $region53: #{shred_forward.1} parent=0 // pred_fallthru
    _
  %v45 = vld [vmem:[%s3] sm:$0xff]
  %v46 = vld [vmem:[%s3 + $0x8] sm:$0xff]
  %v47 = vld [vmem:[%s3 + $0x10] sm:$0xff]
  %v48 = vld [vmem:[%s3 + $0x18] sm:$0xff]
  %v49 = vld [vmem:[%s4] sm:$0xff]
  %v50 = vld [vmem:[%s4 + $0x8] sm:$0xff]
  %v51 = vld [vmem:[%s4 + $0x10] sm:$0xff]
  %v52 = vld [vmem:[%s4 + $0x18] sm:$0xff]
  %v53 = vld [vmem:[%s5] sm:$0xff]
  %v54 = vld [vmem:[%s5 + $0x8] sm:$0xff]
  %v55 = vld [vmem:[%s5 + $0x10] sm:$0xff]
  %v56 = vld [vmem:[%s5 + $0x18] sm:$0xff]
  %v57 = vld [vmem:[%s6] sm:$0x1]
  %v59 = vlaneseq
  %v60 = vshrl.u32 %v59, 7
  %v61 = vsub.s32 0, %v60
  %v62 = vrot.slane %v57, %v61
  %v64 = vld [vmem:[%s0] sm:$0xf]
  %v65 = vld [vmem:[%s0 + $0x4] sm:$0xf]
  %v66 = vld [vmem:[%s0 + $0x8] sm:$0xf]
  %v67 = vld [vmem:[%s0 + $0xc] sm:$0xf]
  %v68 = vld [vmem:[%s0 + $0x10] sm:$0xf]
  %v69 = vld [vmem:[%s0 + $0x14] sm:$0xf]
  %v70 = vld [vmem:[%s0 + $0x18] sm:$0xf]
  %v71 = vld [vmem:[%s0 + $0x1c] sm:$0xf]
  %v72 = vld [vmem:[%s1] sm:$0x7]
  %v73 = vld [vmem:[%s2] sm:$0x1]
  %v75 = vlaneseq
  %v76 = vshrl.u32 %v75, 7
  %v77 = vsub.s32 0, %v76
  %v78 = vrot.slane %v73, %v77
  %v88 = vunpack.c.l.b16 %v64
  %v89 = vunpack.c.l.b16 %v65
  %v90 = vunpack.c.l.b16 %v66
  %v91 = vunpack.c.l.b16 %v67
  %v92 = vunpack.c.l.b16 %v68
  %v93 = vunpack.c.l.b16 %v69
  %v94 = vunpack.c.l.b16 %v70
  %v95 = vunpack.c.l.b16 %v71
  %v96 = vpack.c.b16 %v89, %v88
  %v97 = vpack.c.b16 %v91, %v90
  %v98 = vpack.c.b16 %v93, %v92
  %v99 = vpack.c.b16 %v95, %v94
  %vm100 = vcmask 48128
  %v102 = vsel %vm100, %v96, 0
  %v105 = vsel %vm100, %v97, 0
  %v108 = vsel %vm100, %v98, 0
  %v111 = vsel %vm100, %v99, 0
  %vm113 = vcmask 1042432
  %v115 = vsel %vm113, %v72, 0
  %117 = vmatprep.subr.bf16.mxu0 0
  %118 = vmatpush1.bf16.msra.mxu0 %v115
  %119 = vmatprep.subr.bf16.mxu0 0
  %120 = vmatpush1.bf16.msra.mxu0 0
  %121 = vmatprep.subr.bf16.mxu0 0
  %122 = vmatpush1.bf16.msra.mxu0 0
  %123 = vmatprep.subr.bf16.mxu0 0
  %124 = vmatpush1.bf16.msra.mxu0 0
  %125 = vmatprep.subr.bf16.mxu0 0
  %126 = vmatpush1.bf16.msra.mxu0 0
  %127 = vmatprep.subr.bf16.mxu0 0
  %128 = vmatpush1.bf16.msra.mxu0 0
  %129 = vmatprep.subr.bf16.mxu0 0
  %130 = vmatpush1.bf16.msra.mxu0 0
  %131 = vmatprep.subr.bf16.mxu0 0
  %132 = vmatpush1.bf16.msra.mxu0 0
  %133 = vmatprep.subr.bf16.mxu0 0
  %134 = vmatpush1.bf16.msra.mxu0 0
  %135 = vmatprep.subr.bf16.mxu0 0
  %136 = vmatpush1.bf16.msra.mxu0 0
  %137 = vmatprep.subr.bf16.mxu0 0
  %138 = vmatpush1.bf16.msra.mxu0 0
  %139 = vmatprep.subr.bf16.mxu0 0
  %140 = vmatpush1.bf16.msra.mxu0 0
  %141 = vmatprep.subr.bf16.mxu0 0
  %142 = vmatpush1.bf16.msra.mxu0 0
  %143 = vmatprep.subr.bf16.mxu0 0
  %144 = vmatpush1.bf16.msra.mxu0 0
  %145 = vmatprep.subr.bf16.mxu0 0
  %146 = vmatpush1.bf16.msra.mxu0 0
  %147 = vmatprep.subr.bf16.mxu0 0
  %148 = vmatpush1.bf16.msra.mxu0 0
  %149 = vmatprep.mubr.bf16.mxu0 0
  %150 = vmatmul.mubr.bf16.gmra.mrb[0].mxu0 %v102
  %v151 = vpop.f32.mrb[0].mxu0
  %v152 = vadd.f32 %v78, %v151
  %v153 = vpop.f32.mrb[0].mxu0
  %v154 = vpop.f32.mrb[0].mxu0
  %v155 = vadd.f32 %v78, %v154
  %v156 = vpop.f32.mrb[0].mxu0
  %157 = vmatprep.mubr.bf16.mxu0 0
  %158 = vmatmul.mubr.bf16.gmra.mrb[0].mxu0 %v105
  %v159 = vpop.f32.mrb[0].mxu0
  %v160 = vadd.f32 %v78, %v159
  %v161 = vpop.f32.mrb[0].mxu0
  %v162 = vpop.f32.mrb[0].mxu0
  %v163 = vadd.f32 %v78, %v162
  %v164 = vpop.f32.mrb[0].mxu0
  %165 = vmatprep.mubr.bf16.mxu0 0
  %166 = vmatmul.mubr.bf16.gmra.mrb[0].mxu0 %v108
  %v167 = vpop.f32.mrb[0].mxu0
  %v168 = vadd.f32 %v78, %v167
  %v169 = vpop.f32.mrb[0].mxu0
  %v170 = vpop.f32.mrb[0].mxu0
  %v171 = vadd.f32 %v78, %v170
  %v172 = vpop.f32.mrb[0].mxu0
  %173 = vmatprep.mubr.bf16.mxu0 0
  %174 = vmatmul.mubr.bf16.gmra.mrb[0].mxu0 %v111
  %v175 = vpop.f32.mrb[0].mxu0
  %v176 = vadd.f32 %v78, %v175
  %v177 = vpop.f32.mrb[0].mxu0
  %v178 = vpop.f32.mrb[0].mxu0
  %v179 = vadd.f32 %v78, %v178
  %v180 = vpop.f32.mrb[0].mxu0
  %181 = vdwg.mxu0
  %vm182 = vcmask 261120
  %v184 = vsel %vm182, 0.0, 0
  %186 = vmatprep.subr.mxu0 0.0
  %187 = vmatpush1.msra.mxu0 %v53
  %188 = vmatprep.subr.mxu0 0.0
  %189 = vmatpush1.msra.mxu0 %v54
  %190 = vmatprep.subr.mxu0 0.0
  %191 = vmatpush1.msra.mxu0 %v55
  %192 = vmatprep.subr.mxu0 0.0
  %193 = vmatpush1.msra.mxu0 %v56
  %194 = vmatprep.subr.mxu0 0.0
  %195 = vmatpush1.msra.mxu0 0.0
  %196 = vmatprep.subr.mxu0 0.0
  %197 = vmatpush1.msra.mxu0 0.0
  %198 = vmatprep.subr.mxu0 0.0
  %199 = vmatpush1.msra.mxu0 0.0
  %200 = vmatprep.subr.mxu0 0.0
  %201 = vmatpush1.msra.mxu0 0.0
  %202 = vmatprep.subr.mxu0 0.0
  %203 = vmatpush1.msra.mxu0 0.0
  %204 = vmatprep.subr.mxu0 0.0
  %205 = vmatpush1.msra.mxu0 0.0
  %206 = vmatprep.subr.mxu0 0.0
  %207 = vmatpush1.msra.mxu0 0.0
  %208 = vmatprep.subr.mxu0 0.0
  %209 = vmatpush1.msra.mxu0 0.0
  %210 = vmatprep.subr.mxu0 0.0
  %211 = vmatpush1.msra.mxu0 0.0
  %212 = vmatprep.subr.mxu0 0.0
  %213 = vmatpush1.msra.mxu0 0.0
  %214 = vmatprep.subr.mxu0 0.0
  %215 = vmatpush1.msra.mxu0 0.0
  %216 = vmatprep.subr.mxu0 0.0
  %217 = vmatpush1.msra.mxu0 0.0
  %218 = vmatprep.subr.mxu0 0.0
  %219 = vmatpush1.msra.mxu0 0.0
  %220 = vmatprep.subr.mxu0 0.0
  %221 = vmatpush1.msra.mxu0 0.0
  %222 = vmatprep.subr.mxu0 0.0
  %223 = vmatpush1.msra.mxu0 0.0
  %224 = vmatprep.subr.mxu0 0.0
  %225 = vmatpush1.msra.mxu0 0.0
  %226 = vmatprep.subr.mxu0 0.0
  %227 = vmatpush1.msra.mxu0 0.0
  %228 = vmatprep.subr.mxu0 0.0
  %229 = vmatpush1.msra.mxu0 0.0
  %230 = vmatprep.subr.mxu0 0.0
  %231 = vmatpush1.msra.mxu0 0.0
  %232 = vmatprep.subr.mxu0 0.0
  %233 = vmatpush1.msra.mxu0 0.0
  %234 = vmatprep.subr.mxu0 0.0
  %235 = vmatpush1.msra.mxu0 0.0
  %236 = vmatprep.subr.mxu0 0.0
  %237 = vmatpush1.msra.mxu0 0.0
  %238 = vmatprep.subr.mxu0 0.0
  %239 = vmatpush1.msra.mxu0 0.0
  %240 = vmatprep.subr.mxu0 0.0
  %241 = vmatpush1.msra.mxu0 0.0
  %242 = vmatprep.subr.mxu0 0.0
  %243 = vmatpush1.msra.mxu0 0.0
  %244 = vmatprep.subr.mxu0 0.0
  %245 = vmatpush1.msra.mxu0 0.0
  %246 = vmatprep.subr.mxu0 0.0
  %247 = vmatpush1.msra.mxu0 0.0
  %248 = vmatprep.subr.mxu0 0.0
  %249 = vmatpush1.msra.mxu0 0.0
  %250 = vmatprep.mubr.f32.mxu0 0.0
  %251 = vmatmul.mubr.f32.gmra.mrb[0].mxu0 %v184
  %v252 = vpop.f32.mrb[0].mxu0
  %v253 = vadd.f32 %v62, %v252
  %v254 = vpop.f32.mrb[0].mxu0
  %255 = vdwg.mxu0
  %256 = vmatprep.subr.mxu0 0.0
  %257 = vmatpush1.msra.mxu0 %v45
  %258 = vmatprep.subr.mxu0 0.0
  %259 = vmatpush1.msra.mxu0 %v46
  %260 = vmatprep.subr.mxu0 0.0
  %261 = vmatpush1.msra.mxu0 %v47
  %262 = vmatprep.subr.mxu0 0.0
  %263 = vmatpush1.msra.mxu0 %v48
  %264 = vmatprep.subr.mxu0 0.0
  %265 = vmatpush1.msra.mxu0 0.0
  %266 = vmatprep.subr.mxu0 0.0
  %267 = vmatpush1.msra.mxu0 0.0
  %268 = vmatprep.subr.mxu0 0.0
  %269 = vmatpush1.msra.mxu0 0.0
  %270 = vmatprep.subr.mxu0 0.0
  %271 = vmatpush1.msra.mxu0 0.0
  %272 = vmatprep.subr.mxu0 0.0
  %273 = vmatpush1.msra.mxu0 0.0
  %274 = vmatprep.subr.mxu0 0.0
  %275 = vmatpush1.msra.mxu0 0.0
  %276 = vmatprep.subr.mxu0 0.0
  %277 = vmatpush1.msra.mxu0 0.0
  %278 = vmatprep.subr.mxu0 0.0
  %279 = vmatpush1.msra.mxu0 0.0
  %280 = vmatprep.subr.mxu0 0.0
  %281 = vmatpush1.msra.mxu0 0.0
  %282 = vmatprep.subr.mxu0 0.0
  %283 = vmatpush1.msra.mxu0 0.0
  %284 = vmatprep.subr.mxu0 0.0
  %285 = vmatpush1.msra.mxu0 0.0
  %286 = vmatprep.subr.mxu0 0.0
  %287 = vmatpush1.msra.mxu0 0.0
  %288 = vmatprep.subr.mxu0 0.0
  %289 = vmatpush1.msra.mxu0 0.0
  %290 = vmatprep.subr.mxu0 0.0
  %291 = vmatpush1.msra.mxu0 0.0
  %292 = vmatprep.subr.mxu0 0.0
  %293 = vmatpush1.msra.mxu0 0.0
  %294 = vmatprep.subr.mxu0 0.0
  %295 = vmatpush1.msra.mxu0 0.0
  %296 = vmatprep.subr.mxu0 0.0
  %297 = vmatpush1.msra.mxu0 0.0
  %298 = vmatprep.subr.mxu0 0.0
  %299 = vmatpush1.msra.mxu0 0.0
  %300 = vmatprep.subr.mxu0 0.0
  %301 = vmatpush1.msra.mxu0 0.0
  %302 = vmatprep.subr.mxu0 0.0
  %303 = vmatpush1.msra.mxu0 0.0
  %304 = vmatprep.subr.mxu0 0.0
  %305 = vmatpush1.msra.mxu0 0.0
  %306 = vmatprep.subr.mxu0 0.0
  %307 = vmatpush1.msra.mxu0 0.0
  %308 = vmatprep.subr.mxu0 0.0
  %309 = vmatpush1.msra.mxu0 0.0
  %310 = vmatprep.subr.mxu0 0.0
  %311 = vmatpush1.msra.mxu0 0.0
  %312 = vmatprep.subr.mxu0 0.0
  %313 = vmatpush1.msra.mxu0 0.0
  %314 = vmatprep.subr.mxu0 0.0
  %315 = vmatpush1.msra.mxu0 0.0
  %316 = vmatprep.subr.mxu0 0.0
  %317 = vmatpush1.msra.mxu0 0.0
  %318 = vmatprep.subr.mxu0 0.0
  %319 = vmatpush1.msra.mxu0 0.0
  %320 = vmatprep.mubr.f32.mxu0 0.0
  %321 = vmatmul.mubr.f32.gmra.mrb[0].mxu0 %v184
  %v322 = vpop.f32.mrb[0].mxu0
  %v323 = vadd.f32 %v152, %v322
  %v324 = vpop.f32.mrb[0].mxu0
  %325 = vdwg.mxu0
  %v326 = vxor.u32 %v323, 2147483648
  %v327 = vmul.f32 %v326, 1.442695
  %v328 = vpow.pop %v327
  %v329 = vadd.f32 %v328, 1.0
  %v330 = vrcp.pop %v329
  %v331 = vmul.f32 1.0, %v330
  %v332 = vmul.f32 %v331, 2.0
  %v333 = vsub.f32 %v332, 1.0
  %v334 = vmul.f32 %v331, 0.0
  %336 = vrot.lane.b32.xlu0 %v333, 64
  %v337 = vpop.permute.xlu0 %336
  %v339 = vmul.f32 %v331, %v337
  %341 = vrot.lane.b32.xlu0 %v339, 32
  %v342 = vpop.permute.xlu0 %341
  %v344 = vadd.f32 %v334, %v342
  %v345 = vtanh.pop %v344
  %347 = vrot.lane.b32.xlu0 %v345, 64
  %v348 = vpop.permute.xlu0 %347
  %v350 = vmul.f32 %v331, %v348
  %352 = vrot.lane.b32.xlu0 %v350, 32
  %v353 = vpop.permute.xlu0 %352
  %v354 = vsel %vm182, %v353, 0
  %356 = vmatprep.subr.mxu0 0.0
  %357 = vmatpush1.msra.mxu0 %v49
  %358 = vmatprep.subr.mxu0 0.0
  %359 = vmatpush1.msra.mxu0 %v50
  %360 = vmatprep.subr.mxu0 0.0
  %361 = vmatpush1.msra.mxu0 %v51
  %362 = vmatprep.subr.mxu0 0.0
  %363 = vmatpush1.msra.mxu0 %v52
  %364 = vmatprep.subr.mxu0 0.0
  %365 = vmatpush1.msra.mxu0 0.0
  %366 = vmatprep.subr.mxu0 0.0
  %367 = vmatpush1.msra.mxu0 0.0
  %368 = vmatprep.subr.mxu0 0.0
  %369 = vmatpush1.msra.mxu0 0.0
  %370 = vmatprep.subr.mxu0 0.0
  %371 = vmatpush1.msra.mxu0 0.0
  %372 = vmatprep.subr.mxu0 0.0
  %373 = vmatpush1.msra.mxu0 0.0
  %374 = vmatprep.subr.mxu0 0.0
  %375 = vmatpush1.msra.mxu0 0.0
  %376 = vmatprep.subr.mxu0 0.0
  %377 = vmatpush1.msra.mxu0 0.0
  %378 = vmatprep.subr.mxu0 0.0
  %379 = vmatpush1.msra.mxu0 0.0
  %380 = vmatprep.subr.mxu0 0.0
  %381 = vmatpush1.msra.mxu0 0.0
  %382 = vmatprep.subr.mxu0 0.0
  %383 = vmatpush1.msra.mxu0 0.0
  %384 = vmatprep.subr.mxu0 0.0
  %385 = vmatpush1.msra.mxu0 0.0
  %386 = vmatprep.subr.mxu0 0.0
  %387 = vmatpush1.msra.mxu0 0.0
  %388 = vmatprep.subr.mxu0 0.0
  %389 = vmatpush1.msra.mxu0 0.0
  %390 = vmatprep.subr.mxu0 0.0
  %391 = vmatpush1.msra.mxu0 0.0
  %392 = vmatprep.subr.mxu0 0.0
  %393 = vmatpush1.msra.mxu0 0.0
  %394 = vmatprep.subr.mxu0 0.0
  %395 = vmatpush1.msra.mxu0 0.0
  %396 = vmatprep.subr.mxu0 0.0
  %397 = vmatpush1.msra.mxu0 0.0
  %398 = vmatprep.subr.mxu0 0.0
  %399 = vmatpush1.msra.mxu0 0.0
  %400 = vmatprep.subr.mxu0 0.0
  %401 = vmatpush1.msra.mxu0 0.0
  %402 = vmatprep.subr.mxu0 0.0
  %403 = vmatpush1.msra.mxu0 0.0
  %404 = vmatprep.subr.mxu0 0.0
  %405 = vmatpush1.msra.mxu0 0.0
  %406 = vmatprep.subr.mxu0 0.0
  %407 = vmatpush1.msra.mxu0 0.0
  %408 = vmatprep.subr.mxu0 0.0
  %409 = vmatpush1.msra.mxu0 0.0
  %410 = vmatprep.subr.mxu0 0.0
  %411 = vmatpush1.msra.mxu0 0.0
  %412 = vmatprep.subr.mxu0 0.0
  %413 = vmatpush1.msra.mxu0 0.0
  %414 = vmatprep.subr.mxu0 0.0
  %415 = vmatpush1.msra.mxu0 0.0
  %416 = vmatprep.subr.mxu0 0.0
  %417 = vmatpush1.msra.mxu0 0.0
  %418 = vmatprep.subr.mxu0 0.0
  %419 = vmatpush1.msra.mxu0 0.0
  %420 = vmatprep.mubr.f32.mxu0 0.0
  %421 = vmatmul.mubr.f32.gmra.mrb[0].mxu0 %v354
  %v422 = vpop.f32.mrb[0].mxu0
  %v423 = vadd.f32 %v253, %v422
  %v424 = vpop.f32.mrb[0].mxu0
  %425 = vdwg.mxu0
  %v426 = vxor.u32 %v423, 2147483648
  %v427 = vmul.f32 %v426, 1.442695
  %v428 = vpow.pop %v427
  %v429 = vadd.f32 %v428, 1.0
  %v430 = vrcp.pop %v429
  %v431 = vmul.f32 1.0, %v430
  %v432 = vmul.f32 %v431, 2.0
  %v433 = vsub.f32 %v432, 1.0
  %v434 = vmul.f32 %v431, 0.0
  %436 = vrot.lane.b32.xlu0 %v433, 64
  %v437 = vpop.permute.xlu0 %436
  %v439 = vmul.f32 %v431, %v437
  %441 = vrot.lane.b32.xlu0 %v439, 32
  %v442 = vpop.permute.xlu0 %441
  %v444 = vadd.f32 %v434, %v442
  %v445 = vtanh.pop %v444
  %447 = vrot.lane.b32.xlu0 %v445, 64
  %v448 = vpop.permute.xlu0 %447
  %v450 = vmul.f32 %v431, %v448
  %452 = vrot.lane.b32.xlu0 %v450, 32
  %v453 = vpop.permute.xlu0 %452
  %v454 = vsel %vm182, %v453, 0
  %456 = vmatprep.subr.mxu0 0.0
  %457 = vmatpush1.msra.mxu0 %v53
  %458 = vmatprep.subr.mxu0 0.0
  %459 = vmatpush1.msra.mxu0 %v54
  %460 = vmatprep.subr.mxu0 0.0
  %461 = vmatpush1.msra.mxu0 %v55
  %462 = vmatprep.subr.mxu0 0.0
  %463 = vmatpush1.msra.mxu0 %v56
  %464 = vmatprep.subr.mxu0 0.0
  %465 = vmatpush1.msra.mxu0 0.0
  %466 = vmatprep.subr.mxu0 0.0
  %467 = vmatpush1.msra.mxu0 0.0
  %468 = vmatprep.subr.mxu0 0.0
  %469 = vmatpush1.msra.mxu0 0.0
  %470 = vmatprep.subr.mxu0 0.0
  %471 = vmatpush1.msra.mxu0 0.0
  %472 = vmatprep.subr.mxu0 0.0
  %473 = vmatpush1.msra.mxu0 0.0
  %474 = vmatprep.subr.mxu0 0.0
  %475 = vmatpush1.msra.mxu0 0.0
  %476 = vmatprep.subr.mxu0 0.0
  %477 = vmatpush1.msra.mxu0 0.0
  %478 = vmatprep.subr.mxu0 0.0
  %479 = vmatpush1.msra.mxu0 0.0
  %480 = vmatprep.subr.mxu0 0.0
  %481 = vmatpush1.msra.mxu0 0.0
  %482 = vmatprep.subr.mxu0 0.0
  %483 = vmatpush1.msra.mxu0 0.0
  %484 = vmatprep.subr.mxu0 0.0
  %485 = vmatpush1.msra.mxu0 0.0
  %486 = vmatprep.subr.mxu0 0.0
  %487 = vmatpush1.msra.mxu0 0.0
  %488 = vmatprep.subr.mxu0 0.0
  %489 = vmatpush1.msra.mxu0 0.0
  %490 = vmatprep.subr.mxu0 0.0
  %491 = vmatpush1.msra.mxu0 0.0
  %492 = vmatprep.subr.mxu0 0.0
  %493 = vmatpush1.msra.mxu0 0.0
  %494 = vmatprep.subr.mxu0 0.0
  %495 = vmatpush1.msra.mxu0 0.0
  %496 = vmatprep.subr.mxu0 0.0
  %497 = vmatpush1.msra.mxu0 0.0
  %498 = vmatprep.subr.mxu0 0.0
  %499 = vmatpush1.msra.mxu0 0.0
  %500 = vmatprep.subr.mxu0 0.0
  %501 = vmatpush1.msra.mxu0 0.0
  %502 = vmatprep.subr.mxu0 0.0
  %503 = vmatpush1.msra.mxu0 0.0
  %504 = vmatprep.subr.mxu0 0.0
  %505 = vmatpush1.msra.mxu0 0.0
  %506 = vmatprep.subr.mxu0 0.0
  %507 = vmatpush1.msra.mxu0 0.0
  %508 = vmatprep.subr.mxu0 0.0
  %509 = vmatpush1.msra.mxu0 0.0
  %510 = vmatprep.subr.mxu0 0.0
  %511 = vmatpush1.msra.mxu0 0.0
  %512 = vmatprep.subr.mxu0 0.0
  %513 = vmatpush1.msra.mxu0 0.0
  %514 = vmatprep.subr.mxu0 0.0
  %515 = vmatpush1.msra.mxu0 0.0
  %516 = vmatprep.subr.mxu0 0.0
  %517 = vmatpush1.msra.mxu0 0.0
  %518 = vmatprep.subr.mxu0 0.0
  %519 = vmatpush1.msra.mxu0 0.0
  %520 = vmatprep.mubr.f32.mxu0 0.0
  %521 = vmatmul.mubr.f32.gmra.mrb[0].mxu0 %v454
  %v522 = vpop.f32.mrb[0].mxu0
  %v523 = vadd.f32 %v62, %v522
  %v524 = vpop.f32.mrb[0].mxu0
  %525 = vdwg.mxu0
  %526 = vmatprep.subr.mxu0 0.0
  %527 = vmatpush1.msra.mxu0 %v45
  %528 = vmatprep.subr.mxu0 0.0
  %529 = vmatpush1.msra.mxu0 %v46
  %530 = vmatprep.subr.mxu0 0.0
  %531 = vmatpush1.msra.mxu0 %v47
  %532 = vmatprep.subr.mxu0 0.0
  %533 = vmatpush1.msra.mxu0 %v48
  %534 = vmatprep.subr.mxu0 0.0
  %535 = vmatpush1.msra.mxu0 0.0
  %536 = vmatprep.subr.mxu0 0.0
  %537 = vmatpush1.msra.mxu0 0.0
  %538 = vmatprep.subr.mxu0 0.0
  %539 = vmatpush1.msra.mxu0 0.0
  %540 = vmatprep.subr.mxu0 0.0
  %541 = vmatpush1.msra.mxu0 0.0
  %542 = vmatprep.subr.mxu0 0.0
  %543 = vmatpush1.msra.mxu0 0.0
  %544 = vmatprep.subr.mxu0 0.0
  %545 = vmatpush1.msra.mxu0 0.0
  %546 = vmatprep.subr.mxu0 0.0
  %547 = vmatpush1.msra.mxu0 0.0
  %548 = vmatprep.subr.mxu0 0.0
  %549 = vmatpush1.msra.mxu0 0.0
  %550 = vmatprep.subr.mxu0 0.0
  %551 = vmatpush1.msra.mxu0 0.0
  %552 = vmatprep.subr.mxu0 0.0
  %553 = vmatpush1.msra.mxu0 0.0
  %554 = vmatprep.subr.mxu0 0.0
  %555 = vmatpush1.msra.mxu0 0.0
  %556 = vmatprep.subr.mxu0 0.0
  %557 = vmatpush1.msra.mxu0 0.0
  %558 = vmatprep.subr.mxu0 0.0
  %559 = vmatpush1.msra.mxu0 0.0
  %560 = vmatprep.subr.mxu0 0.0
  %561 = vmatpush1.msra.mxu0 0.0
  %562 = vmatprep.subr.mxu0 0.0
  %563 = vmatpush1.msra.mxu0 0.0
  %564 = vmatprep.subr.mxu0 0.0
  %565 = vmatpush1.msra.mxu0 0.0
  %566 = vmatprep.subr.mxu0 0.0
  %567 = vmatpush1.msra.mxu0 0.0
  %568 = vmatprep.subr.mxu0 0.0
  %569 = vmatpush1.msra.mxu0 0.0
  %570 = vmatprep.subr.mxu0 0.0
  %571 = vmatpush1.msra.mxu0 0.0
  %572 = vmatprep.subr.mxu0 0.0
  %573 = vmatpush1.msra.mxu0 0.0
  %574 = vmatprep.subr.mxu0 0.0
  %575 = vmatpush1.msra.mxu0 0.0
  %576 = vmatprep.subr.mxu0 0.0
  %577 = vmatpush1.msra.mxu0 0.0
  %578 = vmatprep.subr.mxu0 0.0
  %579 = vmatpush1.msra.mxu0 0.0
  %580 = vmatprep.subr.mxu0 0.0
  %581 = vmatpush1.msra.mxu0 0.0
  %582 = vmatprep.subr.mxu0 0.0
  %583 = vmatpush1.msra.mxu0 0.0
  %584 = vmatprep.subr.mxu0 0.0
  %585 = vmatpush1.msra.mxu0 0.0
  %586 = vmatprep.subr.mxu0 0.0
  %587 = vmatpush1.msra.mxu0 0.0
  %588 = vmatprep.subr.mxu0 0.0
  %589 = vmatpush1.msra.mxu0 0.0
  %590 = vmatprep.mubr.f32.mxu0 0.0
  %591 = vmatmul.mubr.f32.gmra.mrb[0].mxu0 %v354
  %v592 = vpop.f32.mrb[0].mxu0
  %v593 = vadd.f32 %v155, %v592
  %v594 = vpop.f32.mrb[0].mxu0
  %595 = vdwg.mxu0
  %v596 = vxor.u32 %v593, 2147483648
  %v597 = vmul.f32 %v596, 1.442695
  %v598 = vpow.pop %v597
  %v599 = vadd.f32 %v598, 1.0
  %v600 = vrcp.pop %v599
  %v601 = vmul.f32 1.0, %v600
  %v602 = vmul.f32 %v601, 2.0
  %v603 = vsub.f32 %v602, 1.0
  %v604 = vmul.f32 %v601, %v344
  %606 = vrot.lane.b32.xlu0 %v603, 64
  %v607 = vpop.permute.xlu0 %606
  %v609 = vmul.f32 %v601, %v607
  %611 = vrot.lane.b32.xlu0 %v609, 32
  %v612 = vpop.permute.xlu0 %611
  %v614 = vadd.f32 %v604, %v612
  %v615 = vtanh.pop %v614
  %617 = vrot.lane.b32.xlu0 %v615, 64
  %v618 = vpop.permute.xlu0 %617
  %v620 = vmul.f32 %v601, %v618
  %622 = vrot.lane.b32.xlu0 %v620, 32
  %v623 = vpop.permute.xlu0 %622
  %v624 = vsel %vm182, %v623, 0
  %626 = vmatprep.subr.mxu0 0.0
  %627 = vmatpush1.msra.mxu0 %v49
  %628 = vmatprep.subr.mxu0 0.0
  %629 = vmatpush1.msra.mxu0 %v50
  %630 = vmatprep.subr.mxu0 0.0
  %631 = vmatpush1.msra.mxu0 %v51
  %632 = vmatprep.subr.mxu0 0.0
  %633 = vmatpush1.msra.mxu0 %v52
  %634 = vmatprep.subr.mxu0 0.0
  %635 = vmatpush1.msra.mxu0 0.0
  %636 = vmatprep.subr.mxu0 0.0
  %637 = vmatpush1.msra.mxu0 0.0
  %638 = vmatprep.subr.mxu0 0.0
  %639 = vmatpush1.msra.mxu0 0.0
  %640 = vmatprep.subr.mxu0 0.0
  %641 = vmatpush1.msra.mxu0 0.0
  %642 = vmatprep.subr.mxu0 0.0
  %643 = vmatpush1.msra.mxu0 0.0
  %644 = vmatprep.subr.mxu0 0.0
  %645 = vmatpush1.msra.mxu0 0.0
  %646 = vmatprep.subr.mxu0 0.0
  %647 = vmatpush1.msra.mxu0 0.0
  %648 = vmatprep.subr.mxu0 0.0
  %649 = vmatpush1.msra.mxu0 0.0
  %650 = vmatprep.subr.mxu0 0.0
  %651 = vmatpush1.msra.mxu0 0.0
  %652 = vmatprep.subr.mxu0 0.0
  %653 = vmatpush1.msra.mxu0 0.0
  %654 = vmatprep.subr.mxu0 0.0
  %655 = vmatpush1.msra.mxu0 0.0
  %656 = vmatprep.subr.mxu0 0.0
  %657 = vmatpush1.msra.mxu0 0.0
  %658 = vmatprep.subr.mxu0 0.0
  %659 = vmatpush1.msra.mxu0 0.0
  %660 = vmatprep.subr.mxu0 0.0
  %661 = vmatpush1.msra.mxu0 0.0
  %662 = vmatprep.subr.mxu0 0.0
  %663 = vmatpush1.msra.mxu0 0.0
  %664 = vmatprep.subr.mxu0 0.0
  %665 = vmatpush1.msra.mxu0 0.0
  %666 = vmatprep.subr.mxu0 0.0
  %667 = vmatpush1.msra.mxu0 0.0
  %668 = vmatprep.subr.mxu0 0.0
  %669 = vmatpush1.msra.mxu0 0.0
  %670 = vmatprep.subr.mxu0 0.0
  %671 = vmatpush1.msra.mxu0 0.0
  %672 = vmatprep.subr.mxu0 0.0
  %673 = vmatpush1.msra.mxu0 0.0
  %674 = vmatprep.subr.mxu0 0.0
  %675 = vmatpush1.msra.mxu0 0.0
  %676 = vmatprep.subr.mxu0 0.0
  %677 = vmatpush1.msra.mxu0 0.0
  %678 = vmatprep.subr.mxu0 0.0
  %679 = vmatpush1.msra.mxu0 0.0
  %680 = vmatprep.subr.mxu0 0.0
  %681 = vmatpush1.msra.mxu0 0.0
  %682 = vmatprep.subr.mxu0 0.0
  %683 = vmatpush1.msra.mxu0 0.0
  %684 = vmatprep.subr.mxu0 0.0
  %685 = vmatpush1.msra.mxu0 0.0
  %686 = vmatprep.subr.mxu0 0.0
  %687 = vmatpush1.msra.mxu0 0.0
  %688 = vmatprep.subr.mxu0 0.0
  %689 = vmatpush1.msra.mxu0 0.0
  %690 = vmatprep.mubr.f32.mxu0 0.0
  %691 = vmatmul.mubr.f32.gmra.mrb[0].mxu0 %v624
  %v692 = vpop.f32.mrb[0].mxu0
  %v693 = vadd.f32 %v523, %v692
  %v694 = vpop.f32.mrb[0].mxu0
  %695 = vdwg.mxu0
  %v696 = vxor.u32 %v693, 2147483648
  %v697 = vmul.f32 %v696, 1.442695
  %v698 = vpow.pop %v697
  %v699 = vadd.f32 %v698, 1.0
  %v700 = vrcp.pop %v699
  %v701 = vmul.f32 1.0, %v700
  %v702 = vmul.f32 %v701, 2.0
  %v703 = vsub.f32 %v702, 1.0
  %v704 = vmul.f32 %v701, %v444
  %706 = vrot.lane.b32.xlu0 %v703, 64
  %v707 = vpop.permute.xlu0 %706
  %v709 = vmul.f32 %v701, %v707
  %711 = vrot.lane.b32.xlu0 %v709, 32
  %v712 = vpop.permute.xlu0 %711
  %v714 = vadd.f32 %v704, %v712
  %v715 = vtanh.pop %v714
  %717 = vrot.lane.b32.xlu0 %v715, 64
  %v718 = vpop.permute.xlu0 %717
  %v720 = vmul.f32 %v701, %v718
  %722 = vrot.lane.b32.xlu0 %v720, 32
  %v723 = vpop.permute.xlu0 %722
  %v724 = vsel %vm182, %v723, 0
  %726 = vmatprep.subr.mxu0 0.0
  %727 = vmatpush1.msra.mxu0 %v53
  %728 = vmatprep.subr.mxu0 0.0
  %729 = vmatpush1.msra.mxu0 %v54
  %730 = vmatprep.subr.mxu0 0.0
  %731 = vmatpush1.msra.mxu0 %v55
  %732 = vmatprep.subr.mxu0 0.0
  %733 = vmatpush1.msra.mxu0 %v56
  %734 = vmatprep.subr.mxu0 0.0
  %735 = vmatpush1.msra.mxu0 0.0
  %736 = vmatprep.subr.mxu0 0.0
  %737 = vmatpush1.msra.mxu0 0.0
  %738 = vmatprep.subr.mxu0 0.0
  %739 = vmatpush1.msra.mxu0 0.0
  %740 = vmatprep.subr.mxu0 0.0
  %741 = vmatpush1.msra.mxu0 0.0
  %742 = vmatprep.subr.mxu0 0.0
  %743 = vmatpush1.msra.mxu0 0.0
  %744 = vmatprep.subr.mxu0 0.0
  %745 = vmatpush1.msra.mxu0 0.0
  %746 = vmatprep.subr.mxu0 0.0
  %747 = vmatpush1.msra.mxu0 0.0
  %748 = vmatprep.subr.mxu0 0.0
  %749 = vmatpush1.msra.mxu0 0.0
  %750 = vmatprep.subr.mxu0 0.0
  %751 = vmatpush1.msra.mxu0 0.0
  %752 = vmatprep.subr.mxu0 0.0
  %753 = vmatpush1.msra.mxu0 0.0
  %754 = vmatprep.subr.mxu0 0.0
  %755 = vmatpush1.msra.mxu0 0.0
  %756 = vmatprep.subr.mxu0 0.0
  %757 = vmatpush1.msra.mxu0 0.0
  %758 = vmatprep.subr.mxu0 0.0
  %759 = vmatpush1.msra.mxu0 0.0
  %760 = vmatprep.subr.mxu0 0.0
  %761 = vmatpush1.msra.mxu0 0.0
  %762 = vmatprep.subr.mxu0 0.0
  %763 = vmatpush1.msra.mxu0 0.0
  %764 = vmatprep.subr.mxu0 0.0
  %765 = vmatpush1.msra.mxu0 0.0
  %766 = vmatprep.subr.mxu0 0.0
  %767 = vmatpush1.msra.mxu0 0.0
  %768 = vmatprep.subr.mxu0 0.0
  %769 = vmatpush1.msra.mxu0 0.0
  %770 = vmatprep.subr.mxu0 0.0
  %771 = vmatpush1.msra.mxu0 0.0
  %772 = vmatprep.subr.mxu0 0.0
  %773 = vmatpush1.msra.mxu0 0.0
  %774 = vmatprep.subr.mxu0 0.0
  %775 = vmatpush1.msra.mxu0 0.0
  %776 = vmatprep.subr.mxu0 0.0
  %777 = vmatpush1.msra.mxu0 0.0
  %778 = vmatprep.subr.mxu0 0.0
  %779 = vmatpush1.msra.mxu0 0.0
  %780 = vmatprep.subr.mxu0 0.0
  %781 = vmatpush1.msra.mxu0 0.0
  %782 = vmatprep.subr.mxu0 0.0
  %783 = vmatpush1.msra.mxu0 0.0
  %784 = vmatprep.subr.mxu0 0.0
  %785 = vmatpush1.msra.mxu0 0.0
  %786 = vmatprep.subr.mxu0 0.0
  %787 = vmatpush1.msra.mxu0 0.0
  %788 = vmatprep.subr.mxu0 0.0
  %789 = vmatpush1.msra.mxu0 0.0
  %790 = vmatprep.mubr.f32.mxu0 0.0
  %791 = vmatmul.mubr.f32.gmra.mrb[0].mxu0 %v724
  %v792 = vpop.f32.mrb[0].mxu0
  %v793 = vadd.f32 %v62, %v792
  %v794 = vpop.f32.mrb[0].mxu0
  %795 = vdwg.mxu0
  %796 = vmatprep.subr.mxu0 0.0
  %797 = vmatpush1.msra.mxu0 %v45
  %798 = vmatprep.subr.mxu0 0.0
  %799 = vmatpush1.msra.mxu0 %v46
  %800 = vmatprep.subr.mxu0 0.0
  %801 = vmatpush1.msra.mxu0 %v47
  %802 = vmatprep.subr.mxu0 0.0
  %803 = vmatpush1.msra.mxu0 %v48
  %804 = vmatprep.subr.mxu0 0.0
  %805 = vmatpush1.msra.mxu0 0.0
  %806 = vmatprep.subr.mxu0 0.0
  %807 = vmatpush1.msra.mxu0 0.0
  %808 = vmatprep.subr.mxu0 0.0
  %809 = vmatpush1.msra.mxu0 0.0
  %810 = vmatprep.subr.mxu0 0.0
  %811 = vmatpush1.msra.mxu0 0.0
  %812 = vmatprep.subr.mxu0 0.0
  %813 = vmatpush1.msra.mxu0 0.0
  %814 = vmatprep.subr.mxu0 0.0
  %815 = vmatpush1.msra.mxu0 0.0
  %816 = vmatprep.subr.mxu0 0.0
  %817 = vmatpush1.msra.mxu0 0.0
  %818 = vmatprep.subr.mxu0 0.0
  %819 = vmatpush1.msra.mxu0 0.0
  %820 = vmatprep.subr.mxu0 0.0
  %821 = vmatpush1.msra.mxu0 0.0
  %822 = vmatprep.subr.mxu0 0.0
  %823 = vmatpush1.msra.mxu0 0.0
  %824 = vmatprep.subr.mxu0 0.0
  %825 = vmatpush1.msra.mxu0 0.0
  %826 = vmatprep.subr.mxu0 0.0
  %827 = vmatpush1.msra.mxu0 0.0
  %828 = vmatprep.subr.mxu0 0.0
  %829 = vmatpush1.msra.mxu0 0.0
  %830 = vmatprep.subr.mxu0 0.0
  %831 = vmatpush1.msra.mxu0 0.0
  %832 = vmatprep.subr.mxu0 0.0
  %833 = vmatpush1.msra.mxu0 0.0
  %834 = vmatprep.subr.mxu0 0.0
  %835 = vmatpush1.msra.mxu0 0.0
  %836 = vmatprep.subr.mxu0 0.0
  %837 = vmatpush1.msra.mxu0 0.0
  %838 = vmatprep.subr.mxu0 0.0
  %839 = vmatpush1.msra.mxu0 0.0
  %840 = vmatprep.subr.mxu0 0.0
  %841 = vmatpush1.msra.mxu0 0.0
  %842 = vmatprep.subr.mxu0 0.0
  %843 = vmatpush1.msra.mxu0 0.0
  %844 = vmatprep.subr.mxu0 0.0
  %845 = vmatpush1.msra.mxu0 0.0
  %846 = vmatprep.subr.mxu0 0.0
  %847 = vmatpush1.msra.mxu0 0.0
  %848 = vmatprep.subr.mxu0 0.0
  %849 = vmatpush1.msra.mxu0 0.0
  %850 = vmatprep.subr.mxu0 0.0
  %851 = vmatpush1.msra.mxu0 0.0
  %852 = vmatprep.subr.mxu0 0.0
  %853 = vmatpush1.msra.mxu0 0.0
  %854 = vmatprep.subr.mxu0 0.0
  %855 = vmatpush1.msra.mxu0 0.0
  %856 = vmatprep.subr.mxu0 0.0
  %857 = vmatpush1.msra.mxu0 0.0
  %858 = vmatprep.subr.mxu0 0.0
  %859 = vmatpush1.msra.mxu0 0.0
  %860 = vmatprep.mubr.f32.mxu0 0.0
  %861 = vmatmul.mubr.f32.gmra.mrb[0].mxu0 %v624
  %v862 = vpop.f32.mrb[0].mxu0
  %v863 = vadd.f32 %v160, %v862
  %v864 = vpop.f32.mrb[0].mxu0
  %865 = vdwg.mxu0
  %v866 = vxor.u32 %v863, 2147483648
  %v867 = vmul.f32 %v866, 1.442695
  %v868 = vpow.pop %v867
  %v869 = vadd.f32 %v868, 1.0
  %v870 = vrcp.pop %v869
  %v871 = vmul.f32 1.0, %v870
  %v872 = vmul.f32 %v871, 2.0
  %v873 = vsub.f32 %v872, 1.0
  %v874 = vmul.f32 %v871, %v614
  %876 = vrot.lane.b32.xlu0 %v873, 64
  %v877 = vpop.permute.xlu0 %876
  %v879 = vmul.f32 %v871, %v877
  %881 = vrot.lane.b32.xlu0 %v879, 32
  %v882 = vpop.permute.xlu0 %881
  %v884 = vadd.f32 %v874, %v882
  %v885 = vtanh.pop %v884
  %887 = vrot.lane.b32.xlu0 %v885, 64
  %v888 = vpop.permute.xlu0 %887
  %v890 = vmul.f32 %v871, %v888
  %892 = vrot.lane.b32.xlu0 %v890, 32
  %v893 = vpop.permute.xlu0 %892
  %v894 = vsel %vm182, %v893, 0
  %896 = vmatprep.subr.mxu0 0.0
  %897 = vmatpush1.msra.mxu0 %v49
  %898 = vmatprep.subr.mxu0 0.0
  %899 = vmatpush1.msra.mxu0 %v50
  %900 = vmatprep.subr.mxu0 0.0
  %901 = vmatpush1.msra.mxu0 %v51
  %902 = vmatprep.subr.mxu0 0.0
  %903 = vmatpush1.msra.mxu0 %v52
  %904 = vmatprep.subr.mxu0 0.0
  %905 = vmatpush1.msra.mxu0 0.0
  %906 = vmatprep.subr.mxu0 0.0
  %907 = vmatpush1.msra.mxu0 0.0
  %908 = vmatprep.subr.mxu0 0.0
  %909 = vmatpush1.msra.mxu0 0.0
  %910 = vmatprep.subr.mxu0 0.0
  %911 = vmatpush1.msra.mxu0 0.0
  %912 = vmatprep.subr.mxu0 0.0
  %913 = vmatpush1.msra.mxu0 0.0
  %914 = vmatprep.subr.mxu0 0.0
  %915 = vmatpush1.msra.mxu0 0.0
  %916 = vmatprep.subr.mxu0 0.0
  %917 = vmatpush1.msra.mxu0 0.0
  %918 = vmatprep.subr.mxu0 0.0
  %919 = vmatpush1.msra.mxu0 0.0
  %920 = vmatprep.subr.mxu0 0.0
  %921 = vmatpush1.msra.mxu0 0.0
  %922 = vmatprep.subr.mxu0 0.0
  %923 = vmatpush1.msra.mxu0 0.0
  %924 = vmatprep.subr.mxu0 0.0
  %925 = vmatpush1.msra.mxu0 0.0
  %926 = vmatprep.subr.mxu0 0.0
  %927 = vmatpush1.msra.mxu0 0.0
  %928 = vmatprep.subr.mxu0 0.0
  %929 = vmatpush1.msra.mxu0 0.0
  %930 = vmatprep.subr.mxu0 0.0
  %931 = vmatpush1.msra.mxu0 0.0
  %932 = vmatprep.subr.mxu0 0.0
  %933 = vmatpush1.msra.mxu0 0.0
  %934 = vmatprep.subr.mxu0 0.0
  %935 = vmatpush1.msra.mxu0 0.0
  %936 = vmatprep.subr.mxu0 0.0
  %937 = vmatpush1.msra.mxu0 0.0
  %938 = vmatprep.subr.mxu0 0.0
  %939 = vmatpush1.msra.mxu0 0.0
  %940 = vmatprep.subr.mxu0 0.0
  %941 = vmatpush1.msra.mxu0 0.0
  %942 = vmatprep.subr.mxu0 0.0
  %943 = vmatpush1.msra.mxu0 0.0
  %944 = vmatprep.subr.mxu0 0.0
  %945 = vmatpush1.msra.mxu0 0.0
  %946 = vmatprep.subr.mxu0 0.0
  %947 = vmatpush1.msra.mxu0 0.0
  %948 = vmatprep.subr.mxu0 0.0
  %949 = vmatpush1.msra.mxu0 0.0
  %950 = vmatprep.subr.mxu0 0.0
  %951 = vmatpush1.msra.mxu0 0.0
  %952 = vmatprep.subr.mxu0 0.0
  %953 = vmatpush1.msra.mxu0 0.0
  %954 = vmatprep.subr.mxu0 0.0
  %955 = vmatpush1.msra.mxu0 0.0
  %956 = vmatprep.subr.mxu0 0.0
  %957 = vmatpush1.msra.mxu0 0.0
  %958 = vmatprep.subr.mxu0 0.0
  %959 = vmatpush1.msra.mxu0 0.0
  %960 = vmatprep.mubr.f32.mxu0 0.0
  %961 = vmatmul.mubr.f32.gmra.mrb[0].mxu0 %v894
  %v962 = vpop.f32.mrb[0].mxu0
  %v963 = vadd.f32 %v793, %v962
  %v964 = vpop.f32.mrb[0].mxu0
  %965 = vdwg.mxu0
  %v966 = vxor.u32 %v963, 2147483648
  %v967 = vmul.f32 %v966, 1.442695
  %v968 = vpow.pop %v967
  %v969 = vadd.f32 %v968, 1.0
  %v970 = vrcp.pop %v969
  %v971 = vmul.f32 1.0, %v970
  %v972 = vmul.f32 %v971, 2.0
  %v973 = vsub.f32 %v972, 1.0
  %v974 = vmul.f32 %v971, %v714
  %976 = vrot.lane.b32.xlu0 %v973, 64
  %v977 = vpop.permute.xlu0 %976
  %v979 = vmul.f32 %v971, %v977
  %981 = vrot.lane.b32.xlu0 %v979, 32
  %v982 = vpop.permute.xlu0 %981
  %v984 = vadd.f32 %v974, %v982
  %v985 = vtanh.pop %v984
  %987 = vrot.lane.b32.xlu0 %v985, 64
  %v988 = vpop.permute.xlu0 %987
  %v990 = vmul.f32 %v971, %v988
  %992 = vrot.lane.b32.xlu0 %v990, 32
  %v993 = vpop.permute.xlu0 %992
  %v994 = vsel %vm182, %v993, 0
  %996 = vmatprep.subr.mxu0 0.0
  %997 = vmatpush1.msra.mxu0 %v53
  %998 = vmatprep.subr.mxu0 0.0
  %999 = vmatpush1.msra.mxu0 %v54
  %1000 = vmatprep.subr.mxu0 0.0
  %1001 = vmatpush1.msra.mxu0 %v55
  %1002 = vmatprep.subr.mxu0 0.0
  %1003 = vmatpush1.msra.mxu0 %v56
  %1004 = vmatprep.subr.mxu0 0.0
  %1005 = vmatpush1.msra.mxu0 0.0
  %1006 = vmatprep.subr.mxu0 0.0
  %1007 = vmatpush1.msra.mxu0 0.0
  %1008 = vmatprep.subr.mxu0 0.0
  %1009 = vmatpush1.msra.mxu0 0.0
  %1010 = vmatprep.subr.mxu0 0.0
  %1011 = vmatpush1.msra.mxu0 0.0
  %1012 = vmatprep.subr.mxu0 0.0
  %1013 = vmatpush1.msra.mxu0 0.0
  %1014 = vmatprep.subr.mxu0 0.0
  %1015 = vmatpush1.msra.mxu0 0.0
  %1016 = vmatprep.subr.mxu0 0.0
  %1017 = vmatpush1.msra.mxu0 0.0
  %1018 = vmatprep.subr.mxu0 0.0
  %1019 = vmatpush1.msra.mxu0 0.0
  %1020 = vmatprep.subr.mxu0 0.0
  %1021 = vmatpush1.msra.mxu0 0.0
  %1022 = vmatprep.subr.mxu0 0.0
  %1023 = vmatpush1.msra.mxu0 0.0
  %1024 = vmatprep.subr.mxu0 0.0
  %1025 = vmatpush1.msra.mxu0 0.0
  %1026 = vmatprep.subr.mxu0 0.0
  %1027 = vmatpush1.msra.mxu0 0.0
  %1028 = vmatprep.subr.mxu0 0.0
  %1029 = vmatpush1.msra.mxu0 0.0
  %1030 = vmatprep.subr.mxu0 0.0
  %1031 = vmatpush1.msra.mxu0 0.0
  %1032 = vmatprep.subr.mxu0 0.0
  %1033 = vmatpush1.msra.mxu0 0.0
  %1034 = vmatprep.subr.mxu0 0.0
  %1035 = vmatpush1.msra.mxu0 0.0
  %1036 = vmatprep.subr.mxu0 0.0
  %1037 = vmatpush1.msra.mxu0 0.0
  %1038 = vmatprep.subr.mxu0 0.0
  %1039 = vmatpush1.msra.mxu0 0.0
  %1040 = vmatprep.subr.mxu0 0.0
  %1041 = vmatpush1.msra.mxu0 0.0
  %1042 = vmatprep.subr.mxu0 0.0
  %1043 = vmatpush1.msra.mxu0 0.0
  %1044 = vmatprep.subr.mxu0 0.0
  %1045 = vmatpush1.msra.mxu0 0.0
  %1046 = vmatprep.subr.mxu0 0.0
  %1047 = vmatpush1.msra.mxu0 0.0
  %1048 = vmatprep.subr.mxu0 0.0
  %1049 = vmatpush1.msra.mxu0 0.0
  %1050 = vmatprep.subr.mxu0 0.0
  %1051 = vmatpush1.msra.mxu0 0.0
  %1052 = vmatprep.subr.mxu0 0.0
  %1053 = vmatpush1.msra.mxu0 0.0
  %1054 = vmatprep.subr.mxu0 0.0
  %1055 = vmatpush1.msra.mxu0 0.0
  %1056 = vmatprep.subr.mxu0 0.0
  %1057 = vmatpush1.msra.mxu0 0.0
  %1058 = vmatprep.subr.mxu0 0.0
  %1059 = vmatpush1.msra.mxu0 0.0
  %1060 = vmatprep.mubr.f32.mxu0 0.0
  %1061 = vmatmul.mubr.f32.gmra.mrb[0].mxu0 %v994
  %v1062 = vpop.f32.mrb[0].mxu0
  %v1063 = vadd.f32 %v62, %v1062
  %v1064 = vpop.f32.mrb[0].mxu0
  %1065 = vdwg.mxu0
  %1066 = vmatprep.subr.mxu0 0.0
  %1067 = vmatpush1.msra.mxu0 %v45
  %1068 = vmatprep.subr.mxu0 0.0
  %1069 = vmatpush1.msra.mxu0 %v46
  %1070 = vmatprep.subr.mxu0 0.0
  %1071 = vmatpush1.msra.mxu0 %v47
  %1072 = vmatprep.subr.mxu0 0.0
  %1073 = vmatpush1.msra.mxu0 %v48
  %1074 = vmatprep.subr.mxu0 0.0
  %1075 = vmatpush1.msra.mxu0 0.0
  %1076 = vmatprep.subr.mxu0 0.0
  %1077 = vmatpush1.msra.mxu0 0.0
  %1078 = vmatprep.subr.mxu0 0.0
  %1079 = vmatpush1.msra.mxu0 0.0
  %1080 = vmatprep.subr.mxu0 0.0
  %1081 = vmatpush1.msra.mxu0 0.0
  %1082 = vmatprep.subr.mxu0 0.0
  %1083 = vmatpush1.msra.mxu0 0.0
  %1084 = vmatprep.subr.mxu0 0.0
  %1085 = vmatpush1.msra.mxu0 0.0
  %1086 = vmatprep.subr.mxu0 0.0
  %1087 = vmatpush1.msra.mxu0 0.0
  %1088 = vmatprep.subr.mxu0 0.0
  %1089 = vmatpush1.msra.mxu0 0.0
  %1090 = vmatprep.subr.mxu0 0.0
  %1091 = vmatpush1.msra.mxu0 0.0
  %1092 = vmatprep.subr.mxu0 0.0
  %1093 = vmatpush1.msra.mxu0 0.0
  %1094 = vmatprep.subr.mxu0 0.0
  %1095 = vmatpush1.msra.mxu0 0.0
  %1096 = vmatprep.subr.mxu0 0.0
  %1097 = vmatpush1.msra.mxu0 0.0
  %1098 = vmatprep.subr.mxu0 0.0
  %1099 = vmatpush1.msra.mxu0 0.0
  %1100 = vmatprep.subr.mxu0 0.0
  %1101 = vmatpush1.msra.mxu0 0.0
  %1102 = vmatprep.subr.mxu0 0.0
  %1103 = vmatpush1.msra.mxu0 0.0
  %1104 = vmatprep.subr.mxu0 0.0
  %1105 = vmatpush1.msra.mxu0 0.0
  %1106 = vmatprep.subr.mxu0 0.0
  %1107 = vmatpush1.msra.mxu0 0.0
  %1108 = vmatprep.subr.mxu0 0.0
  %1109 = vmatpush1.msra.mxu0 0.0
  %1110 = vmatprep.subr.mxu0 0.0
  %1111 = vmatpush1.msra.mxu0 0.0
  %1112 = vmatprep.subr.mxu0 0.0
  %1113 = vmatpush1.msra.mxu0 0.0
  %1114 = vmatprep.subr.mxu0 0.0
  %1115 = vmatpush1.msra.mxu0 0.0
  %1116 = vmatprep.subr.mxu0 0.0
  %1117 = vmatpush1.msra.mxu0 0.0
  %1118 = vmatprep.subr.mxu0 0.0
  %1119 = vmatpush1.msra.mxu0 0.0
  %1120 = vmatprep.subr.mxu0 0.0
  %1121 = vmatpush1.msra.mxu0 0.0
  %1122 = vmatprep.subr.mxu0 0.0
  %1123 = vmatpush1.msra.mxu0 0.0
  %1124 = vmatprep.subr.mxu0 0.0
  %1125 = vmatpush1.msra.mxu0 0.0
  %1126 = vmatprep.subr.mxu0 0.0
  %1127 = vmatpush1.msra.mxu0 0.0
  %1128 = vmatprep.subr.mxu0 0.0
  %1129 = vmatpush1.msra.mxu0 0.0
  %1130 = vmatprep.mubr.f32.mxu0 0.0
  %1131 = vmatmul.mubr.f32.gmra.mrb[0].mxu0 %v894
  %v1132 = vpop.f32.mrb[0].mxu0
  %v1133 = vadd.f32 %v163, %v1132
  %v1134 = vpop.f32.mrb[0].mxu0
  %1135 = vdwg.mxu0
  %v1136 = vxor.u32 %v1133, 2147483648
  %v1137 = vmul.f32 %v1136, 1.442695
  %v1138 = vpow.pop %v1137
  %v1139 = vadd.f32 %v1138, 1.0
  %v1140 = vrcp.pop %v1139
  %v1141 = vmul.f32 1.0, %v1140
  %v1142 = vmul.f32 %v1141, 2.0
  %v1143 = vsub.f32 %v1142, 1.0
  %v1144 = vmul.f32 %v1141, %v884
  %1146 = vrot.lane.b32.xlu0 %v1143, 64
  %v1147 = vpop.permute.xlu0 %1146
  %v1149 = vmul.f32 %v1141, %v1147
  %1151 = vrot.lane.b32.xlu0 %v1149, 32
  %v1152 = vpop.permute.xlu0 %1151
  %v1154 = vadd.f32 %v1144, %v1152
  %v1155 = vtanh.pop %v1154
  %1157 = vrot.lane.b32.xlu0 %v1155, 64
  %v1158 = vpop.permute.xlu0 %1157
  %v1160 = vmul.f32 %v1141, %v1158
  %1162 = vrot.lane.b32.xlu0 %v1160, 32
  %v1163 = vpop.permute.xlu0 %1162
  %v1164 = vsel %vm182, %v1163, 0
  %1166 = vmatprep.subr.mxu0 0.0
  %1167 = vmatpush1.msra.mxu0 %v49
  %1168 = vmatprep.subr.mxu0 0.0
  %1169 = vmatpush1.msra.mxu0 %v50
  %1170 = vmatprep.subr.mxu0 0.0
  %1171 = vmatpush1.msra.mxu0 %v51
  %1172 = vmatprep.subr.mxu0 0.0
  %1173 = vmatpush1.msra.mxu0 %v52
  %1174 = vmatprep.subr.mxu0 0.0
  %1175 = vmatpush1.msra.mxu0 0.0
  %1176 = vmatprep.subr.mxu0 0.0
  %1177 = vmatpush1.msra.mxu0 0.0
  %1178 = vmatprep.subr.mxu0 0.0
  %1179 = vmatpush1.msra.mxu0 0.0
  %1180 = vmatprep.subr.mxu0 0.0
  %1181 = vmatpush1.msra.mxu0 0.0
  %1182 = vmatprep.subr.mxu0 0.0
  %1183 = vmatpush1.msra.mxu0 0.0
  %1184 = vmatprep.subr.mxu0 0.0
  %1185 = vmatpush1.msra.mxu0 0.0
  %1186 = vmatprep.subr.mxu0 0.0
  %1187 = vmatpush1.msra.mxu0 0.0
  %1188 = vmatprep.subr.mxu0 0.0
  %1189 = vmatpush1.msra.mxu0 0.0
  %1190 = vmatprep.subr.mxu0 0.0
  %1191 = vmatpush1.msra.mxu0 0.0
  %1192 = vmatprep.subr.mxu0 0.0
  %1193 = vmatpush1.msra.mxu0 0.0
  %1194 = vmatprep.subr.mxu0 0.0
  %1195 = vmatpush1.msra.mxu0 0.0
  %1196 = vmatprep.subr.mxu0 0.0
  %1197 = vmatpush1.msra.mxu0 0.0
  %1198 = vmatprep.subr.mxu0 0.0
  %1199 = vmatpush1.msra.mxu0 0.0
  %1200 = vmatprep.subr.mxu0 0.0
  %1201 = vmatpush1.msra.mxu0 0.0
  %1202 = vmatprep.subr.mxu0 0.0
  %1203 = vmatpush1.msra.mxu0 0.0
  %1204 = vmatprep.subr.mxu0 0.0
  %1205 = vmatpush1.msra.mxu0 0.0
  %1206 = vmatprep.subr.mxu0 0.0
  %1207 = vmatpush1.msra.mxu0 0.0
  %1208 = vmatprep.subr.mxu0 0.0
  %1209 = vmatpush1.msra.mxu0 0.0
  %1210 = vmatprep.subr.mxu0 0.0
  %1211 = vmatpush1.msra.mxu0 0.0
  %1212 = vmatprep.subr.mxu0 0.0
  %1213 = vmatpush1.msra.mxu0 0.0
  %1214 = vmatprep.subr.mxu0 0.0
  %1215 = vmatpush1.msra.mxu0 0.0
  %1216 = vmatprep.subr.mxu0 0.0
  %1217 = vmatpush1.msra.mxu0 0.0
  %1218 = vmatprep.subr.mxu0 0.0
  %1219 = vmatpush1.msra.mxu0 0.0
  %1220 = vmatprep.subr.mxu0 0.0
  %1221 = vmatpush1.msra.mxu0 0.0
  %1222 = vmatprep.subr.mxu0 0.0
  %1223 = vmatpush1.msra.mxu0 0.0
  %1224 = vmatprep.subr.mxu0 0.0
  %1225 = vmatpush1.msra.mxu0 0.0
  %1226 = vmatprep.subr.mxu0 0.0
  %1227 = vmatpush1.msra.mxu0 0.0
  %1228 = vmatprep.subr.mxu0 0.0
  %1229 = vmatpush1.msra.mxu0 0.0
  %1230 = vmatprep.mubr.f32.mxu0 0.0
  %1231 = vmatmul.mubr.f32.gmra.mrb[0].mxu0 %v1164
  %v1232 = vpop.f32.mrb[0].mxu0
  %v1233 = vadd.f32 %v1063, %v1232
  %v1234 = vpop.f32.mrb[0].mxu0
  %1235 = vdwg.mxu0
  %v1236 = vxor.u32 %v1233, 2147483648
  %v1237 = vmul.f32 %v1236, 1.442695
  %v1238 = vpow.pop %v1237
  %v1239 = vadd.f32 %v1238, 1.0
  %v1240 = vrcp.pop %v1239
  %v1241 = vmul.f32 1.0, %v1240
  %v1242 = vmul.f32 %v1241, 2.0
  %v1243 = vsub.f32 %v1242, 1.0
  %v1244 = vmul.f32 %v1241, %v984
  %1246 = vrot.lane.b32.xlu0 %v1243, 64
  %v1247 = vpop.permute.xlu0 %1246
  %v1249 = vmul.f32 %v1241, %v1247
  %1251 = vrot.lane.b32.xlu0 %v1249, 32
  %v1252 = vpop.permute.xlu0 %1251
  %v1254 = vadd.f32 %v1244, %v1252
  %v1255 = vtanh.pop %v1254
  %1257 = vrot.lane.b32.xlu0 %v1255, 64
  %v1258 = vpop.permute.xlu0 %1257
  %v1260 = vmul.f32 %v1241, %v1258
  %1262 = vrot.lane.b32.xlu0 %v1260, 32
  %v1263 = vpop.permute.xlu0 %1262
  %v1264 = vsel %vm182, %v1263, 0
  %1266 = vmatprep.subr.mxu0 0.0
  %1267 = vmatpush1.msra.mxu0 %v53
  %1268 = vmatprep.subr.mxu0 0.0
  %1269 = vmatpush1.msra.mxu0 %v54
  %1270 = vmatprep.subr.mxu0 0.0
  %1271 = vmatpush1.msra.mxu0 %v55
  %1272 = vmatprep.subr.mxu0 0.0
  %1273 = vmatpush1.msra.mxu0 %v56
  %1274 = vmatprep.subr.mxu0 0.0
  %1275 = vmatpush1.msra.mxu0 0.0
  %1276 = vmatprep.subr.mxu0 0.0
  %1277 = vmatpush1.msra.mxu0 0.0
  %1278 = vmatprep.subr.mxu0 0.0
  %1279 = vmatpush1.msra.mxu0 0.0
  %1280 = vmatprep.subr.mxu0 0.0
  %1281 = vmatpush1.msra.mxu0 0.0
  %1282 = vmatprep.subr.mxu0 0.0
  %1283 = vmatpush1.msra.mxu0 0.0
  %1284 = vmatprep.subr.mxu0 0.0
  %1285 = vmatpush1.msra.mxu0 0.0
  %1286 = vmatprep.subr.mxu0 0.0
  %1287 = vmatpush1.msra.mxu0 0.0
  %1288 = vmatprep.subr.mxu0 0.0
  %1289 = vmatpush1.msra.mxu0 0.0
  %1290 = vmatprep.subr.mxu0 0.0
  %1291 = vmatpush1.msra.mxu0 0.0
  %1292 = vmatprep.subr.mxu0 0.0
  %1293 = vmatpush1.msra.mxu0 0.0
  %1294 = vmatprep.subr.mxu0 0.0
  %1295 = vmatpush1.msra.mxu0 0.0
  %1296 = vmatprep.subr.mxu0 0.0
  %1297 = vmatpush1.msra.mxu0 0.0
  %1298 = vmatprep.subr.mxu0 0.0
  %1299 = vmatpush1.msra.mxu0 0.0
  %1300 = vmatprep.subr.mxu0 0.0
  %1301 = vmatpush1.msra.mxu0 0.0
  %1302 = vmatprep.subr.mxu0 0.0
  %1303 = vmatpush1.msra.mxu0 0.0
  %1304 = vmatprep.subr.mxu0 0.0
  %1305 = vmatpush1.msra.mxu0 0.0
  %1306 = vmatprep.subr.mxu0 0.0
  %1307 = vmatpush1.msra.mxu0 0.0
  %1308 = vmatprep.subr.mxu0 0.0
  %1309 = vmatpush1.msra.mxu0 0.0
  %1310 = vmatprep.subr.mxu0 0.0
  %1311 = vmatpush1.msra.mxu0 0.0
  %1312 = vmatprep.subr.mxu0 0.0
  %1313 = vmatpush1.msra.mxu0 0.0
  %1314 = vmatprep.subr.mxu0 0.0
  %1315 = vmatpush1.msra.mxu0 0.0
  %1316 = vmatprep.subr.mxu0 0.0
  %1317 = vmatpush1.msra.mxu0 0.0
  %1318 = vmatprep.subr.mxu0 0.0
  %1319 = vmatpush1.msra.mxu0 0.0
  %1320 = vmatprep.subr.mxu0 0.0
  %1321 = vmatpush1.msra.mxu0 0.0
  %1322 = vmatprep.subr.mxu0 0.0
  %1323 = vmatpush1.msra.mxu0 0.0
  %1324 = vmatprep.subr.mxu0 0.0
  %1325 = vmatpush1.msra.mxu0 0.0
  %1326 = vmatprep.subr.mxu0 0.0
  %1327 = vmatpush1.msra.mxu0 0.0
  %1328 = vmatprep.subr.mxu0 0.0
  %1329 = vmatpush1.msra.mxu0 0.0
  %1330 = vmatprep.mubr.f32.mxu0 0.0
  %1331 = vmatmul.mubr.f32.gmra.mrb[0].mxu0 %v1264
  %v1332 = vpop.f32.mrb[0].mxu0
  %v1333 = vadd.f32 %v62, %v1332
  %v1334 = vpop.f32.mrb[0].mxu0
  %1335 = vdwg.mxu0
  %1336 = vmatprep.subr.mxu0 0.0
  %1337 = vmatpush1.msra.mxu0 %v45
  %1338 = vmatprep.subr.mxu0 0.0
  %1339 = vmatpush1.msra.mxu0 %v46
  %1340 = vmatprep.subr.mxu0 0.0
  %1341 = vmatpush1.msra.mxu0 %v47
  %1342 = vmatprep.subr.mxu0 0.0
  %1343 = vmatpush1.msra.mxu0 %v48
  %1344 = vmatprep.subr.mxu0 0.0
  %1345 = vmatpush1.msra.mxu0 0.0
  %1346 = vmatprep.subr.mxu0 0.0
  %1347 = vmatpush1.msra.mxu0 0.0
  %1348 = vmatprep.subr.mxu0 0.0
  %1349 = vmatpush1.msra.mxu0 0.0
  %1350 = vmatprep.subr.mxu0 0.0
  %1351 = vmatpush1.msra.mxu0 0.0
  %1352 = vmatprep.subr.mxu0 0.0
  %1353 = vmatpush1.msra.mxu0 0.0
  %1354 = vmatprep.subr.mxu0 0.0
  %1355 = vmatpush1.msra.mxu0 0.0
  %1356 = vmatprep.subr.mxu0 0.0
  %1357 = vmatpush1.msra.mxu0 0.0
  %1358 = vmatprep.subr.mxu0 0.0
  %1359 = vmatpush1.msra.mxu0 0.0
  %1360 = vmatprep.subr.mxu0 0.0
  %1361 = vmatpush1.msra.mxu0 0.0
  %1362 = vmatprep.subr.mxu0 0.0
  %1363 = vmatpush1.msra.mxu0 0.0
  %1364 = vmatprep.subr.mxu0 0.0
  %1365 = vmatpush1.msra.mxu0 0.0
  %1366 = vmatprep.subr.mxu0 0.0
  %1367 = vmatpush1.msra.mxu0 0.0
  %1368 = vmatprep.subr.mxu0 0.0
  %1369 = vmatpush1.msra.mxu0 0.0
  %1370 = vmatprep.subr.mxu0 0.0
  %1371 = vmatpush1.msra.mxu0 0.0
  %1372 = vmatprep.subr.mxu0 0.0
  %1373 = vmatpush1.msra.mxu0 0.0
  %1374 = vmatprep.subr.mxu0 0.0
  %1375 = vmatpush1.msra.mxu0 0.0
  %1376 = vmatprep.subr.mxu0 0.0
  %1377 = vmatpush1.msra.mxu0 0.0
  %1378 = vmatprep.subr.mxu0 0.0
  %1379 = vmatpush1.msra.mxu0 0.0
  %1380 = vmatprep.subr.mxu0 0.0
  %1381 = vmatpush1.msra.mxu0 0.0
  %1382 = vmatprep.subr.mxu0 0.0
  %1383 = vmatpush1.msra.mxu0 0.0
  %1384 = vmatprep.subr.mxu0 0.0
  %1385 = vmatpush1.msra.mxu0 0.0
  %1386 = vmatprep.subr.mxu0 0.0
  %1387 = vmatpush1.msra.mxu0 0.0
  %1388 = vmatprep.subr.mxu0 0.0
  %1389 = vmatpush1.msra.mxu0 0.0
  %1390 = vmatprep.subr.mxu0 0.0
  %1391 = vmatpush1.msra.mxu0 0.0
  %1392 = vmatprep.subr.mxu0 0.0
  %1393 = vmatpush1.msra.mxu0 0.0
  %1394 = vmatprep.subr.mxu0 0.0
  %1395 = vmatpush1.msra.mxu0 0.0
  %1396 = vmatprep.subr.mxu0 0.0
  %1397 = vmatpush1.msra.mxu0 0.0
  %1398 = vmatprep.subr.mxu0 0.0
  %1399 = vmatpush1.msra.mxu0 0.0
  %1400 = vmatprep.mubr.f32.mxu0 0.0
  %1401 = vmatmul.mubr.f32.gmra.mrb[0].mxu0 %v1164
  %v1402 = vpop.f32.mrb[0].mxu0
  %v1403 = vadd.f32 %v168, %v1402
  %v1404 = vpop.f32.mrb[0].mxu0
  %1405 = vdwg.mxu0
  %v1406 = vxor.u32 %v1403, 2147483648
  %v1407 = vmul.f32 %v1406, 1.442695
  %v1408 = vpow.pop %v1407
  %v1409 = vadd.f32 %v1408, 1.0
  %v1410 = vrcp.pop %v1409
  %v1411 = vmul.f32 1.0, %v1410
  %v1412 = vmul.f32 %v1411, 2.0
  %v1413 = vsub.f32 %v1412, 1.0
  %v1414 = vmul.f32 %v1411, %v1154
  %1416 = vrot.lane.b32.xlu0 %v1413, 64
  %v1417 = vpop.permute.xlu0 %1416
  %v1419 = vmul.f32 %v1411, %v1417
  %1421 = vrot.lane.b32.xlu0 %v1419, 32
  %v1422 = vpop.permute.xlu0 %1421
  %v1424 = vadd.f32 %v1414, %v1422
  %v1425 = vtanh.pop %v1424
  %1427 = vrot.lane.b32.xlu0 %v1425, 64
  %v1428 = vpop.permute.xlu0 %1427
  %v1430 = vmul.f32 %v1411, %v1428
  %1432 = vrot.lane.b32.xlu0 %v1430, 32
  %v1433 = vpop.permute.xlu0 %1432
  %v1434 = vsel %vm182, %v1433, 0
  %1436 = vmatprep.subr.mxu0 0.0
  %1437 = vmatpush1.msra.mxu0 %v49
  %1438 = vmatprep.subr.mxu0 0.0
  %1439 = vmatpush1.msra.mxu0 %v50
  %1440 = vmatprep.subr.mxu0 0.0
  %1441 = vmatpush1.msra.mxu0 %v51
  %1442 = vmatprep.subr.mxu0 0.0
  %1443 = vmatpush1.msra.mxu0 %v52
  %1444 = vmatprep.subr.mxu0 0.0
  %1445 = vmatpush1.msra.mxu0 0.0
  %1446 = vmatprep.subr.mxu0 0.0
  %1447 = vmatpush1.msra.mxu0 0.0
  %1448 = vmatprep.subr.mxu0 0.0
  %1449 = vmatpush1.msra.mxu0 0.0
  %1450 = vmatprep.subr.mxu0 0.0
  %1451 = vmatpush1.msra.mxu0 0.0
  %1452 = vmatprep.subr.mxu0 0.0
  %1453 = vmatpush1.msra.mxu0 0.0
  %1454 = vmatprep.subr.mxu0 0.0
  %1455 = vmatpush1.msra.mxu0 0.0
  %1456 = vmatprep.subr.mxu0 0.0
  %1457 = vmatpush1.msra.mxu0 0.0
  %1458 = vmatprep.subr.mxu0 0.0
  %1459 = vmatpush1.msra.mxu0 0.0
  %1460 = vmatprep.subr.mxu0 0.0
  %1461 = vmatpush1.msra.mxu0 0.0
  %1462 = vmatprep.subr.mxu0 0.0
  %1463 = vmatpush1.msra.mxu0 0.0
  %1464 = vmatprep.subr.mxu0 0.0
  %1465 = vmatpush1.msra.mxu0 0.0
  %1466 = vmatprep.subr.mxu0 0.0
  %1467 = vmatpush1.msra.mxu0 0.0
  %1468 = vmatprep.subr.mxu0 0.0
  %1469 = vmatpush1.msra.mxu0 0.0
  %1470 = vmatprep.subr.mxu0 0.0
  %1471 = vmatpush1.msra.mxu0 0.0
  %1472 = vmatprep.subr.mxu0 0.0
  %1473 = vmatpush1.msra.mxu0 0.0
  %1474 = vmatprep.subr.mxu0 0.0
  %1475 = vmatpush1.msra.mxu0 0.0
  %1476 = vmatprep.subr.mxu0 0.0
  %1477 = vmatpush1.msra.mxu0 0.0
  %1478 = vmatprep.subr.mxu0 0.0
  %1479 = vmatpush1.msra.mxu0 0.0
  %1480 = vmatprep.subr.mxu0 0.0
  %1481 = vmatpush1.msra.mxu0 0.0
  %1482 = vmatprep.subr.mxu0 0.0
  %1483 = vmatpush1.msra.mxu0 0.0
  %1484 = vmatprep.subr.mxu0 0.0
  %1485 = vmatpush1.msra.mxu0 0.0
  %1486 = vmatprep.subr.mxu0 0.0
  %1487 = vmatpush1.msra.mxu0 0.0
  %1488 = vmatprep.subr.mxu0 0.0
  %1489 = vmatpush1.msra.mxu0 0.0
  %1490 = vmatprep.subr.mxu0 0.0
  %1491 = vmatpush1.msra.mxu0 0.0
  %1492 = vmatprep.subr.mxu0 0.0
  %1493 = vmatpush1.msra.mxu0 0.0
  %1494 = vmatprep.subr.mxu0 0.0
  %1495 = vmatpush1.msra.mxu0 0.0
  %1496 = vmatprep.subr.mxu0 0.0
  %1497 = vmatpush1.msra.mxu0 0.0
  %1498 = vmatprep.subr.mxu0 0.0
  %1499 = vmatpush1.msra.mxu0 0.0
  %1500 = vmatprep.mubr.f32.mxu0 0.0
  %1501 = vmatmul.mubr.f32.gmra.mrb[0].mxu0 %v1434
  %v1502 = vpop.f32.mrb[0].mxu0
  %v1503 = vadd.f32 %v1333, %v1502
  %v1504 = vpop.f32.mrb[0].mxu0
  %1505 = vdwg.mxu0
  %v1506 = vxor.u32 %v1503, 2147483648
  %v1507 = vmul.f32 %v1506, 1.442695
  %v1508 = vpow.pop %v1507
  %v1509 = vadd.f32 %v1508, 1.0
  %v1510 = vrcp.pop %v1509
  %v1511 = vmul.f32 1.0, %v1510
  %v1512 = vmul.f32 %v1511, 2.0
  %v1513 = vsub.f32 %v1512, 1.0
  %v1514 = vmul.f32 %v1511, %v1254
  %1516 = vrot.lane.b32.xlu0 %v1513, 64
  %v1517 = vpop.permute.xlu0 %1516
  %v1519 = vmul.f32 %v1511, %v1517
  %1521 = vrot.lane.b32.xlu0 %v1519, 32
  %v1522 = vpop.permute.xlu0 %1521
  %v1524 = vadd.f32 %v1514, %v1522
  %v1525 = vtanh.pop %v1524
  %1527 = vrot.lane.b32.xlu0 %v1525, 64
  %v1528 = vpop.permute.xlu0 %1527
  %v1530 = vmul.f32 %v1511, %v1528
  %1532 = vrot.lane.b32.xlu0 %v1530, 32
  %v1533 = vpop.permute.xlu0 %1532
  %v1534 = vsel %vm182, %v1533, 0
  %1536 = vmatprep.subr.mxu0 0.0
  %1537 = vmatpush1.msra.mxu0 %v53
  %1538 = vmatprep.subr.mxu0 0.0
  %1539 = vmatpush1.msra.mxu0 %v54
  %1540 = vmatprep.subr.mxu0 0.0
  %1541 = vmatpush1.msra.mxu0 %v55
  %1542 = vmatprep.subr.mxu0 0.0
  %1543 = vmatpush1.msra.mxu0 %v56
  %1544 = vmatprep.subr.mxu0 0.0
  %1545 = vmatpush1.msra.mxu0 0.0
  %1546 = vmatprep.subr.mxu0 0.0
  %1547 = vmatpush1.msra.mxu0 0.0
  %1548 = vmatprep.subr.mxu0 0.0
  %1549 = vmatpush1.msra.mxu0 0.0
  %1550 = vmatprep.subr.mxu0 0.0
  %1551 = vmatpush1.msra.mxu0 0.0
  %1552 = vmatprep.subr.mxu0 0.0
  %1553 = vmatpush1.msra.mxu0 0.0
  %1554 = vmatprep.subr.mxu0 0.0
  %1555 = vmatpush1.msra.mxu0 0.0
  %1556 = vmatprep.subr.mxu0 0.0
  %1557 = vmatpush1.msra.mxu0 0.0
  %1558 = vmatprep.subr.mxu0 0.0
  %1559 = vmatpush1.msra.mxu0 0.0
  %1560 = vmatprep.subr.mxu0 0.0
  %1561 = vmatpush1.msra.mxu0 0.0
  %1562 = vmatprep.subr.mxu0 0.0
  %1563 = vmatpush1.msra.mxu0 0.0
  %1564 = vmatprep.subr.mxu0 0.0
  %1565 = vmatpush1.msra.mxu0 0.0
  %1566 = vmatprep.subr.mxu0 0.0
  %1567 = vmatpush1.msra.mxu0 0.0
  %1568 = vmatprep.subr.mxu0 0.0
  %1569 = vmatpush1.msra.mxu0 0.0
  %1570 = vmatprep.subr.mxu0 0.0
  %1571 = vmatpush1.msra.mxu0 0.0
  %1572 = vmatprep.subr.mxu0 0.0
  %1573 = vmatpush1.msra.mxu0 0.0
  %1574 = vmatprep.subr.mxu0 0.0
  %1575 = vmatpush1.msra.mxu0 0.0
  %1576 = vmatprep.subr.mxu0 0.0
  %1577 = vmatpush1.msra.mxu0 0.0
  %1578 = vmatprep.subr.mxu0 0.0
  %1579 = vmatpush1.msra.mxu0 0.0
  %1580 = vmatprep.subr.mxu0 0.0
  %1581 = vmatpush1.msra.mxu0 0.0
  %1582 = vmatprep.subr.mxu0 0.0
  %1583 = vmatpush1.msra.mxu0 0.0
  %1584 = vmatprep.subr.mxu0 0.0
  %1585 = vmatpush1.msra.mxu0 0.0
  %1586 = vmatprep.subr.mxu0 0.0
  %1587 = vmatpush1.msra.mxu0 0.0
  %1588 = vmatprep.subr.mxu0 0.0
  %1589 = vmatpush1.msra.mxu0 0.0
  %1590 = vmatprep.subr.mxu0 0.0
  %1591 = vmatpush1.msra.mxu0 0.0
  %1592 = vmatprep.subr.mxu0 0.0
  %1593 = vmatpush1.msra.mxu0 0.0
  %1594 = vmatprep.subr.mxu0 0.0
  %1595 = vmatpush1.msra.mxu0 0.0
  %1596 = vmatprep.subr.mxu0 0.0
  %1597 = vmatpush1.msra.mxu0 0.0
  %1598 = vmatprep.subr.mxu0 0.0
  %1599 = vmatpush1.msra.mxu0 0.0
  %1600 = vmatprep.mubr.f32.mxu0 0.0
  %1601 = vmatmul.mubr.f32.gmra.mrb[0].mxu0 %v1534
  %v1602 = vpop.f32.mrb[0].mxu0
  %v1603 = vadd.f32 %v62, %v1602
  %v1604 = vpop.f32.mrb[0].mxu0
  %1605 = vdwg.mxu0
  %1606 = vmatprep.subr.mxu0 0.0
  %1607 = vmatpush1.msra.mxu0 %v45
  %1608 = vmatprep.subr.mxu0 0.0
  %1609 = vmatpush1.msra.mxu0 %v46
  %1610 = vmatprep.subr.mxu0 0.0
  %1611 = vmatpush1.msra.mxu0 %v47
  %1612 = vmatprep.subr.mxu0 0.0
  %1613 = vmatpush1.msra.mxu0 %v48
  %1614 = vmatprep.subr.mxu0 0.0
  %1615 = vmatpush1.msra.mxu0 0.0
  %1616 = vmatprep.subr.mxu0 0.0
  %1617 = vmatpush1.msra.mxu0 0.0
  %1618 = vmatprep.subr.mxu0 0.0
  %1619 = vmatpush1.msra.mxu0 0.0
  %1620 = vmatprep.subr.mxu0 0.0
  %1621 = vmatpush1.msra.mxu0 0.0
  %1622 = vmatprep.subr.mxu0 0.0
  %1623 = vmatpush1.msra.mxu0 0.0
  %1624 = vmatprep.subr.mxu0 0.0
  %1625 = vmatpush1.msra.mxu0 0.0
  %1626 = vmatprep.subr.mxu0 0.0
  %1627 = vmatpush1.msra.mxu0 0.0
  %1628 = vmatprep.subr.mxu0 0.0
  %1629 = vmatpush1.msra.mxu0 0.0
  %1630 = vmatprep.subr.mxu0 0.0
  %1631 = vmatpush1.msra.mxu0 0.0
  %1632 = vmatprep.subr.mxu0 0.0
  %1633 = vmatpush1.msra.mxu0 0.0
  %1634 = vmatprep.subr.mxu0 0.0
  %1635 = vmatpush1.msra.mxu0 0.0
  %1636 = vmatprep.subr.mxu0 0.0
  %1637 = vmatpush1.msra.mxu0 0.0
  %1638 = vmatprep.subr.mxu0 0.0
  %1639 = vmatpush1.msra.mxu0 0.0
  %1640 = vmatprep.subr.mxu0 0.0
  %1641 = vmatpush1.msra.mxu0 0.0
  %1642 = vmatprep.subr.mxu0 0.0
  %1643 = vmatpush1.msra.mxu0 0.0
  %1644 = vmatprep.subr.mxu0 0.0
  %1645 = vmatpush1.msra.mxu0 0.0
  %1646 = vmatprep.subr.mxu0 0.0
  %1647 = vmatpush1.msra.mxu0 0.0
  %1648 = vmatprep.subr.mxu0 0.0
  %1649 = vmatpush1.msra.mxu0 0.0
  %1650 = vmatprep.subr.mxu0 0.0
  %1651 = vmatpush1.msra.mxu0 0.0
  %1652 = vmatprep.subr.mxu0 0.0
  %1653 = vmatpush1.msra.mxu0 0.0
  %1654 = vmatprep.subr.mxu0 0.0
  %1655 = vmatpush1.msra.mxu0 0.0
  %1656 = vmatprep.subr.mxu0 0.0
  %1657 = vmatpush1.msra.mxu0 0.0
  %1658 = vmatprep.subr.mxu0 0.0
  %1659 = vmatpush1.msra.mxu0 0.0
  %1660 = vmatprep.subr.mxu0 0.0
  %1661 = vmatpush1.msra.mxu0 0.0
  %1662 = vmatprep.subr.mxu0 0.0
  %1663 = vmatpush1.msra.mxu0 0.0
  %1664 = vmatprep.subr.mxu0 0.0
  %1665 = vmatpush1.msra.mxu0 0.0
  %1666 = vmatprep.subr.mxu0 0.0
  %1667 = vmatpush1.msra.mxu0 0.0
  %1668 = vmatprep.subr.mxu0 0.0
  %1669 = vmatpush1.msra.mxu0 0.0
  %1670 = vmatprep.mubr.f32.mxu0 0.0
  %1671 = vmatmul.mubr.f32.gmra.mrb[0].mxu0 %v1434
  %v1672 = vpop.f32.mrb[0].mxu0
  %v1673 = vadd.f32 %v171, %v1672
  %v1674 = vpop.f32.mrb[0].mxu0
  %1675 = vdwg.mxu0
  %v1676 = vxor.u32 %v1673, 2147483648
  %v1677 = vmul.f32 %v1676, 1.442695
  %v1678 = vpow.pop %v1677
  %v1679 = vadd.f32 %v1678, 1.0
  %v1680 = vrcp.pop %v1679
  %v1681 = vmul.f32 1.0, %v1680
  %v1682 = vmul.f32 %v1681, 2.0
  %v1683 = vsub.f32 %v1682, 1.0
  %v1684 = vmul.f32 %v1681, %v1424
  %1686 = vrot.lane.b32.xlu0 %v1683, 64
  %v1687 = vpop.permute.xlu0 %1686
  %v1689 = vmul.f32 %v1681, %v1687
  %1691 = vrot.lane.b32.xlu0 %v1689, 32
  %v1692 = vpop.permute.xlu0 %1691
  %v1694 = vadd.f32 %v1684, %v1692
  %v1695 = vtanh.pop %v1694
  %1697 = vrot.lane.b32.xlu0 %v1695, 64
  %v1698 = vpop.permute.xlu0 %1697
  %v1700 = vmul.f32 %v1681, %v1698
  %1702 = vrot.lane.b32.xlu0 %v1700, 32
  %v1703 = vpop.permute.xlu0 %1702
  %v1704 = vsel %vm182, %v1703, 0
  %1706 = vmatprep.subr.mxu0 0.0
  %1707 = vmatpush1.msra.mxu0 %v49
  %1708 = vmatprep.subr.mxu0 0.0
  %1709 = vmatpush1.msra.mxu0 %v50
  %1710 = vmatprep.subr.mxu0 0.0
  %1711 = vmatpush1.msra.mxu0 %v51
  %1712 = vmatprep.subr.mxu0 0.0
  %1713 = vmatpush1.msra.mxu0 %v52
  %1714 = vmatprep.subr.mxu0 0.0
  %1715 = vmatpush1.msra.mxu0 0.0
  %1716 = vmatprep.subr.mxu0 0.0
  %1717 = vmatpush1.msra.mxu0 0.0
  %1718 = vmatprep.subr.mxu0 0.0
  %1719 = vmatpush1.msra.mxu0 0.0
  %1720 = vmatprep.subr.mxu0 0.0
  %1721 = vmatpush1.msra.mxu0 0.0
  %1722 = vmatprep.subr.mxu0 0.0
  %1723 = vmatpush1.msra.mxu0 0.0
  %1724 = vmatprep.subr.mxu0 0.0
  %1725 = vmatpush1.msra.mxu0 0.0
  %1726 = vmatprep.subr.mxu0 0.0
  %1727 = vmatpush1.msra.mxu0 0.0
  %1728 = vmatprep.subr.mxu0 0.0
  %1729 = vmatpush1.msra.mxu0 0.0
  %1730 = vmatprep.subr.mxu0 0.0
  %1731 = vmatpush1.msra.mxu0 0.0
  %1732 = vmatprep.subr.mxu0 0.0
  %1733 = vmatpush1.msra.mxu0 0.0
  %1734 = vmatprep.subr.mxu0 0.0
  %1735 = vmatpush1.msra.mxu0 0.0
  %1736 = vmatprep.subr.mxu0 0.0
  %1737 = vmatpush1.msra.mxu0 0.0
  %1738 = vmatprep.subr.mxu0 0.0
  %1739 = vmatpush1.msra.mxu0 0.0
  %1740 = vmatprep.subr.mxu0 0.0
  %1741 = vmatpush1.msra.mxu0 0.0
  %1742 = vmatprep.subr.mxu0 0.0
  %1743 = vmatpush1.msra.mxu0 0.0
  %1744 = vmatprep.subr.mxu0 0.0
  %1745 = vmatpush1.msra.mxu0 0.0
  %1746 = vmatprep.subr.mxu0 0.0
  %1747 = vmatpush1.msra.mxu0 0.0
  %1748 = vmatprep.subr.mxu0 0.0
  %1749 = vmatpush1.msra.mxu0 0.0
  %1750 = vmatprep.subr.mxu0 0.0
  %1751 = vmatpush1.msra.mxu0 0.0
  %1752 = vmatprep.subr.mxu0 0.0
  %1753 = vmatpush1.msra.mxu0 0.0
  %1754 = vmatprep.subr.mxu0 0.0
  %1755 = vmatpush1.msra.mxu0 0.0
  %1756 = vmatprep.subr.mxu0 0.0
  %1757 = vmatpush1.msra.mxu0 0.0
  %1758 = vmatprep.subr.mxu0 0.0
  %1759 = vmatpush1.msra.mxu0 0.0
  %1760 = vmatprep.subr.mxu0 0.0
  %1761 = vmatpush1.msra.mxu0 0.0
  %1762 = vmatprep.subr.mxu0 0.0
  %1763 = vmatpush1.msra.mxu0 0.0
  %1764 = vmatprep.subr.mxu0 0.0
  %1765 = vmatpush1.msra.mxu0 0.0
  %1766 = vmatprep.subr.mxu0 0.0
  %1767 = vmatpush1.msra.mxu0 0.0
  %1768 = vmatprep.subr.mxu0 0.0
  %1769 = vmatpush1.msra.mxu0 0.0
  %1770 = vmatprep.mubr.f32.mxu0 0.0
  %1771 = vmatmul.mubr.f32.gmra.mrb[0].mxu0 %v1704
  %v1772 = vpop.f32.mrb[0].mxu0
  %v1773 = vadd.f32 %v1603, %v1772
  %v1774 = vpop.f32.mrb[0].mxu0
  %1775 = vdwg.mxu0
  %v1776 = vxor.u32 %v1773, 2147483648
  %v1777 = vmul.f32 %v1776, 1.442695
  %v1778 = vpow.pop %v1777
  %v1779 = vadd.f32 %v1778, 1.0
  %v1780 = vrcp.pop %v1779
  %v1781 = vmul.f32 1.0, %v1780
  %v1782 = vmul.f32 %v1781, 2.0
  %v1783 = vsub.f32 %v1782, 1.0
  %v1784 = vmul.f32 %v1781, %v1524
  %1786 = vrot.lane.b32.xlu0 %v1783, 64
  %v1787 = vpop.permute.xlu0 %1786
  %v1789 = vmul.f32 %v1781, %v1787
  %1791 = vrot.lane.b32.xlu0 %v1789, 32
  %v1792 = vpop.permute.xlu0 %1791
  %v1794 = vadd.f32 %v1784, %v1792
  %v1795 = vtanh.pop %v1794
  %1797 = vrot.lane.b32.xlu0 %v1795, 64
  %v1798 = vpop.permute.xlu0 %1797
  %v1800 = vmul.f32 %v1781, %v1798
  %1802 = vrot.lane.b32.xlu0 %v1800, 32
  %v1803 = vpop.permute.xlu0 %1802
  %v1804 = vsel %vm182, %v1803, 0
  %1806 = vmatprep.subr.mxu0 0.0
  %1807 = vmatpush1.msra.mxu0 %v53
  %1808 = vmatprep.subr.mxu0 0.0
  %1809 = vmatpush1.msra.mxu0 %v54
  %1810 = vmatprep.subr.mxu0 0.0
  %1811 = vmatpush1.msra.mxu0 %v55
  %1812 = vmatprep.subr.mxu0 0.0
  %1813 = vmatpush1.msra.mxu0 %v56
  %1814 = vmatprep.subr.mxu0 0.0
  %1815 = vmatpush1.msra.mxu0 0.0
  %1816 = vmatprep.subr.mxu0 0.0
  %1817 = vmatpush1.msra.mxu0 0.0
  %1818 = vmatprep.subr.mxu0 0.0
  %1819 = vmatpush1.msra.mxu0 0.0
  %1820 = vmatprep.subr.mxu0 0.0
  %1821 = vmatpush1.msra.mxu0 0.0
  %1822 = vmatprep.subr.mxu0 0.0
  %1823 = vmatpush1.msra.mxu0 0.0
  %1824 = vmatprep.subr.mxu0 0.0
  %1825 = vmatpush1.msra.mxu0 0.0
  %1826 = vmatprep.subr.mxu0 0.0
  %1827 = vmatpush1.msra.mxu0 0.0
  %1828 = vmatprep.subr.mxu0 0.0
  %1829 = vmatpush1.msra.mxu0 0.0
  %1830 = vmatprep.subr.mxu0 0.0
  %1831 = vmatpush1.msra.mxu0 0.0
  %1832 = vmatprep.subr.mxu0 0.0
  %1833 = vmatpush1.msra.mxu0 0.0
  %1834 = vmatprep.subr.mxu0 0.0
  %1835 = vmatpush1.msra.mxu0 0.0
  %1836 = vmatprep.subr.mxu0 0.0
  %1837 = vmatpush1.msra.mxu0 0.0
  %1838 = vmatprep.subr.mxu0 0.0
  %1839 = vmatpush1.msra.mxu0 0.0
  %1840 = vmatprep.subr.mxu0 0.0
  %1841 = vmatpush1.msra.mxu0 0.0
  %1842 = vmatprep.subr.mxu0 0.0
  %1843 = vmatpush1.msra.mxu0 0.0
  %1844 = vmatprep.subr.mxu0 0.0
  %1845 = vmatpush1.msra.mxu0 0.0
  %1846 = vmatprep.subr.mxu0 0.0
  %1847 = vmatpush1.msra.mxu0 0.0
  %1848 = vmatprep.subr.mxu0 0.0
  %1849 = vmatpush1.msra.mxu0 0.0
  %1850 = vmatprep.subr.mxu0 0.0
  %1851 = vmatpush1.msra.mxu0 0.0
  %1852 = vmatprep.subr.mxu0 0.0
  %1853 = vmatpush1.msra.mxu0 0.0
  %1854 = vmatprep.subr.mxu0 0.0
  %1855 = vmatpush1.msra.mxu0 0.0
  %1856 = vmatprep.subr.mxu0 0.0
  %1857 = vmatpush1.msra.mxu0 0.0
  %1858 = vmatprep.subr.mxu0 0.0
  %1859 = vmatpush1.msra.mxu0 0.0
  %1860 = vmatprep.subr.mxu0 0.0
  %1861 = vmatpush1.msra.mxu0 0.0
  %1862 = vmatprep.subr.mxu0 0.0
  %1863 = vmatpush1.msra.mxu0 0.0
  %1864 = vmatprep.subr.mxu0 0.0
  %1865 = vmatpush1.msra.mxu0 0.0
  %1866 = vmatprep.subr.mxu0 0.0
  %1867 = vmatpush1.msra.mxu0 0.0
  %1868 = vmatprep.subr.mxu0 0.0
  %1869 = vmatpush1.msra.mxu0 0.0
  %1870 = vmatprep.mubr.f32.mxu0 0.0
  %1871 = vmatmul.mubr.f32.gmra.mrb[0].mxu0 %v1804
  %v1872 = vpop.f32.mrb[0].mxu0
  %v1873 = vadd.f32 %v62, %v1872
  %v1874 = vpop.f32.mrb[0].mxu0
  %1875 = vdwg.mxu0
  %1876 = vmatprep.subr.mxu0 0.0
  %1877 = vmatpush1.msra.mxu0 %v45
  %1878 = vmatprep.subr.mxu0 0.0
  %1879 = vmatpush1.msra.mxu0 %v46
  %1880 = vmatprep.subr.mxu0 0.0
  %1881 = vmatpush1.msra.mxu0 %v47
  %1882 = vmatprep.subr.mxu0 0.0
  %1883 = vmatpush1.msra.mxu0 %v48
  %1884 = vmatprep.subr.mxu0 0.0
  %1885 = vmatpush1.msra.mxu0 0.0
  %1886 = vmatprep.subr.mxu0 0.0
  %1887 = vmatpush1.msra.mxu0 0.0
  %1888 = vmatprep.subr.mxu0 0.0
  %1889 = vmatpush1.msra.mxu0 0.0
  %1890 = vmatprep.subr.mxu0 0.0
  %1891 = vmatpush1.msra.mxu0 0.0
  %1892 = vmatprep.subr.mxu0 0.0
  %1893 = vmatpush1.msra.mxu0 0.0
  %1894 = vmatprep.subr.mxu0 0.0
  %1895 = vmatpush1.msra.mxu0 0.0
  %1896 = vmatprep.subr.mxu0 0.0
  %1897 = vmatpush1.msra.mxu0 0.0
  %1898 = vmatprep.subr.mxu0 0.0
  %1899 = vmatpush1.msra.mxu0 0.0
  %1900 = vmatprep.subr.mxu0 0.0
  %1901 = vmatpush1.msra.mxu0 0.0
  %1902 = vmatprep.subr.mxu0 0.0
  %1903 = vmatpush1.msra.mxu0 0.0
  %1904 = vmatprep.subr.mxu0 0.0
  %1905 = vmatpush1.msra.mxu0 0.0
  %1906 = vmatprep.subr.mxu0 0.0
  %1907 = vmatpush1.msra.mxu0 0.0
  %1908 = vmatprep.subr.mxu0 0.0
  %1909 = vmatpush1.msra.mxu0 0.0
  %1910 = vmatprep.subr.mxu0 0.0
  %1911 = vmatpush1.msra.mxu0 0.0
  %1912 = vmatprep.subr.mxu0 0.0
  %1913 = vmatpush1.msra.mxu0 0.0
  %1914 = vmatprep.subr.mxu0 0.0
  %1915 = vmatpush1.msra.mxu0 0.0
  %1916 = vmatprep.subr.mxu0 0.0
  %1917 = vmatpush1.msra.mxu0 0.0
  %1918 = vmatprep.subr.mxu0 0.0
  %1919 = vmatpush1.msra.mxu0 0.0
  %1920 = vmatprep.subr.mxu0 0.0
  %1921 = vmatpush1.msra.mxu0 0.0
  %1922 = vmatprep.subr.mxu0 0.0
  %1923 = vmatpush1.msra.mxu0 0.0
  %1924 = vmatprep.subr.mxu0 0.0
  %1925 = vmatpush1.msra.mxu0 0.0
  %1926 = vmatprep.subr.mxu0 0.0
  %1927 = vmatpush1.msra.mxu0 0.0
  %1928 = vmatprep.subr.mxu0 0.0
  %1929 = vmatpush1.msra.mxu0 0.0
  %1930 = vmatprep.subr.mxu0 0.0
  %1931 = vmatpush1.msra.mxu0 0.0
  %1932 = vmatprep.subr.mxu0 0.0
  %1933 = vmatpush1.msra.mxu0 0.0
  %1934 = vmatprep.subr.mxu0 0.0
  %1935 = vmatpush1.msra.mxu0 0.0
  %1936 = vmatprep.subr.mxu0 0.0
  %1937 = vmatpush1.msra.mxu0 0.0
  %1938 = vmatprep.subr.mxu0 0.0
  %1939 = vmatpush1.msra.mxu0 0.0
  %1940 = vmatprep.mubr.f32.mxu0 0.0
  %1941 = vmatmul.mubr.f32.gmra.mrb[0].mxu0 %v1704
  %v1942 = vpop.f32.mrb[0].mxu0
  %v1943 = vadd.f32 %v176, %v1942
  %v1944 = vpop.f32.mrb[0].mxu0
  %1945 = vdwg.mxu0
  %v1946 = vxor.u32 %v1943, 2147483648
  %v1947 = vmul.f32 %v1946, 1.442695
  %v1948 = vpow.pop %v1947
  %v1949 = vadd.f32 %v1948, 1.0
  %v1950 = vrcp.pop %v1949
  %v1951 = vmul.f32 1.0, %v1950
  %v1952 = vmul.f32 %v1951, 2.0
  %v1953 = vsub.f32 %v1952, 1.0
  %v1954 = vmul.f32 %v1951, %v1694
  %1956 = vrot.lane.b32.xlu0 %v1953, 64
  %v1957 = vpop.permute.xlu0 %1956
  %v1959 = vmul.f32 %v1951, %v1957
  %1961 = vrot.lane.b32.xlu0 %v1959, 32
  %v1962 = vpop.permute.xlu0 %1961
  %v1964 = vadd.f32 %v1954, %v1962
  %v1965 = vtanh.pop %v1964
  %1967 = vrot.lane.b32.xlu0 %v1965, 64
  %v1968 = vpop.permute.xlu0 %1967
  %v1970 = vmul.f32 %v1951, %v1968
  %1972 = vrot.lane.b32.xlu0 %v1970, 32
  %v1973 = vpop.permute.xlu0 %1972
  %v1974 = vsel %vm182, %v1973, 0
  %1976 = vmatprep.subr.mxu0 0.0
  %1977 = vmatpush1.msra.mxu0 %v49
  %1978 = vmatprep.subr.mxu0 0.0
  %1979 = vmatpush1.msra.mxu0 %v50
  %1980 = vmatprep.subr.mxu0 0.0
  %1981 = vmatpush1.msra.mxu0 %v51
  %1982 = vmatprep.subr.mxu0 0.0
  %1983 = vmatpush1.msra.mxu0 %v52
  %1984 = vmatprep.subr.mxu0 0.0
  %1985 = vmatpush1.msra.mxu0 0.0
  %1986 = vmatprep.subr.mxu0 0.0
  %1987 = vmatpush1.msra.mxu0 0.0
  %1988 = vmatprep.subr.mxu0 0.0
  %1989 = vmatpush1.msra.mxu0 0.0
  %1990 = vmatprep.subr.mxu0 0.0
  %1991 = vmatpush1.msra.mxu0 0.0
  %1992 = vmatprep.subr.mxu0 0.0
  %1993 = vmatpush1.msra.mxu0 0.0
  %1994 = vmatprep.subr.mxu0 0.0
  %1995 = vmatpush1.msra.mxu0 0.0
  %1996 = vmatprep.subr.mxu0 0.0
  %1997 = vmatpush1.msra.mxu0 0.0
  %1998 = vmatprep.subr.mxu0 0.0
  %1999 = vmatpush1.msra.mxu0 0.0
  %2000 = vmatprep.subr.mxu0 0.0
  %2001 = vmatpush1.msra.mxu0 0.0
  %2002 = vmatprep.subr.mxu0 0.0
  %2003 = vmatpush1.msra.mxu0 0.0
  %2004 = vmatprep.subr.mxu0 0.0
  %2005 = vmatpush1.msra.mxu0 0.0
  %2006 = vmatprep.subr.mxu0 0.0
  %2007 = vmatpush1.msra.mxu0 0.0
  %2008 = vmatprep.subr.mxu0 0.0
  %2009 = vmatpush1.msra.mxu0 0.0
  %2010 = vmatprep.subr.mxu0 0.0
  %2011 = vmatpush1.msra.mxu0 0.0
  %2012 = vmatprep.subr.mxu0 0.0
  %2013 = vmatpush1.msra.mxu0 0.0
  %2014 = vmatprep.subr.mxu0 0.0
  %2015 = vmatpush1.msra.mxu0 0.0
  %2016 = vmatprep.subr.mxu0 0.0
  %2017 = vmatpush1.msra.mxu0 0.0
  %2018 = vmatprep.subr.mxu0 0.0
  %2019 = vmatpush1.msra.mxu0 0.0
  %2020 = vmatprep.subr.mxu0 0.0
  %2021 = vmatpush1.msra.mxu0 0.0
  %2022 = vmatprep.subr.mxu0 0.0
  %2023 = vmatpush1.msra.mxu0 0.0
  %2024 = vmatprep.subr.mxu0 0.0
  %2025 = vmatpush1.msra.mxu0 0.0
  %2026 = vmatprep.subr.mxu0 0.0
  %2027 = vmatpush1.msra.mxu0 0.0
  %2028 = vmatprep.subr.mxu0 0.0
  %2029 = vmatpush1.msra.mxu0 0.0
  %2030 = vmatprep.subr.mxu0 0.0
  %2031 = vmatpush1.msra.mxu0 0.0
  %2032 = vmatprep.subr.mxu0 0.0
  %2033 = vmatpush1.msra.mxu0 0.0
  %2034 = vmatprep.subr.mxu0 0.0
  %2035 = vmatpush1.msra.mxu0 0.0
  %2036 = vmatprep.subr.mxu0 0.0
  %2037 = vmatpush1.msra.mxu0 0.0
  %2038 = vmatprep.subr.mxu0 0.0
  %2039 = vmatpush1.msra.mxu0 0.0
  %2040 = vmatprep.mubr.f32.mxu0 0.0
  %2041 = vmatmul.mubr.f32.gmra.mrb[0].mxu0 %v1974
  %v2042 = vpop.f32.mrb[0].mxu0
  %v2043 = vadd.f32 %v1873, %v2042
  %v2044 = vpop.f32.mrb[0].mxu0
  %2045 = vdwg.mxu0
  %v2046 = vxor.u32 %v2043, 2147483648
  %v2047 = vmul.f32 %v2046, 1.442695
  %v2048 = vpow.pop %v2047
  %v2049 = vadd.f32 %v2048, 1.0
  %v2050 = vrcp.pop %v2049
  %v2051 = vmul.f32 1.0, %v2050
  %v2052 = vmul.f32 %v2051, 2.0
  %v2053 = vsub.f32 %v2052, 1.0
  %v2054 = vmul.f32 %v2051, %v1794
  %2056 = vrot.lane.b32.xlu0 %v2053, 64
  %v2057 = vpop.permute.xlu0 %2056
  %v2059 = vmul.f32 %v2051, %v2057
  %2061 = vrot.lane.b32.xlu0 %v2059, 32
  %v2062 = vpop.permute.xlu0 %2061
  %v2064 = vadd.f32 %v2054, %v2062
  %v2065 = vtanh.pop %v2064
  %2067 = vrot.lane.b32.xlu0 %v2065, 64
  %v2068 = vpop.permute.xlu0 %2067
  %v2070 = vmul.f32 %v2051, %v2068
  %2072 = vrot.lane.b32.xlu0 %v2070, 32
  %v2073 = vpop.permute.xlu0 %2072
  %v2074 = vsel %vm182, %v2073, 0
  %2076 = vmatprep.subr.mxu0 0.0
  %2077 = vmatpush1.msra.mxu0 %v53
  %2078 = vmatprep.subr.mxu0 0.0
  %2079 = vmatpush1.msra.mxu0 %v54
  %2080 = vmatprep.subr.mxu0 0.0
  %2081 = vmatpush1.msra.mxu0 %v55
  %2082 = vmatprep.subr.mxu0 0.0
  %2083 = vmatpush1.msra.mxu0 %v56
  %2084 = vmatprep.subr.mxu0 0.0
  %2085 = vmatpush1.msra.mxu0 0.0
  %2086 = vmatprep.subr.mxu0 0.0
  %2087 = vmatpush1.msra.mxu0 0.0
  %2088 = vmatprep.subr.mxu0 0.0
  %2089 = vmatpush1.msra.mxu0 0.0
  %2090 = vmatprep.subr.mxu0 0.0
  %2091 = vmatpush1.msra.mxu0 0.0
  %2092 = vmatprep.subr.mxu0 0.0
  %2093 = vmatpush1.msra.mxu0 0.0
  %2094 = vmatprep.subr.mxu0 0.0
  %2095 = vmatpush1.msra.mxu0 0.0
  %2096 = vmatprep.subr.mxu0 0.0
  %2097 = vmatpush1.msra.mxu0 0.0
  %2098 = vmatprep.subr.mxu0 0.0
  %2099 = vmatpush1.msra.mxu0 0.0
  %2100 = vmatprep.subr.mxu0 0.0
  %2101 = vmatpush1.msra.mxu0 0.0
  %2102 = vmatprep.subr.mxu0 0.0
  %2103 = vmatpush1.msra.mxu0 0.0
  %2104 = vmatprep.subr.mxu0 0.0
  %2105 = vmatpush1.msra.mxu0 0.0
  %2106 = vmatprep.subr.mxu0 0.0
  %2107 = vmatpush1.msra.mxu0 0.0
  %2108 = vmatprep.subr.mxu0 0.0
  %2109 = vmatpush1.msra.mxu0 0.0
  %2110 = vmatprep.subr.mxu0 0.0
  %2111 = vmatpush1.msra.mxu0 0.0
  %2112 = vmatprep.subr.mxu0 0.0
  %2113 = vmatpush1.msra.mxu0 0.0
  %2114 = vmatprep.subr.mxu0 0.0
  %2115 = vmatpush1.msra.mxu0 0.0
  %2116 = vmatprep.subr.mxu0 0.0
  %2117 = vmatpush1.msra.mxu0 0.0
  %2118 = vmatprep.subr.mxu0 0.0
  %2119 = vmatpush1.msra.mxu0 0.0
  %2120 = vmatprep.subr.mxu0 0.0
  %2121 = vmatpush1.msra.mxu0 0.0
  %2122 = vmatprep.subr.mxu0 0.0
  %2123 = vmatpush1.msra.mxu0 0.0
  %2124 = vmatprep.subr.mxu0 0.0
  %2125 = vmatpush1.msra.mxu0 0.0
  %2126 = vmatprep.subr.mxu0 0.0
  %2127 = vmatpush1.msra.mxu0 0.0
  %2128 = vmatprep.subr.mxu0 0.0
  %2129 = vmatpush1.msra.mxu0 0.0
  %2130 = vmatprep.subr.mxu0 0.0
  %2131 = vmatpush1.msra.mxu0 0.0
  %2132 = vmatprep.subr.mxu0 0.0
  %2133 = vmatpush1.msra.mxu0 0.0
  %2134 = vmatprep.subr.mxu0 0.0
  %2135 = vmatpush1.msra.mxu0 0.0
  %2136 = vmatprep.subr.mxu0 0.0
  %2137 = vmatpush1.msra.mxu0 0.0
  %2138 = vmatprep.subr.mxu0 0.0
  %2139 = vmatpush1.msra.mxu0 0.0
  %2140 = vmatprep.mubr.f32.mxu0 0.0
  %2141 = vmatmul.mubr.f32.gmra.mrb[0].mxu0 %v2074
  %v2142 = vpop.f32.mrb[0].mxu0
  %v2143 = vadd.f32 %v62, %v2142
  %v2144 = vpop.f32.mrb[0].mxu0
  %2145 = vdwg.mxu0
  %2146 = vmatprep.subr.mxu0 0.0
  %2147 = vmatpush1.msra.mxu0 %v45
  %2148 = vmatprep.subr.mxu0 0.0
  %2149 = vmatpush1.msra.mxu0 %v46
  %2150 = vmatprep.subr.mxu0 0.0
  %2151 = vmatpush1.msra.mxu0 %v47
  %2152 = vmatprep.subr.mxu0 0.0
  %2153 = vmatpush1.msra.mxu0 %v48
  %2154 = vmatprep.subr.mxu0 0.0
  %2155 = vmatpush1.msra.mxu0 0.0
  %2156 = vmatprep.subr.mxu0 0.0
  %2157 = vmatpush1.msra.mxu0 0.0
  %2158 = vmatprep.subr.mxu0 0.0
  %2159 = vmatpush1.msra.mxu0 0.0
  %2160 = vmatprep.subr.mxu0 0.0
  %2161 = vmatpush1.msra.mxu0 0.0
  %2162 = vmatprep.subr.mxu0 0.0
  %2163 = vmatpush1.msra.mxu0 0.0
  %2164 = vmatprep.subr.mxu0 0.0
  %2165 = vmatpush1.msra.mxu0 0.0
  %2166 = vmatprep.subr.mxu0 0.0
  %2167 = vmatpush1.msra.mxu0 0.0
  %2168 = vmatprep.subr.mxu0 0.0
  %2169 = vmatpush1.msra.mxu0 0.0
  %2170 = vmatprep.subr.mxu0 0.0
  %2171 = vmatpush1.msra.mxu0 0.0
  %2172 = vmatprep.subr.mxu0 0.0
  %2173 = vmatpush1.msra.mxu0 0.0
  %2174 = vmatprep.subr.mxu0 0.0
  %2175 = vmatpush1.msra.mxu0 0.0
  %2176 = vmatprep.subr.mxu0 0.0
  %2177 = vmatpush1.msra.mxu0 0.0
  %2178 = vmatprep.subr.mxu0 0.0
  %2179 = vmatpush1.msra.mxu0 0.0
  %2180 = vmatprep.subr.mxu0 0.0
  %2181 = vmatpush1.msra.mxu0 0.0
  %2182 = vmatprep.subr.mxu0 0.0
  %2183 = vmatpush1.msra.mxu0 0.0
  %2184 = vmatprep.subr.mxu0 0.0
  %2185 = vmatpush1.msra.mxu0 0.0
  %2186 = vmatprep.subr.mxu0 0.0
  %2187 = vmatpush1.msra.mxu0 0.0
  %2188 = vmatprep.subr.mxu0 0.0
  %2189 = vmatpush1.msra.mxu0 0.0
  %2190 = vmatprep.subr.mxu0 0.0
  %2191 = vmatpush1.msra.mxu0 0.0
  %2192 = vmatprep.subr.mxu0 0.0
  %2193 = vmatpush1.msra.mxu0 0.0
  %2194 = vmatprep.subr.mxu0 0.0
  %2195 = vmatpush1.msra.mxu0 0.0
  %2196 = vmatprep.subr.mxu0 0.0
  %2197 = vmatpush1.msra.mxu0 0.0
  %2198 = vmatprep.subr.mxu0 0.0
  %2199 = vmatpush1.msra.mxu0 0.0
  %2200 = vmatprep.subr.mxu0 0.0
  %2201 = vmatpush1.msra.mxu0 0.0
  %2202 = vmatprep.subr.mxu0 0.0
  %2203 = vmatpush1.msra.mxu0 0.0
  %2204 = vmatprep.subr.mxu0 0.0
  %2205 = vmatpush1.msra.mxu0 0.0
  %2206 = vmatprep.subr.mxu0 0.0
  %2207 = vmatpush1.msra.mxu0 0.0
  %2208 = vmatprep.subr.mxu0 0.0
  %2209 = vmatpush1.msra.mxu0 0.0
  %2210 = vmatprep.mubr.f32.mxu0 0.0
  %2211 = vmatmul.mubr.f32.gmra.mrb[0].mxu0 %v1974
  %v2212 = vpop.f32.mrb[0].mxu0
  %v2213 = vadd.f32 %v179, %v2212
  %v2214 = vpop.f32.mrb[0].mxu0
  %2215 = vdwg.mxu0
  %v2216 = vxor.u32 %v2213, 2147483648
  %v2217 = vmul.f32 %v2216, 1.442695
  %v2218 = vpow.pop %v2217
  %v2219 = vadd.f32 %v2218, 1.0
  %v2220 = vrcp.pop %v2219
  %v2221 = vmul.f32 1.0, %v2220
  %v2222 = vmul.f32 %v2221, 2.0
  %v2223 = vsub.f32 %v2222, 1.0
  %v2224 = vmul.f32 %v2221, %v1964
  %2226 = vrot.lane.b32.xlu0 %v2223, 64
  %v2227 = vpop.permute.xlu0 %2226
  %v2229 = vmul.f32 %v2221, %v2227
  %2231 = vrot.lane.b32.xlu0 %v2229, 32
  %v2232 = vpop.permute.xlu0 %2231
  %v2234 = vadd.f32 %v2224, %v2232
  %v2235 = vtanh.pop %v2234
  %2237 = vrot.lane.b32.xlu0 %v2235, 64
  %v2238 = vpop.permute.xlu0 %2237
  %v2240 = vmul.f32 %v2221, %v2238
  %2242 = vrot.lane.b32.xlu0 %v2240, 32
  %v2243 = vpop.permute.xlu0 %2242
  %v2244 = vsel %vm182, %v2243, 0
  %2246 = vmatprep.subr.mxu0 0.0
  %2247 = vmatpush1.msra.mxu0 %v49
  %2248 = vmatprep.subr.mxu0 0.0
  %2249 = vmatpush1.msra.mxu0 %v50
  %2250 = vmatprep.subr.mxu0 0.0
  %2251 = vmatpush1.msra.mxu0 %v51
  %2252 = vmatprep.subr.mxu0 0.0
  %2253 = vmatpush1.msra.mxu0 %v52
  %2254 = vmatprep.subr.mxu0 0.0
  %2255 = vmatpush1.msra.mxu0 0.0
  %2256 = vmatprep.subr.mxu0 0.0
  %2257 = vmatpush1.msra.mxu0 0.0
  %2258 = vmatprep.subr.mxu0 0.0
  %2259 = vmatpush1.msra.mxu0 0.0
  %2260 = vmatprep.subr.mxu0 0.0
  %2261 = vmatpush1.msra.mxu0 0.0
  %2262 = vmatprep.subr.mxu0 0.0
  %2263 = vmatpush1.msra.mxu0 0.0
  %2264 = vmatprep.subr.mxu0 0.0
  %2265 = vmatpush1.msra.mxu0 0.0
  %2266 = vmatprep.subr.mxu0 0.0
  %2267 = vmatpush1.msra.mxu0 0.0
  %2268 = vmatprep.subr.mxu0 0.0
  %2269 = vmatpush1.msra.mxu0 0.0
  %2270 = vmatprep.subr.mxu0 0.0
  %2271 = vmatpush1.msra.mxu0 0.0
  %2272 = vmatprep.subr.mxu0 0.0
  %2273 = vmatpush1.msra.mxu0 0.0
  %2274 = vmatprep.subr.mxu0 0.0
  %2275 = vmatpush1.msra.mxu0 0.0
  %2276 = vmatprep.subr.mxu0 0.0
  %2277 = vmatpush1.msra.mxu0 0.0
  %2278 = vmatprep.subr.mxu0 0.0
  %2279 = vmatpush1.msra.mxu0 0.0
  %2280 = vmatprep.subr.mxu0 0.0
  %2281 = vmatpush1.msra.mxu0 0.0
  %2282 = vmatprep.subr.mxu0 0.0
  %2283 = vmatpush1.msra.mxu0 0.0
  %2284 = vmatprep.subr.mxu0 0.0
  %2285 = vmatpush1.msra.mxu0 0.0
  %2286 = vmatprep.subr.mxu0 0.0
  %2287 = vmatpush1.msra.mxu0 0.0
  %2288 = vmatprep.subr.mxu0 0.0
  %2289 = vmatpush1.msra.mxu0 0.0
  %2290 = vmatprep.subr.mxu0 0.0
  %2291 = vmatpush1.msra.mxu0 0.0
  %2292 = vmatprep.subr.mxu0 0.0
  %2293 = vmatpush1.msra.mxu0 0.0
  %2294 = vmatprep.subr.mxu0 0.0
  %2295 = vmatpush1.msra.mxu0 0.0
  %2296 = vmatprep.subr.mxu0 0.0
  %2297 = vmatpush1.msra.mxu0 0.0
  %2298 = vmatprep.subr.mxu0 0.0
  %2299 = vmatpush1.msra.mxu0 0.0
  %2300 = vmatprep.subr.mxu0 0.0
  %2301 = vmatpush1.msra.mxu0 0.0
  %2302 = vmatprep.subr.mxu0 0.0
  %2303 = vmatpush1.msra.mxu0 0.0
  %2304 = vmatprep.subr.mxu0 0.0
  %2305 = vmatpush1.msra.mxu0 0.0
  %2306 = vmatprep.subr.mxu0 0.0
  %2307 = vmatpush1.msra.mxu0 0.0
  %2308 = vmatprep.subr.mxu0 0.0
  %2309 = vmatpush1.msra.mxu0 0.0
  %2310 = vmatprep.mubr.f32.mxu0 0.0
  %2311 = vmatmul.mubr.f32.gmra.mrb[0].mxu0 %v2244
  %v2312 = vpop.f32.mrb[0].mxu0
  %v2313 = vadd.f32 %v2143, %v2312
  %v2314 = vpop.f32.mrb[0].mxu0
  %2315 = vdwg.mxu0
  %v2316 = vxor.u32 %v2313, 2147483648
  %v2317 = vmul.f32 %v2316, 1.442695
  %v2318 = vpow.pop %v2317
  %v2319 = vadd.f32 %v2318, 1.0
  %v2320 = vrcp.pop %v2319
  %v2321 = vmul.f32 1.0, %v2320
  %v2322 = vmul.f32 %v2321, 2.0
  %v2323 = vsub.f32 %v2322, 1.0
  %v2324 = vmul.f32 %v2321, %v2064
  %2326 = vrot.lane.b32.xlu0 %v2323, 64
  %v2327 = vpop.permute.xlu0 %2326
  %v2329 = vmul.f32 %v2321, %v2327
  %2331 = vrot.lane.b32.xlu0 %v2329, 32
  %v2332 = vpop.permute.xlu0 %2331
  %v2334 = vadd.f32 %v2324, %v2332
  %v2335 = vtanh.pop %v2334
  %2337 = vrot.lane.b32.xlu0 %v2335, 64
  %v2338 = vpop.permute.xlu0 %2337
  %v2340 = vmul.f32 %v2321, %v2338
  %v2341 = vpack.c.bf16 %v2340, %v2340
  %v2342 = vld [vmem:[%s7] sm:$0xf]
  %v2343 = vld [vmem:[%s7 + $0x4] sm:$0xf]
  %v2344 = vld [vmem:[%s7 + $0x8] sm:$0xf]
  %v2345 = vld [vmem:[%s7 + $0xc] sm:$0xf]
  %v2346 = vld [vmem:[%s8] sm:$0x1]
  %v2348 = vlaneseq
  %v2349 = vshrl.u32 %v2348, 7
  %v2350 = vsub.s32 0, %v2349
  %v2351 = vrot.slane %v2346, %v2350
  %2354 = vrot.lane.b32.xlu0 %v2341, 32
  %v2355 = vpop.permute.xlu0 %2354
  %v2360 = vunpack.c.l.b16 %v2342
  %v2361 = vunpack.c.l.b16 %v2343
  %v2362 = vunpack.c.l.b16 %v2344
  %v2363 = vunpack.c.l.b16 %v2345
  %v2364 = vpack.c.b16 %v2361, %v2360
  %v2365 = vpack.c.b16 %v2363, %v2362
  %v2369 = vsel %vm182, %v2355, 0
  %2371 = vmatprep.subr.bf16.mxu0 0
  %2372 = vmatpush1.bf16.msra.mxu0 %v2364
  %2373 = vmatprep.subr.bf16.mxu0 0
  %2374 = vmatpush1.bf16.msra.mxu0 %v2365
  %2375 = vmatprep.subr.bf16.mxu0 0
  %2376 = vmatpush1.bf16.msra.mxu0 0
  %2377 = vmatprep.subr.bf16.mxu0 0
  %2378 = vmatpush1.bf16.msra.mxu0 0
  %2379 = vmatprep.subr.bf16.mxu0 0
  %2380 = vmatpush1.bf16.msra.mxu0 0
  %2381 = vmatprep.subr.bf16.mxu0 0
  %2382 = vmatpush1.bf16.msra.mxu0 0
  %2383 = vmatprep.subr.bf16.mxu0 0
  %2384 = vmatpush1.bf16.msra.mxu0 0
  %2385 = vmatprep.subr.bf16.mxu0 0
  %2386 = vmatpush1.bf16.msra.mxu0 0
  %2387 = vmatprep.subr.bf16.mxu0 0
  %2388 = vmatpush1.bf16.msra.mxu0 0
  %2389 = vmatprep.subr.bf16.mxu0 0
  %2390 = vmatpush1.bf16.msra.mxu0 0
  %2391 = vmatprep.subr.bf16.mxu0 0
  %2392 = vmatpush1.bf16.msra.mxu0 0
  %2393 = vmatprep.subr.bf16.mxu0 0
  %2394 = vmatpush1.bf16.msra.mxu0 0
  %2395 = vmatprep.subr.bf16.mxu0 0
  %2396 = vmatpush1.bf16.msra.mxu0 0
  %2397 = vmatprep.subr.bf16.mxu0 0
  %2398 = vmatpush1.bf16.msra.mxu0 0
  %2399 = vmatprep.subr.bf16.mxu0 0
  %2400 = vmatpush1.bf16.msra.mxu0 0
  %2401 = vmatprep.subr.bf16.mxu0 0
  %2402 = vmatpush1.bf16.msra.mxu0 0
  %2403 = vmatprep.mubr.bf16.mxu0 0
  %2404 = vmatmul.mubr.bf16.gmra.mrb[0].mxu0 %v2369
  %v2405 = vpop.f32.mrb[0].mxu0
  %v2406 = vadd.f32 %v2351, %v2405
  %v2407 = vpop.f32.mrb[0].mxu0
  %v2408 = vpop.f32.mrb[0].mxu0
  %v2409 = vpop.f32.mrb[0].mxu0
  %2410 = vdwg.mxu0
  %v2411 = vmax.f32 %v2406, 0.0
  %v2412 = vpack.c.bf16 %v2411, %v2411
  %v2413 = vld [vmem:[%s9] sm:$0xf]
  %v2414 = vld [vmem:[%s9 + $0x4] sm:$0xf]
  %v2415 = vld [vmem:[%s9 + $0x8] sm:$0xf]
  %v2416 = vld [vmem:[%s9 + $0xc] sm:$0xf]
  %v2417 = vld [vmem:[%s9 + $0x10] sm:$0xf]
  %v2418 = vld [vmem:[%s9 + $0x14] sm:$0xf]
  %v2419 = vld [vmem:[%s9 + $0x18] sm:$0xf]
  %v2420 = vld [vmem:[%s9 + $0x1c] sm:$0xf]
  %v2421 = vld [vmem:[%s9 + $0x20] sm:$0xf]
  %v2422 = vld [vmem:[%s9 + $0x24] sm:$0xf]
  %v2423 = vld [vmem:[%s9 + $0x28] sm:$0xf]
  %v2424 = vld [vmem:[%s9 + $0x2c] sm:$0xf]
  %v2425 = vld [vmem:[%s9 + $0x30] sm:$0xf]
  %v2426 = vld [vmem:[%s9 + $0x34] sm:$0xf]
  %v2427 = vld [vmem:[%s9 + $0x38] sm:$0xf]
  %v2428 = vld [vmem:[%s9 + $0x3c] sm:$0xf]
  %v2429 = vld [vmem:[%s10] sm:$0x1]
  %v2431 = vlaneseq
  %v2432 = vshrl.u32 %v2431, 7
  %v2433 = vsub.s32 0, %v2432
  %v2434 = vrot.slane %v2429, %v2433
  %v2452 = vunpack.c.l.b16 %v2413
  %v2453 = vunpack.c.l.b16 %v2414
  %v2454 = vunpack.c.l.b16 %v2415
  %v2455 = vunpack.c.l.b16 %v2416
  %v2456 = vunpack.c.l.b16 %v2417
  %v2457 = vunpack.c.l.b16 %v2418
  %v2458 = vunpack.c.l.b16 %v2419
  %v2459 = vunpack.c.l.b16 %v2420
  %v2460 = vunpack.c.l.b16 %v2421
  %v2461 = vunpack.c.l.b16 %v2422
  %v2462 = vunpack.c.l.b16 %v2423
  %v2463 = vunpack.c.l.b16 %v2424
  %v2464 = vunpack.c.l.b16 %v2425
  %v2465 = vunpack.c.l.b16 %v2426
  %v2466 = vunpack.c.l.b16 %v2427
  %v2467 = vunpack.c.l.b16 %v2428
  %v2468 = vpack.c.b16 %v2453, %v2452
  %v2469 = vpack.c.b16 %v2455, %v2454
  %v2470 = vpack.c.b16 %v2457, %v2456
  %v2471 = vpack.c.b16 %v2459, %v2458
  %v2472 = vpack.c.b16 %v2461, %v2460
  %v2473 = vpack.c.b16 %v2463, %v2462
  %v2474 = vpack.c.b16 %v2465, %v2464
  %v2475 = vpack.c.b16 %v2467, %v2466
  %2484 = vmatprep.subr.bf16.mxu0 0
  %2485 = vmatpush1.bf16.msra.mxu0 %v2468
  %2486 = vmatprep.subr.bf16.mxu0 0
  %2487 = vmatpush1.bf16.msra.mxu0 %v2469
  %2488 = vmatprep.subr.bf16.mxu0 0
  %2489 = vmatpush1.bf16.msra.mxu0 %v2470
  %2490 = vmatprep.subr.bf16.mxu0 0
  %2491 = vmatpush1.bf16.msra.mxu0 %v2471
  %2492 = vmatprep.subr.bf16.mxu0 0
  %2493 = vmatpush1.bf16.msra.mxu0 %v2472
  %2494 = vmatprep.subr.bf16.mxu0 0
  %2495 = vmatpush1.bf16.msra.mxu0 %v2473
  %2496 = vmatprep.subr.bf16.mxu0 0
  %2497 = vmatpush1.bf16.msra.mxu0 %v2474
  %2498 = vmatprep.subr.bf16.mxu0 0
  %2499 = vmatpush1.bf16.msra.mxu0 %v2475
  %2500 = vmatprep.subr.bf16.mxu0 0
  %2501 = vmatpush1.bf16.msra.mxu0 0
  %2502 = vmatprep.subr.bf16.mxu0 0
  %2503 = vmatpush1.bf16.msra.mxu0 0
  %2504 = vmatprep.subr.bf16.mxu0 0
  %2505 = vmatpush1.bf16.msra.mxu0 0
  %2506 = vmatprep.subr.bf16.mxu0 0
  %2507 = vmatpush1.bf16.msra.mxu0 0
  %2508 = vmatprep.subr.bf16.mxu0 0
  %2509 = vmatpush1.bf16.msra.mxu0 0
  %2510 = vmatprep.subr.bf16.mxu0 0
  %2511 = vmatpush1.bf16.msra.mxu0 0
  %2512 = vmatprep.subr.bf16.mxu0 0
  %2513 = vmatpush1.bf16.msra.mxu0 0
  %2514 = vmatprep.subr.bf16.mxu0 0
  %2515 = vmatpush1.bf16.msra.mxu0 0
  %2516 = vmatprep.mubr.bf16.mxu0 0
  %2517 = vmatmul.mubr.bf16.gmra.mrb[0].mxu0 %v2412
  %v2518 = vpop.f32.mrb[0].mxu0
  %v2519 = vadd.f32 %v2434, %v2518
  %v2520 = vpop.f32.mrb[0].mxu0
  %v2521 = vpop.f32.mrb[0].mxu0
  %v2522 = vpop.f32.mrb[0].mxu0
  %2523 = vdwg.mxu0
  %v2524 = vmax.f32 %v2519, 0.0
  %v2525 = vpack.c.bf16 %v2524, %v2524
  %v2526 = vld [vmem:[%s11] sm:$0xf]
  %v2527 = vld [vmem:[%s11 + $0x4] sm:$0xf]
  %v2528 = vld [vmem:[%s11 + $0x8] sm:$0xf]
  %v2529 = vld [vmem:[%s11 + $0xc] sm:$0xf]
  %v2530 = vld [vmem:[%s11 + $0x10] sm:$0xf]
  %v2531 = vld [vmem:[%s11 + $0x14] sm:$0xf]
  %v2532 = vld [vmem:[%s11 + $0x18] sm:$0xf]
  %v2533 = vld [vmem:[%s11 + $0x1c] sm:$0xf]
  %v2534 = vld [vmem:[%s11 + $0x20] sm:$0xf]
  %v2535 = vld [vmem:[%s11 + $0x24] sm:$0xf]
  %v2536 = vld [vmem:[%s11 + $0x28] sm:$0xf]
  %v2537 = vld [vmem:[%s11 + $0x2c] sm:$0xf]
  %v2538 = vld [vmem:[%s11 + $0x30] sm:$0xf]
  %v2539 = vld [vmem:[%s11 + $0x34] sm:$0xf]
  %v2540 = vld [vmem:[%s11 + $0x38] sm:$0xf]
  %v2541 = vld [vmem:[%s11 + $0x3c] sm:$0xf]
  %v2542 = vld [vmem:[%s12] sm:$0x1]
  %v2544 = vlaneseq
  %v2545 = vshrl.u32 %v2544, 7
  %v2546 = vsub.s32 0, %v2545
  %v2547 = vrot.slane %v2542, %v2546
  %v2565 = vunpack.c.l.b16 %v2526
  %v2566 = vunpack.c.l.b16 %v2527
  %v2567 = vunpack.c.l.b16 %v2528
  %v2568 = vunpack.c.l.b16 %v2529
  %v2569 = vunpack.c.l.b16 %v2530
  %v2570 = vunpack.c.l.b16 %v2531
  %v2571 = vunpack.c.l.b16 %v2532
  %v2572 = vunpack.c.l.b16 %v2533
  %v2573 = vunpack.c.l.b16 %v2534
  %v2574 = vunpack.c.l.b16 %v2535
  %v2575 = vunpack.c.l.b16 %v2536
  %v2576 = vunpack.c.l.b16 %v2537
  %v2577 = vunpack.c.l.b16 %v2538
  %v2578 = vunpack.c.l.b16 %v2539
  %v2579 = vunpack.c.l.b16 %v2540
  %v2580 = vunpack.c.l.b16 %v2541
  %v2581 = vpack.c.b16 %v2566, %v2565
  %v2582 = vpack.c.b16 %v2568, %v2567
  %v2583 = vpack.c.b16 %v2570, %v2569
  %v2584 = vpack.c.b16 %v2572, %v2571
  %v2585 = vpack.c.b16 %v2574, %v2573
  %v2586 = vpack.c.b16 %v2576, %v2575
  %v2587 = vpack.c.b16 %v2578, %v2577
  %v2588 = vpack.c.b16 %v2580, %v2579
  %2597 = vmatprep.subr.bf16.mxu0 0
  %2598 = vmatpush1.bf16.msra.mxu0 %v2581
  %2599 = vmatprep.subr.bf16.mxu0 0
  %2600 = vmatpush1.bf16.msra.mxu0 %v2582
  %2601 = vmatprep.subr.bf16.mxu0 0
  %2602 = vmatpush1.bf16.msra.mxu0 %v2583
  %2603 = vmatprep.subr.bf16.mxu0 0
  %2604 = vmatpush1.bf16.msra.mxu0 %v2584
  %2605 = vmatprep.subr.bf16.mxu0 0
  %2606 = vmatpush1.bf16.msra.mxu0 %v2585
  %2607 = vmatprep.subr.bf16.mxu0 0
  %2608 = vmatpush1.bf16.msra.mxu0 %v2586
  %2609 = vmatprep.subr.bf16.mxu0 0
  %2610 = vmatpush1.bf16.msra.mxu0 %v2587
  %2611 = vmatprep.subr.bf16.mxu0 0
  %2612 = vmatpush1.bf16.msra.mxu0 %v2588
  %2613 = vmatprep.subr.bf16.mxu0 0
  %2614 = vmatpush1.bf16.msra.mxu0 0
  %2615 = vmatprep.subr.bf16.mxu0 0
  %2616 = vmatpush1.bf16.msra.mxu0 0
  %2617 = vmatprep.subr.bf16.mxu0 0
  %2618 = vmatpush1.bf16.msra.mxu0 0
  %2619 = vmatprep.subr.bf16.mxu0 0
  %2620 = vmatpush1.bf16.msra.mxu0 0
  %2621 = vmatprep.subr.bf16.mxu0 0
  %2622 = vmatpush1.bf16.msra.mxu0 0
  %2623 = vmatprep.subr.bf16.mxu0 0
  %2624 = vmatpush1.bf16.msra.mxu0 0
  %2625 = vmatprep.subr.bf16.mxu0 0
  %2626 = vmatpush1.bf16.msra.mxu0 0
  %2627 = vmatprep.subr.bf16.mxu0 0
  %2628 = vmatpush1.bf16.msra.mxu0 0
  %2629 = vmatprep.mubr.bf16.mxu0 0
  %2630 = vmatmul.mubr.bf16.gmra.mrb[0].mxu0 %v2525
  %v2631 = vpop.f32.mrb[0].mxu0
  %v2632 = vadd.f32 %v2547, %v2631
  %v2633 = vpop.f32.mrb[0].mxu0
  %v2634 = vpop.f32.mrb[0].mxu0
  %v2635 = vpop.f32.mrb[0].mxu0
  %2636 = vdwg.mxu0
  %2637 = vst [vmem:[%s13] sm:$0xff] %v2632
  // Predicated region
  $region54: #{shred_forward.1} parent=0 // pred_check
    _
  $region55: #{shred_forward.1} parent=0 // pred_check_branch
    %2639 = sbr.rel (0) target = $region57
  $region56: #{shred_forward.1} parent=0 // pred_region
    _
  $region57: #{shred_forward.1} parent=0 // pred_fallthru
    _
  // Predicated region
  $region58: #{shred_forward.1} parent=0 // pred_check
    _
  $region59: #{shred_forward.1} parent=0 // pred_check_branch
    %2641 = sbr.rel (0) target = $region61
  $region60: #{shred_forward.1} parent=0 // pred_region
    _
  $region61: #{shred_forward.1} parent=0 // pred_fallthru
    _

</llo_original>
